<compile_context>
chip_gen: v6e
topology: v6e:2x2x1
jax: 0.10.0
libtpu: 0.0.40
codegen_flags: <defaults>
</compile_context>

<pallas_src>
import jax
import jax.numpy as jnp
import numpy as np
from jax.experimental import pallas as pl
from jax.experimental.pallas import tpu as pltpu


_SUB = 8          # f32 sublane tile; channel counts are padded to this
_POOL_IN = 256    # shared pooling selector: 256 input lanes -> 128 even columns
_POOL_OUT = 128
_K = 5            # every conv is (1,5) after folding convnet1's (2,1) conv


def _round_up(n, m):
    return ((n + m - 1) // m) * m


# ---------------------------------------------------------------------------
# Pallas kernel
# ---------------------------------------------------------------------------

def _conv_bn_relu_pool(h, w_ref, sh, sel):
    """One stage: Conv(Ci->Co,(1,5)) [BN scale folded into w, bias+BN shift in sh]
    -> ReLU -> MaxPool(1,2) (pairwise max + shared even-column selector matmul).

    h:   (Ci_pad, P) f32 lane-packed activation (valid samples + junk columns)
    sh:  (Co_pad, 1) f32
    sel: (256, 128) bf16 with sel[2j, j] = 1
    returns (Co_pad, 128 * ceil((P-5)/256)) f32 where out[:, j] == pooled[:, j].
    """
    ci, p = h.shape
    co = w_ref.shape[0]
    wc = p - (_K - 1)
    hb = h.astype(jnp.bfloat16)                       # single cast, before tap stacking
    xs = jnp.concatenate([hb[:, t:t + wc] for t in range(_K)], axis=0)   # (5*Ci, Wc)
    y = jnp.dot(w_ref[...], xs, preferred_element_type=jnp.float32)      # (Co, Wc) f32
    y = jnp.maximum(y + sh, 0.0)                      # folded conv-bias/BN shift + ReLU
    m = jnp.maximum(y[:, :-1], y[:, 1:]).astype(jnp.bfloat16)            # (Co, Wc-1)
    wm = wc - 1
    n = -(-wm // _POOL_IN)                            # chunks of 256 lanes
    pad = n * _POOL_IN - wm
    if pad:
        m = jnp.concatenate([m, jnp.zeros((co, pad), jnp.bfloat16)], axis=1)
    # stack chunks on sublanes -> one selector dot -> re-concatenate on lanes
    stacked = jnp.concatenate(
        [m[:, c * _POOL_IN:(c + 1) * _POOL_IN] for c in range(n)], axis=0)   # (n*Co, 256)
    pooled = jnp.dot(stacked, sel, preferred_element_type=jnp.float32)       # (n*Co, 128)
    return jnp.concatenate(
        [pooled[c * co:(c + 1) * co] for c in range(n)], axis=1)             # (Co, n*128)


def _deepconvnet_kernel(x_ref, w1_ref, w2_ref, w3_ref, w4_ref,
                        shift_ref, sel_ref, wfc_ref, bfc_ref, o_ref):
    sel = sel_ref[...]
    h = x_ref[...]                                    # (8, 1536) f32, 2 lane-packed samples
    for s, w_ref in enumerate((w1_ref, w2_ref, w3_ref, w4_ref)):
        co = w_ref.shape[0]
        h = _conv_bn_relu_pool(h, w_ref, shift_ref[0:co, s:s + 1], sel)
    # h: (200, 128) f32; sample0 at cols [0,43), sample1 at [47,90); rest junk.
    # FC(8600 -> 2) for both packed samples against zero-masked weight planes
    # (identical FLOPs to a fused 3-D reduce; kept 2-D for robust lowering).
    outs = []
    for q in range(4):                                # [s0o0, s0o1, s1o0, s1o1]
        r = jnp.sum(h * wfc_ref[q], axis=1, keepdims=True)       # (200, 1)
        outs.append(jnp.sum(r, axis=0, keepdims=True))           # (1, 1)
    o_ref[0] = jnp.concatenate(outs, axis=1) + bfc_ref[...]      # (1, 4)


# ---------------------------------------------------------------------------
# Wrapper
# ---------------------------------------------------------------------------

def _const_spec(shape):
    nd = len(shape)

    def index_map(g):
        return (0,) * nd

    return pl.BlockSpec(shape, index_map)


@jax.jit
def deepconvnet_forward(p, x):
    N, _, H, W = x.shape                               # (N, 1, 2, 750)
    assert N % 2 == 0, "samples are lane-packed in pairs"
    G = N // 2

    # convnet1: fold Conv(1->25,(1,5)) o Conv(25->25,(2,1)) into Conv1d(2ch->25, K=5)
    w1a = p["c1a_w"].reshape(25, 5)                    # (m, k)
    w1b = p["c1b_w"].reshape(25, 25, 2)                # (o, m, h)
    w_comb = jnp.einsum("omh,mk->okh", w1b, w1a)       # (o, k, h) tap-major
    b_comb = jnp.einsum("omh,m->o", w1b, p["c1a_b"]) + p["c1b_b"]

    stages = [(w_comb, b_comb, p["bn1_scale"], p["bn1_shift"])]
    for wn, bnm, sn, hn in (("c2_w", "c2_b", "bn2_scale", "bn2_shift"),
                            ("c3_w", "c3_b", "bn3_scale", "bn3_shift"),
                            ("c4_w", "c4_b", "bn4_scale", "bn4_shift")):
        stages.append((jnp.transpose(p[wn][:, :, 0, :], (0, 2, 1)),   # (o, k, i)
                       p[bnm], p[sn], p[hn]))
    n_stages = len(stages)

    # lane-packed layout: sample0 at [0, W), sample1 at [off1, off1+W)
    off1 = _round_up(W, 1 << n_stages)                 # even through all 4 pools (752)
    P1 = _round_up(off1 + W, 128)                      # lane-dense packed width (1536)
    assert off1 >= W and off1 + W <= P1

    # per-stage weights/shifts (BN scale folded) + packed-layout invariant checks
    weights, shift_cols, co_pads = [], [], []
    c_in_pad = _round_up(H, _SUB)
    pw, off, ws = P1, off1, W
    for (w3, b, sc, sh) in stages:
        co, k, ci = w3.shape
        assert k == _K
        co_pad = _round_up(co, _SUB)
        w_sc = w3 * sc[:, None, None]                  # fold BN scale (f32, pre-cast)
        w_pad = jnp.pad(w_sc, ((0, co_pad - co), (0, 0), (0, c_in_pad - ci)))
        weights.append(w_pad.reshape(co_pad, k * c_in_pad).astype(jnp.bfloat16))
        shift_cols.append(jnp.pad(sh + b * sc, (0, co_pad - co)))   # fold conv bias
        co_pads.append(co_pad)
        c_in_pad = co_pad
        # bookkeeping: carried packed width, per-sample width, sample-1 offset
        wc_pack = pw - (k - 1)
        pw = (_round_up(wc_pack - 1, _POOL_IN) // _POOL_IN) * _POOL_OUT
        ws = (ws - (k - 1)) // 2
        off //= 2
        assert off >= ws and off + ws <= pw, (off, ws, pw)
    off_final, pw_final = off, pw                      # 47, 128

    co4 = stages[-1][0].shape[0]                       # 200
    co4_pad = co_pads[-1]                              # 200
    assert co4 * ws == p["fc_w"].shape[1], (co4, ws)

    shift_all = jnp.stack(
        [jnp.pad(s, (0, co4_pad - s.shape[0])) for s in shift_cols], axis=1)  # (200, 4)

    # shared even-column pooling selector (256 -> 128), reused by all stages
    rows = np.arange(_POOL_IN)[:, None]
    cols = np.arange(_POOL_OUT)[None, :]
    sel = jnp.asarray((rows == 2 * cols).astype(np.float32), dtype=jnp.bfloat16)

    # FC weight planes for the two lane-packed samples ([s0o0, s0o1, s1o0, s1o1])
    fc3 = p["fc_w"].reshape(2, co4, ws)                # matches pred.view(-1, 8600)
    plane0 = jnp.pad(fc3, ((0, 0), (0, co4_pad - co4), (0, pw_final - ws)))
    plane1 = jnp.pad(fc3, ((0, 0), (0, co4_pad - co4),
                           (off_final, pw_final - off_final - ws)))
    wfc = jnp.concatenate([plane0, plane1], axis=0)    # (4, 200, 128) f32
    bfc = jnp.tile(p["fc_b"], 2).reshape(1, 4)         # [b0, b1, b0, b1]

    # lane-pack the batch: 2 samples per grid step, H padded to 8 sublanes
    h_pad = _round_up(H, _SUB)
    xg = x.reshape(G, 2, H, W)
    x0 = jnp.pad(xg[:, 0], ((0, 0), (0, h_pad - H), (0, P1 - W)))
    x1 = jnp.pad(xg[:, 1], ((0, 0), (0, h_pad - H), (off1, P1 - off1 - W)))
    xp = x0 + x1                                       # (G, 8, P1)

    ins = [xp] + weights + [shift_all, sel, wfc, bfc]
    in_specs = [pl.BlockSpec((None, h_pad, P1), lambda g: (g, 0, 0))]
    for a in ins[1:]:
        in_specs.append(_const_spec(a.shape))

    out = pl.pallas_call(
        _deepconvnet_kernel,
        out_shape=jax.ShapeDtypeStruct((G, 1, 4), jnp.float32),
        grid_spec=pltpu.PrefetchScalarGridSpec(
            num_scalar_prefetch=0,
            grid=(G,),                       # one pair of samples per step
            in_specs=in_specs,
            out_specs=pl.BlockSpec((1, 1, 4), lambda g: (g, 0, 0)),
        ),
        compiler_params=pltpu.CompilerParams(
            dimension_semantics=("parallel",)),   # shards pair-steps across v7x TCs if G>1
    )(*ins)
    return out.reshape(N, 2)


# ---------------------------------------------------------------------------
# Parameters & pure-JAX reference
# ---------------------------------------------------------------------------

def _bn_affine(key, c, eps=1e-5):
    kg, kb = jax.random.split(key)
    gamma = 2.5 + 0.1 * jax.random.normal(kg, (c,), jnp.float32)
    beta = 0.1 * jax.random.normal(kb, (c,), jnp.float32)
    running_mean = jnp.zeros((c,), jnp.float32)
    running_var = jnp.ones((c,), jnp.float32)
    scale = gamma / jnp.sqrt(running_var + eps)
    shift = beta - running_mean * scale
    return scale, shift


def init_params(key):
    def uinit(k, shape, fan_in):
        bound = 1.0 / np.sqrt(fan_in)
        return jax.random.uniform(k, shape, jnp.float32, -bound, bound)

    ks = jax.random.split(key, 16)
    p = {}
    p["c1a_w"] = uinit(ks[0], (25, 1, 1, 5), 5)
    p["c1a_b"] = uinit(ks[1], (25,), 5)
    p["c1b_w"] = uinit(ks[2], (25, 25, 2, 1), 50)
    p["c1b_b"] = uinit(ks[3], (25,), 50)
    p["bn1_scale"], p["bn1_shift"] = _bn_affine(ks[4], 25)
    p["c2_w"] = uinit(ks[5], (50, 25, 1, 5), 125)
    p["c2_b"] = uinit(ks[6], (50,), 125)
    p["bn2_scale"], p["bn2_shift"] = _bn_affine(ks[7], 50)
    p["c3_w"] = uinit(ks[8], (100, 50, 1, 5), 250)
    p["c3_b"] = uinit(ks[9], (100,), 250)
    p["bn3_scale"], p["bn3_shift"] = _bn_affine(ks[10], 100)
    p["c4_w"] = uinit(ks[11], (200, 100, 1, 5), 500)
    p["c4_b"] = uinit(ks[12], (200,), 500)
    p["bn4_scale"], p["bn4_shift"] = _bn_affine(ks[13], 200)
    p["fc_w"] = uinit(ks[14], (2, 8600), 8600)
    p["fc_b"] = uinit(ks[15], (2,), 8600)
    return p


def reference_forward(p, x):
    dn = ("NCHW", "OIHW", "NCHW")

    def conv(h, w, b):
        y = jax.lax.conv_general_dilated(h, w, (1, 1), "VALID", dimension_numbers=dn)
        return y + b.reshape(1, -1, 1, 1)

    def bn_relu(h, scale, shift):
        return jnp.maximum(h * scale.reshape(1, -1, 1, 1)
                           + shift.reshape(1, -1, 1, 1), 0.0)

    def pool(h):
        Wp = h.shape[-1] // 2
        return jnp.maximum(h[..., 0:2 * Wp:2], h[..., 1:2 * Wp:2])

    h = conv(x, p["c1a_w"], p["c1a_b"])
    h = conv(h, p["c1b_w"], p["c1b_b"])
    h = pool(bn_relu(h, p["bn1_scale"], p["bn1_shift"]))
    h = pool(bn_relu(conv(h, p["c2_w"], p["c2_b"]), p["bn2_scale"], p["bn2_shift"]))
    h = pool(bn_relu(conv(h, p["c3_w"], p["c3_b"]), p["bn3_scale"], p["bn3_shift"]))
    h = pool(bn_relu(conv(h, p["c4_w"], p["c4_b"]), p["bn4_scale"], p["bn4_shift"]))
    h = h.reshape(h.shape[0], -1)
    return h @ p["fc_w"].T + p["fc_b"]


if __name__ == "__main__":
    key = jax.random.PRNGKey(0)
    pkey, xkey = jax.random.split(key)
    params = init_params(pkey)

    # batch=2; (H, W) = (2, 750) is forced by pred.view(-1, 8600) in the model
    x = jax.random.normal(xkey, (2, 1, 2, 750), jnp.float32)

    out = jax.block_until_ready(deepconvnet_forward(params, x))
    assert out.shape == (2, 2), out.shape
    assert bool(jnp.all(jnp.isfinite(out)))

    ref = jax.block_until_ready(reference_forward(params, x))
    np.testing.assert_allclose(np.asarray(out), np.asarray(ref), rtol=5e-2, atol=5e-2)

    print("KERNEL_OK")
</pallas_src>

<mosaic_0001>
module attributes {stable_mosaic.version = 11 : i64} {
  func.func @_deepconvnet_kernel(%arg0: i32, %arg1: memref<1x8x1536xf32, #tpu.memory_space<vmem>>, %arg2: memref<32x40xbf16, #tpu.memory_space<vmem>>, %arg3: memref<56x160xbf16, #tpu.memory_space<vmem>>, %arg4: memref<104x280xbf16, #tpu.memory_space<vmem>>, %arg5: memref<200x520xbf16, #tpu.memory_space<vmem>>, %arg6: memref<200x4xf32, #tpu.memory_space<vmem>>, %arg7: memref<256x128xbf16, #tpu.memory_space<vmem>>, %arg8: memref<4x200x128xf32, #tpu.memory_space<vmem>>, %arg9: memref<1x4xf32, #tpu.memory_space<vmem>>, %arg10: memref<1x1x4xf32, #tpu.memory_space<vmem>>) attributes {dimension_semantics = [#tpu.dimension_semantics<parallel>], iteration_bounds = array<i64: 1>, scalar_prefetch = 0 : i64, scratch_operands = 0 : i64, tpu.core_type = #tpu.core_type<tc>, window_params = [{transform_indices = @transform_0, window_bounds = array<i64: 1, 8, 1536>}, {pipeline_mode = #tpu.pipeline_mode<synchronous>, transform_indices = @transform_1, window_bounds = array<i64: 32, 40>}, {pipeline_mode = #tpu.pipeline_mode<synchronous>, transform_indices = @transform_2, window_bounds = array<i64: 56, 160>}, {pipeline_mode = #tpu.pipeline_mode<synchronous>, transform_indices = @transform_3, window_bounds = array<i64: 104, 280>}, {pipeline_mode = #tpu.pipeline_mode<synchronous>, transform_indices = @transform_4, window_bounds = array<i64: 200, 520>}, {pipeline_mode = #tpu.pipeline_mode<synchronous>, transform_indices = @transform_5, window_bounds = array<i64: 200, 4>}, {pipeline_mode = #tpu.pipeline_mode<synchronous>, transform_indices = @transform_6, window_bounds = array<i64: 256, 128>}, {pipeline_mode = #tpu.pipeline_mode<synchronous>, transform_indices = @transform_7, window_bounds = array<i64: 4, 200, 128>}, {pipeline_mode = #tpu.pipeline_mode<synchronous>, transform_indices = @transform_8, window_bounds = array<i64: 1, 4>}, {transform_indices = @transform_9, window_bounds = array<i64: 1, 1, 4>}]} {
    %c0 = arith.constant 0 : index
    %c0_0 = arith.constant 0 : index
    %0 = vector.load %arg7[%c0, %c0_0] : memref<256x128xbf16, #tpu.memory_space<vmem>>, vector<256x128xbf16>
    %c0_1 = arith.constant 0 : index
    %c0_2 = arith.constant 0 : index
    %c0_3 = arith.constant 0 : index
    %1 = vector.load %arg1[%c0_1, %c0_2, %c0_3] : memref<1x8x1536xf32, #tpu.memory_space<vmem>>, vector<1x8x1536xf32>
    %2 = vector.shape_cast %1 : vector<1x8x1536xf32> to vector<8x1536xf32>
    %c0_4 = arith.constant 0 : index
    %c0_5 = arith.constant 0 : index
    %3 = vector.load %arg6[%c0_4, %c0_5] : memref<200x4xf32, #tpu.memory_space<vmem>>, vector<32x1xf32>
    %4 = arith.truncf %2 : vector<8x1536xf32> to vector<8x1536xbf16>
    %5 = vector.extract_strided_slice %4 {offsets = [0, 0], sizes = [8, 1532], strides = [1, 1]} : vector<8x1536xbf16> to vector<8x1532xbf16>
    %6 = vector.extract_strided_slice %4 {offsets = [0, 1], sizes = [8, 1532], strides = [1, 1]} : vector<8x1536xbf16> to vector<8x1532xbf16>
    %7 = vector.extract_strided_slice %4 {offsets = [0, 2], sizes = [8, 1532], strides = [1, 1]} : vector<8x1536xbf16> to vector<8x1532xbf16>
    %8 = vector.extract_strided_slice %4 {offsets = [0, 3], sizes = [8, 1532], strides = [1, 1]} : vector<8x1536xbf16> to vector<8x1532xbf16>
    %9 = vector.extract_strided_slice %4 {offsets = [0, 4], sizes = [8, 1532], strides = [1, 1]} : vector<8x1536xbf16> to vector<8x1532xbf16>
    %10 = tpu.concatenate %5, %6, %7, %8, %9 in 0 : vector<8x1532xbf16>, vector<8x1532xbf16>, vector<8x1532xbf16>, vector<8x1532xbf16>, vector<8x1532xbf16> -> vector<40x1532xbf16>
    %c0_6 = arith.constant 0 : index
    %c0_7 = arith.constant 0 : index
    %11 = vector.load %arg2[%c0_6, %c0_7] : memref<32x40xbf16, #tpu.memory_space<vmem>>, vector<32x40xbf16>
    %cst = arith.constant dense<0.000000e+00> : vector<32x1532xf32>
    %12 = tpu.matmul %11, %10, %cst {dimension_numbers = #tpu.dot_dimension_numbers<[1], [0], [0], [1], [0, 0, 1, 1], [], []>} : vector<32x40xbf16>, vector<40x1532xbf16>, vector<32x1532xf32> -> vector<32x1532xf32>
    %13 = vector.broadcast %3 : vector<32x1xf32> to vector<32x1532xf32>
    %14 = arith.addf %12, %13 : vector<32x1532xf32>
    %cst_8 = arith.constant 0.000000e+00 : f32
    %15 = vector.broadcast %cst_8 : f32 to vector<32x1532xf32>
    %16 = arith.maximumf %14, %15 : vector<32x1532xf32>
    %17 = vector.extract_strided_slice %16 {offsets = [0, 0], sizes = [32, 1531], strides = [1, 1]} : vector<32x1532xf32> to vector<32x1531xf32>
    %18 = vector.extract_strided_slice %16 {offsets = [0, 1], sizes = [32, 1531], strides = [1, 1]} : vector<32x1532xf32> to vector<32x1531xf32>
    %19 = arith.maximumf %17, %18 : vector<32x1531xf32>
    %20 = arith.truncf %19 : vector<32x1531xf32> to vector<32x1531xbf16>
    %cst_9 = arith.constant 0.000000e+00 : bf16
    %21 = vector.broadcast %cst_9 : bf16 to vector<32x5xbf16>
    %22 = tpu.concatenate %20, %21 in 1 : vector<32x1531xbf16>, vector<32x5xbf16> -> vector<32x1536xbf16>
    %23 = vector.extract_strided_slice %22 {offsets = [0, 0], sizes = [32, 256], strides = [1, 1]} : vector<32x1536xbf16> to vector<32x256xbf16>
    %24 = vector.extract_strided_slice %22 {offsets = [0, 256], sizes = [32, 256], strides = [1, 1]} : vector<32x1536xbf16> to vector<32x256xbf16>
    %25 = vector.extract_strided_slice %22 {offsets = [0, 512], sizes = [32, 256], strides = [1, 1]} : vector<32x1536xbf16> to vector<32x256xbf16>
    %26 = vector.extract_strided_slice %22 {offsets = [0, 768], sizes = [32, 256], strides = [1, 1]} : vector<32x1536xbf16> to vector<32x256xbf16>
    %27 = vector.extract_strided_slice %22 {offsets = [0, 1024], sizes = [32, 256], strides = [1, 1]} : vector<32x1536xbf16> to vector<32x256xbf16>
    %28 = vector.extract_strided_slice %22 {offsets = [0, 1280], sizes = [32, 256], strides = [1, 1]} : vector<32x1536xbf16> to vector<32x256xbf16>
    %29 = tpu.concatenate %23, %24, %25, %26, %27, %28 in 0 : vector<32x256xbf16>, vector<32x256xbf16>, vector<32x256xbf16>, vector<32x256xbf16>, vector<32x256xbf16>, vector<32x256xbf16> -> vector<192x256xbf16>
    %cst_10 = arith.constant dense<0.000000e+00> : vector<192x128xf32>
    %30 = tpu.matmul %29, %0, %cst_10 {dimension_numbers = #tpu.dot_dimension_numbers<[1], [0], [0], [1], [0, 0, 1, 1], [], []>} : vector<192x256xbf16>, vector<256x128xbf16>, vector<192x128xf32> -> vector<192x128xf32>
    %31 = vector.extract_strided_slice %30 {offsets = [0, 0], sizes = [32, 128], strides = [1, 1]} : vector<192x128xf32> to vector<32x128xf32>
    %32 = vector.extract_strided_slice %30 {offsets = [32, 0], sizes = [32, 128], strides = [1, 1]} : vector<192x128xf32> to vector<32x128xf32>
    %33 = vector.extract_strided_slice %30 {offsets = [64, 0], sizes = [32, 128], strides = [1, 1]} : vector<192x128xf32> to vector<32x128xf32>
    %34 = vector.extract_strided_slice %30 {offsets = [96, 0], sizes = [32, 128], strides = [1, 1]} : vector<192x128xf32> to vector<32x128xf32>
    %35 = vector.extract_strided_slice %30 {offsets = [128, 0], sizes = [32, 128], strides = [1, 1]} : vector<192x128xf32> to vector<32x128xf32>
    %36 = vector.extract_strided_slice %30 {offsets = [160, 0], sizes = [32, 128], strides = [1, 1]} : vector<192x128xf32> to vector<32x128xf32>
    %37 = tpu.concatenate %31, %32, %33, %34, %35, %36 in 1 : vector<32x128xf32>, vector<32x128xf32>, vector<32x128xf32>, vector<32x128xf32>, vector<32x128xf32>, vector<32x128xf32> -> vector<32x768xf32>
    %c0_11 = arith.constant 0 : index
    %c1 = arith.constant 1 : index
    %38 = vector.load %arg6[%c0_11, %c1] : memref<200x4xf32, #tpu.memory_space<vmem>>, vector<56x1xf32>
    %39 = arith.truncf %37 : vector<32x768xf32> to vector<32x768xbf16>
    %40 = vector.extract_strided_slice %39 {offsets = [0, 0], sizes = [32, 764], strides = [1, 1]} : vector<32x768xbf16> to vector<32x764xbf16>
    %41 = vector.extract_strided_slice %39 {offsets = [0, 1], sizes = [32, 764], strides = [1, 1]} : vector<32x768xbf16> to vector<32x764xbf16>
    %42 = vector.extract_strided_slice %39 {offsets = [0, 2], sizes = [32, 764], strides = [1, 1]} : vector<32x768xbf16> to vector<32x764xbf16>
    %43 = vector.extract_strided_slice %39 {offsets = [0, 3], sizes = [32, 764], strides = [1, 1]} : vector<32x768xbf16> to vector<32x764xbf16>
    %44 = vector.extract_strided_slice %39 {offsets = [0, 4], sizes = [32, 764], strides = [1, 1]} : vector<32x768xbf16> to vector<32x764xbf16>
    %45 = tpu.concatenate %40, %41, %42, %43, %44 in 0 : vector<32x764xbf16>, vector<32x764xbf16>, vector<32x764xbf16>, vector<32x764xbf16>, vector<32x764xbf16> -> vector<160x764xbf16>
    %c0_12 = arith.constant 0 : index
    %c0_13 = arith.constant 0 : index
    %46 = vector.load %arg3[%c0_12, %c0_13] : memref<56x160xbf16, #tpu.memory_space<vmem>>, vector<56x160xbf16>
    %cst_14 = arith.constant dense<0.000000e+00> : vector<56x764xf32>
    %47 = tpu.matmul %46, %45, %cst_14 {dimension_numbers = #tpu.dot_dimension_numbers<[1], [0], [0], [1], [0, 0, 1, 1], [], []>} : vector<56x160xbf16>, vector<160x764xbf16>, vector<56x764xf32> -> vector<56x764xf32>
    %48 = vector.broadcast %38 : vector<56x1xf32> to vector<56x764xf32>
    %49 = arith.addf %47, %48 : vector<56x764xf32>
    %cst_15 = arith.constant 0.000000e+00 : f32
    %50 = vector.broadcast %cst_15 : f32 to vector<56x764xf32>
    %51 = arith.maximumf %49, %50 : vector<56x764xf32>
    %52 = vector.extract_strided_slice %51 {offsets = [0, 0], sizes = [56, 763], strides = [1, 1]} : vector<56x764xf32> to vector<56x763xf32>
    %53 = vector.extract_strided_slice %51 {offsets = [0, 1], sizes = [56, 763], strides = [1, 1]} : vector<56x764xf32> to vector<56x763xf32>
    %54 = arith.maximumf %52, %53 : vector<56x763xf32>
    %55 = arith.truncf %54 : vector<56x763xf32> to vector<56x763xbf16>
    %cst_16 = arith.constant 0.000000e+00 : bf16
    %56 = vector.broadcast %cst_16 : bf16 to vector<56x5xbf16>
    %57 = tpu.concatenate %55, %56 in 1 : vector<56x763xbf16>, vector<56x5xbf16> -> vector<56x768xbf16>
    %58 = vector.extract_strided_slice %57 {offsets = [0, 0], sizes = [56, 256], strides = [1, 1]} : vector<56x768xbf16> to vector<56x256xbf16>
    %59 = vector.extract_strided_slice %57 {offsets = [0, 256], sizes = [56, 256], strides = [1, 1]} : vector<56x768xbf16> to vector<56x256xbf16>
    %60 = vector.extract_strided_slice %57 {offsets = [0, 512], sizes = [56, 256], strides = [1, 1]} : vector<56x768xbf16> to vector<56x256xbf16>
    %61 = tpu.concatenate %58, %59, %60 in 0 : vector<56x256xbf16>, vector<56x256xbf16>, vector<56x256xbf16> -> vector<168x256xbf16>
    %cst_17 = arith.constant dense<0.000000e+00> : vector<168x128xf32>
    %62 = tpu.matmul %61, %0, %cst_17 {dimension_numbers = #tpu.dot_dimension_numbers<[1], [0], [0], [1], [0, 0, 1, 1], [], []>} : vector<168x256xbf16>, vector<256x128xbf16>, vector<168x128xf32> -> vector<168x128xf32>
    %63 = vector.extract_strided_slice %62 {offsets = [0, 0], sizes = [56, 128], strides = [1, 1]} : vector<168x128xf32> to vector<56x128xf32>
    %64 = vector.extract_strided_slice %62 {offsets = [56, 0], sizes = [56, 128], strides = [1, 1]} : vector<168x128xf32> to vector<56x128xf32>
    %65 = vector.extract_strided_slice %62 {offsets = [112, 0], sizes = [56, 128], strides = [1, 1]} : vector<168x128xf32> to vector<56x128xf32>
    %66 = tpu.concatenate %63, %64, %65 in 1 : vector<56x128xf32>, vector<56x128xf32>, vector<56x128xf32> -> vector<56x384xf32>
    %c0_18 = arith.constant 0 : index
    %c2 = arith.constant 2 : index
    %67 = vector.load %arg6[%c0_18, %c2] : memref<200x4xf32, #tpu.memory_space<vmem>>, vector<104x1xf32>
    %68 = arith.truncf %66 : vector<56x384xf32> to vector<56x384xbf16>
    %69 = vector.extract_strided_slice %68 {offsets = [0, 0], sizes = [56, 380], strides = [1, 1]} : vector<56x384xbf16> to vector<56x380xbf16>
    %70 = vector.extract_strided_slice %68 {offsets = [0, 1], sizes = [56, 380], strides = [1, 1]} : vector<56x384xbf16> to vector<56x380xbf16>
    %71 = vector.extract_strided_slice %68 {offsets = [0, 2], sizes = [56, 380], strides = [1, 1]} : vector<56x384xbf16> to vector<56x380xbf16>
    %72 = vector.extract_strided_slice %68 {offsets = [0, 3], sizes = [56, 380], strides = [1, 1]} : vector<56x384xbf16> to vector<56x380xbf16>
    %73 = vector.extract_strided_slice %68 {offsets = [0, 4], sizes = [56, 380], strides = [1, 1]} : vector<56x384xbf16> to vector<56x380xbf16>
    %74 = tpu.concatenate %69, %70, %71, %72, %73 in 0 : vector<56x380xbf16>, vector<56x380xbf16>, vector<56x380xbf16>, vector<56x380xbf16>, vector<56x380xbf16> -> vector<280x380xbf16>
    %c0_19 = arith.constant 0 : index
    %c0_20 = arith.constant 0 : index
    %75 = vector.load %arg4[%c0_19, %c0_20] : memref<104x280xbf16, #tpu.memory_space<vmem>>, vector<104x280xbf16>
    %cst_21 = arith.constant dense<0.000000e+00> : vector<104x380xf32>
    %76 = tpu.matmul %75, %74, %cst_21 {dimension_numbers = #tpu.dot_dimension_numbers<[1], [0], [0], [1], [0, 0, 1, 1], [], []>} : vector<104x280xbf16>, vector<280x380xbf16>, vector<104x380xf32> -> vector<104x380xf32>
    %77 = vector.broadcast %67 : vector<104x1xf32> to vector<104x380xf32>
    %78 = arith.addf %76, %77 : vector<104x380xf32>
    %cst_22 = arith.constant 0.000000e+00 : f32
    %79 = vector.broadcast %cst_22 : f32 to vector<104x380xf32>
    %80 = arith.maximumf %78, %79 : vector<104x380xf32>
    %81 = vector.extract_strided_slice %80 {offsets = [0, 0], sizes = [104, 379], strides = [1, 1]} : vector<104x380xf32> to vector<104x379xf32>
    %82 = vector.extract_strided_slice %80 {offsets = [0, 1], sizes = [104, 379], strides = [1, 1]} : vector<104x380xf32> to vector<104x379xf32>
    %83 = arith.maximumf %81, %82 : vector<104x379xf32>
    %84 = arith.truncf %83 : vector<104x379xf32> to vector<104x379xbf16>
    %cst_23 = arith.constant 0.000000e+00 : bf16
    %85 = vector.broadcast %cst_23 : bf16 to vector<104x133xbf16>
    %86 = tpu.concatenate %84, %85 in 1 : vector<104x379xbf16>, vector<104x133xbf16> -> vector<104x512xbf16>
    %87 = vector.extract_strided_slice %86 {offsets = [0, 0], sizes = [104, 256], strides = [1, 1]} : vector<104x512xbf16> to vector<104x256xbf16>
    %88 = vector.extract_strided_slice %86 {offsets = [0, 256], sizes = [104, 256], strides = [1, 1]} : vector<104x512xbf16> to vector<104x256xbf16>
    %89 = tpu.concatenate %87, %88 in 0 : vector<104x256xbf16>, vector<104x256xbf16> -> vector<208x256xbf16>
    %cst_24 = arith.constant dense<0.000000e+00> : vector<208x128xf32>
    %90 = tpu.matmul %89, %0, %cst_24 {dimension_numbers = #tpu.dot_dimension_numbers<[1], [0], [0], [1], [0, 0, 1, 1], [], []>} : vector<208x256xbf16>, vector<256x128xbf16>, vector<208x128xf32> -> vector<208x128xf32>
    %91 = vector.extract_strided_slice %90 {offsets = [0, 0], sizes = [104, 128], strides = [1, 1]} : vector<208x128xf32> to vector<104x128xf32>
    %92 = vector.extract_strided_slice %90 {offsets = [104, 0], sizes = [104, 128], strides = [1, 1]} : vector<208x128xf32> to vector<104x128xf32>
    %93 = tpu.concatenate %91, %92 in 1 : vector<104x128xf32>, vector<104x128xf32> -> vector<104x256xf32>
    %c0_25 = arith.constant 0 : index
    %c3 = arith.constant 3 : index
    %94 = vector.load %arg6[%c0_25, %c3] : memref<200x4xf32, #tpu.memory_space<vmem>>, vector<200x1xf32>
    %95 = arith.truncf %93 : vector<104x256xf32> to vector<104x256xbf16>
    %96 = vector.extract_strided_slice %95 {offsets = [0, 0], sizes = [104, 252], strides = [1, 1]} : vector<104x256xbf16> to vector<104x252xbf16>
    %97 = vector.extract_strided_slice %95 {offsets = [0, 1], sizes = [104, 252], strides = [1, 1]} : vector<104x256xbf16> to vector<104x252xbf16>
    %98 = vector.extract_strided_slice %95 {offsets = [0, 2], sizes = [104, 252], strides = [1, 1]} : vector<104x256xbf16> to vector<104x252xbf16>
    %99 = vector.extract_strided_slice %95 {offsets = [0, 3], sizes = [104, 252], strides = [1, 1]} : vector<104x256xbf16> to vector<104x252xbf16>
    %100 = vector.extract_strided_slice %95 {offsets = [0, 4], sizes = [104, 252], strides = [1, 1]} : vector<104x256xbf16> to vector<104x252xbf16>
    %101 = tpu.concatenate %96, %97, %98, %99, %100 in 0 : vector<104x252xbf16>, vector<104x252xbf16>, vector<104x252xbf16>, vector<104x252xbf16>, vector<104x252xbf16> -> vector<520x252xbf16>
    %c0_26 = arith.constant 0 : index
    %c0_27 = arith.constant 0 : index
    %102 = vector.load %arg5[%c0_26, %c0_27] : memref<200x520xbf16, #tpu.memory_space<vmem>>, vector<200x520xbf16>
    %cst_28 = arith.constant dense<0.000000e+00> : vector<200x252xf32>
    %103 = tpu.matmul %102, %101, %cst_28 {dimension_numbers = #tpu.dot_dimension_numbers<[1], [0], [0], [1], [0, 0, 1, 1], [], []>} : vector<200x520xbf16>, vector<520x252xbf16>, vector<200x252xf32> -> vector<200x252xf32>
    %104 = vector.broadcast %94 : vector<200x1xf32> to vector<200x252xf32>
    %105 = arith.addf %103, %104 : vector<200x252xf32>
    %cst_29 = arith.constant 0.000000e+00 : f32
    %106 = vector.broadcast %cst_29 : f32 to vector<200x252xf32>
    %107 = arith.maximumf %105, %106 : vector<200x252xf32>
    %108 = vector.extract_strided_slice %107 {offsets = [0, 0], sizes = [200, 251], strides = [1, 1]} : vector<200x252xf32> to vector<200x251xf32>
    %109 = vector.extract_strided_slice %107 {offsets = [0, 1], sizes = [200, 251], strides = [1, 1]} : vector<200x252xf32> to vector<200x251xf32>
    %110 = arith.maximumf %108, %109 : vector<200x251xf32>
    %111 = arith.truncf %110 : vector<200x251xf32> to vector<200x251xbf16>
    %cst_30 = arith.constant 0.000000e+00 : bf16
    %112 = vector.broadcast %cst_30 : bf16 to vector<200x5xbf16>
    %113 = tpu.concatenate %111, %112 in 1 : vector<200x251xbf16>, vector<200x5xbf16> -> vector<200x256xbf16>
    %cst_31 = arith.constant dense<0.000000e+00> : vector<200x128xf32>
    %114 = tpu.matmul %113, %0, %cst_31 {dimension_numbers = #tpu.dot_dimension_numbers<[1], [0], [0], [1], [0, 0, 1, 1], [], []>} : vector<200x256xbf16>, vector<256x128xbf16>, vector<200x128xf32> -> vector<200x128xf32>
    %c0_32 = arith.constant 0 : index
    %c0_33 = arith.constant 0 : index
    %c0_34 = arith.constant 0 : index
    %115 = vector.load %arg8[%c0_32, %c0_33, %c0_34] : memref<4x200x128xf32, #tpu.memory_space<vmem>>, vector<1x200x128xf32>
    %116 = vector.shape_cast %115 : vector<1x200x128xf32> to vector<200x128xf32>
    %117 = arith.mulf %114, %116 : vector<200x128xf32>
    %cst_35 = arith.constant dense<0.000000e+00> : vector<200xf32>
    %118 = vector.multi_reduction <add>, %117, %cst_35 [1] : vector<200x128xf32> to vector<200xf32>
    %119 = vector.shape_cast %118 : vector<200xf32> to vector<200x1xf32>
    %cst_36 = arith.constant dense<0.000000e+00> : vector<1xf32>
    %120 = vector.multi_reduction <add>, %119, %cst_36 [0] : vector<200x1xf32> to vector<1xf32>
    %121 = vector.shape_cast %120 : vector<1xf32> to vector<1x1xf32>
    %c1_37 = arith.constant 1 : index
    %c0_38 = arith.constant 0 : index
    %c0_39 = arith.constant 0 : index
    %122 = vector.load %arg8[%c1_37, %c0_38, %c0_39] : memref<4x200x128xf32, #tpu.memory_space<vmem>>, vector<1x200x128xf32>
    %123 = vector.shape_cast %122 : vector<1x200x128xf32> to vector<200x128xf32>
    %124 = arith.mulf %114, %123 : vector<200x128xf32>
    %cst_40 = arith.constant dense<0.000000e+00> : vector<200xf32>
    %125 = vector.multi_reduction <add>, %124, %cst_40 [1] : vector<200x128xf32> to vector<200xf32>
    %126 = vector.shape_cast %125 : vector<200xf32> to vector<200x1xf32>
    %cst_41 = arith.constant dense<0.000000e+00> : vector<1xf32>
    %127 = vector.multi_reduction <add>, %126, %cst_41 [0] : vector<200x1xf32> to vector<1xf32>
    %128 = vector.shape_cast %127 : vector<1xf32> to vector<1x1xf32>
    %c2_42 = arith.constant 2 : index
    %c0_43 = arith.constant 0 : index
    %c0_44 = arith.constant 0 : index
    %129 = vector.load %arg8[%c2_42, %c0_43, %c0_44] : memref<4x200x128xf32, #tpu.memory_space<vmem>>, vector<1x200x128xf32>
    %130 = vector.shape_cast %129 : vector<1x200x128xf32> to vector<200x128xf32>
    %131 = arith.mulf %114, %130 : vector<200x128xf32>
    %cst_45 = arith.constant dense<0.000000e+00> : vector<200xf32>
    %132 = vector.multi_reduction <add>, %131, %cst_45 [1] : vector<200x128xf32> to vector<200xf32>
    %133 = vector.shape_cast %132 : vector<200xf32> to vector<200x1xf32>
    %cst_46 = arith.constant dense<0.000000e+00> : vector<1xf32>
    %134 = vector.multi_reduction <add>, %133, %cst_46 [0] : vector<200x1xf32> to vector<1xf32>
    %135 = vector.shape_cast %134 : vector<1xf32> to vector<1x1xf32>
    %c3_47 = arith.constant 3 : index
    %c0_48 = arith.constant 0 : index
    %c0_49 = arith.constant 0 : index
    %136 = vector.load %arg8[%c3_47, %c0_48, %c0_49] : memref<4x200x128xf32, #tpu.memory_space<vmem>>, vector<1x200x128xf32>
    %137 = vector.shape_cast %136 : vector<1x200x128xf32> to vector<200x128xf32>
    %138 = arith.mulf %114, %137 : vector<200x128xf32>
    %cst_50 = arith.constant dense<0.000000e+00> : vector<200xf32>
    %139 = vector.multi_reduction <add>, %138, %cst_50 [1] : vector<200x128xf32> to vector<200xf32>
    %140 = vector.shape_cast %139 : vector<200xf32> to vector<200x1xf32>
    %cst_51 = arith.constant dense<0.000000e+00> : vector<1xf32>
    %141 = vector.multi_reduction <add>, %140, %cst_51 [0] : vector<200x1xf32> to vector<1xf32>
    %142 = vector.shape_cast %141 : vector<1xf32> to vector<1x1xf32>
    %143 = tpu.concatenate %121, %128, %135, %142 in 1 : vector<1x1xf32>, vector<1x1xf32>, vector<1x1xf32>, vector<1x1xf32> -> vector<1x4xf32>
    %c0_52 = arith.constant 0 : index
    %c0_53 = arith.constant 0 : index
    %144 = vector.load %arg9[%c0_52, %c0_53] : memref<1x4xf32, #tpu.memory_space<vmem>>, vector<1x4xf32>
    %145 = arith.addf %143, %144 : vector<1x4xf32>
    %c0_54 = arith.constant 0 : index
    %c0_55 = arith.constant 0 : index
    %c0_56 = arith.constant 0 : index
    %146 = vector.load %arg10[%c0_54, %c0_55, %c0_56] : memref<1x1x4xf32, #tpu.memory_space<vmem>>, vector<1x1x4xf32>
    %147 = vector.shape_cast %146 : vector<1x1x4xf32> to vector<1x4xf32>
    %148 = vector.shape_cast %145 : vector<1x4xf32> to vector<1x1x4xf32>
    tpu.vector_store %arg10[%c0_54, %c0_55, %c0_56], %148 {strides = array<i32>} : memref<1x1x4xf32, #tpu.memory_space<vmem>>, vector<1x1x4xf32>,
    return
  }
  func.func @transform_0(%arg0: i32) -> (i32, i32, i32) {
    %c0_i32 = arith.constant 0 : i32
    %c0_i32_0 = arith.constant 0 : i32
    %c0_i32_1 = arith.constant 0 : i32
    return %arg0, %c0_i32, %c0_i32_0 : i32, i32, i32
  }
  func.func @transform_1(%arg0: i32) -> (i32, i32) {
    %c0_i32 = arith.constant 0 : i32
    %c0_i32_0 = arith.constant 0 : i32
    %c0_i32_1 = arith.constant 0 : i32
    return %c0_i32, %c0_i32_0 : i32, i32
  }
  func.func @transform_2(%arg0: i32) -> (i32, i32) {
    %c0_i32 = arith.constant 0 : i32
    %c0_i32_0 = arith.constant 0 : i32
    %c0_i32_1 = arith.constant 0 : i32
    return %c0_i32, %c0_i32_0 : i32, i32
  }
  func.func @transform_3(%arg0: i32) -> (i32, i32) {
    %c0_i32 = arith.constant 0 : i32
    %c0_i32_0 = arith.constant 0 : i32
    %c0_i32_1 = arith.constant 0 : i32
    return %c0_i32, %c0_i32_0 : i32, i32
  }
  func.func @transform_4(%arg0: i32) -> (i32, i32) {
    %c0_i32 = arith.constant 0 : i32
    %c0_i32_0 = arith.constant 0 : i32
    %c0_i32_1 = arith.constant 0 : i32
    return %c0_i32, %c0_i32_0 : i32, i32
  }
  func.func @transform_5(%arg0: i32) -> (i32, i32) {
    %c0_i32 = arith.constant 0 : i32
    %c0_i32_0 = arith.constant 0 : i32
    %c0_i32_1 = arith.constant 0 : i32
    return %c0_i32, %c0_i32_0 : i32, i32
  }
  func.func @transform_6(%arg0: i32) -> (i32, i32) {
    %c0_i32 = arith.constant 0 : i32
    %c0_i32_0 = arith.constant 0 : i32
    %c0_i32_1 = arith.constant 0 : i32
    return %c0_i32, %c0_i32_0 : i32, i32
  }
  func.func @transform_7(%arg0: i32) -> (i32, i32, i32) {
    %c0_i32 = arith.constant 0 : i32
    %c0_i32_0 = arith.constant 0 : i32
    %c0_i32_1 = arith.constant 0 : i32
    %c0_i32_2 = arith.constant 0 : i32
    return %c0_i32, %c0_i32_0, %c0_i32_1 : i32, i32, i32
  }
  func.func @transform_8(%arg0: i32) -> (i32, i32) {
    %c0_i32 = arith.constant 0 : i32
    %c0_i32_0 = arith.constant 0 : i32
    %c0_i32_1 = arith.constant 0 : i32
    return %c0_i32, %c0_i32_0 : i32, i32
  }
  func.func @transform_9(%arg0: i32) -> (i32, i32, i32) {
    %c0_i32 = arith.constant 0 : i32
    %c0_i32_0 = arith.constant 0 : i32
    %c0_i32_1 = arith.constant 0 : i32
    return %arg0, %c0_i32, %c0_i32_0 : i32, i32, i32
  }
}

</mosaic_0001>

<llo_original>
// kernel: tile.8
$region0: #{tile.8}
  #allocation0 [shape = 's32[1]{0}', space=sflag, size = 0x4, scoped, tag = 'scoped memory for tile.8']
  %s0 = inlined_call_operand.vmem [shape: f32[2], index: 0, kind: input, shape index: {}]
  %s1 = inlined_call_operand.vmem [shape: f32[2,2], index: 1, kind: output, shape index: {}]
  // Predicated region
  $region2: #{tile.8} parent=0 // pred_check
    _
  $region3: #{tile.8} parent=0 // pred_check_branch
    %3 = sbr.rel (0) target = $region5
  $region4: #{tile.8} parent=0 // pred_region
    _
  $region5: #{tile.8} parent=0 // pred_fallthru
    _
  %v4 = vld [vmem:[%s0] ss:$0 sm:$0xff]
  %5 = vst [vmem:[%s1] sm:$0x3] %v4

// kernel: tile.9
$region0: #{tile.9}
  %s0 = inlined_call_operand.vmem [shape: f32[2,2], index: 0, kind: input, shape index: {}]
  %s1 = inlined_call_operand.vmem [shape: f32[1,4], index: 1, kind: output, shape index: {}]
  $region1: #{tile.9} parent=0
    #allocation0 [shape = 'u8[4096]{0}', space=vmem, size = 0x1000, scoped, tag = 'scoped mem for output reshape']
    #allocation1 [shape = 'u8[4096]{0}', space=vmem, size = 0x1000, scoped, tag = 'scoped mem for input reshape']
    %s3 = sshll.u32 1, 2
    %s4 = ssub.s32 %s3, 1
    %v5 = vld [vmem:[%s0] sm:%s4]
    %6 = vst [vmem:[#allocation1] sm:%s4] %v5
    %v7 = vld [vmem:[#allocation1] sm:$0x1]
    %vm8 = vcmask 15360
    %9 = vst.msk [vmem:[#allocation0] sm:$0x1] %vm8, %v7
    %s10 = scalar_lea.vmem [#allocation1], 1
    %v11 = vld [vmem:[%s10] sm:$0x1]
    %12 = vrot.lane.b32.xlu0 %v11, 2
    %v13 = vpop.permute.xlu0 %12
    %vm14 = vcmask 31760
    %15 = vst.msk [vmem:[#allocation0] sm:$0x1] %vm14, %v13
    %s17 = sshll.u32 1, 1
    %s18 = ssub.s32 %s17, 1
    %v20 = vld [vmem:[#allocation0] sm:%s18]
    %s21 = sshll.u32 1, 1
    %s22 = ssub.s32 %s21, 1
    %23 = vst [vmem:[%s1] sm:%s22] %v20

// kernel: deepconvnet_forward.1
$region0: #{deepconvnet_forward.1}
  #allocation0 [shape = 'u32[]', space=smem, size = 0x4, offset = 0x4, fixed_abs, tag = 'smem constant byte address 0x4 - core index']
  #allocation1 [shape = 'u32[144,128]{1,0:T(1,128)}', space=vmem, size = 0x12000, scoped, tag = 'internal scratch']
  %s0 = inlined_call_operand.vmem [shape: f32[1,8,1536], index: 0, kind: input, shape index: {}]
  %s1 = inlined_call_operand.vmem [shape: bf16[32,40], index: 1, kind: input, shape index: {}]
  %s2 = inlined_call_operand.vmem [shape: bf16[56,160], index: 2, kind: input, shape index: {}]
  %s3 = inlined_call_operand.vmem [shape: bf16[104,280], index: 3, kind: input, shape index: {}]
  %s4 = inlined_call_operand.vmem [shape: bf16[200,520], index: 4, kind: input, shape index: {}]
  %s5 = inlined_call_operand.vmem [shape: f32[200,4], index: 5, kind: input, shape index: {}]
  %s6 = inlined_call_operand.vmem [shape: bf16[256,128], index: 6, kind: input, shape index: {}]
  %s7 = inlined_call_operand.vmem [shape: f32[4,200,128], index: 7, kind: input, shape index: {}]
  %s8 = inlined_call_operand.vmem [shape: f32[1,4], index: 8, kind: input, shape index: {}]
  %s9 = inlined_call_operand.vmem [shape: f32[1,1,4], index: 9, kind: output, shape index: {}]
  %s10 = sld [smem:[#allocation0]]
  $region46: #{deepconvnet_forward.1} parent=0
    _
  %s12 = ssub.s32 1, %s10
  %s13 = scalar_select 0, %s12, %s10
  // Predicated region
  $region2: #{deepconvnet_forward.1} parent=0 // pred_check
    _
  $region3: #{deepconvnet_forward.1} parent=0 // pred_check_branch
    %15 = sbr.rel (0) target = $region5
  $region4: #{deepconvnet_forward.1} parent=0 // pred_region
    _
  $region5: #{deepconvnet_forward.1} parent=0 // pred_fallthru
    _
  // Predicated region
  $region6: #{deepconvnet_forward.1} parent=0 // pred_check
    _
  $region7: #{deepconvnet_forward.1} parent=0 // pred_check_branch
    %17 = sbr.rel (0) target = $region9
  $region8: #{deepconvnet_forward.1} parent=0 // pred_region
    _
  $region9: #{deepconvnet_forward.1} parent=0 // pred_fallthru
    _
  // Predicated region
  $region10: #{deepconvnet_forward.1} parent=0 // pred_check
    _
  $region11: #{deepconvnet_forward.1} parent=0 // pred_check_branch
    %19 = sbr.rel (0) target = $region13
  $region12: #{deepconvnet_forward.1} parent=0 // pred_region
    _
  $region13: #{deepconvnet_forward.1} parent=0 // pred_fallthru
    _
  // Predicated region
  $region14: #{deepconvnet_forward.1} parent=0 // pred_check
    _
  $region15: #{deepconvnet_forward.1} parent=0 // pred_check_branch
    %21 = sbr.rel (0) target = $region17
  $region16: #{deepconvnet_forward.1} parent=0 // pred_region
    _
  $region17: #{deepconvnet_forward.1} parent=0 // pred_fallthru
    _
  // Predicated region
  $region18: #{deepconvnet_forward.1} parent=0 // pred_check
    _
  $region19: #{deepconvnet_forward.1} parent=0 // pred_check_branch
    %23 = sbr.rel (0) target = $region21
  $region20: #{deepconvnet_forward.1} parent=0 // pred_region
    _
  $region21: #{deepconvnet_forward.1} parent=0 // pred_fallthru
    _
  // Predicated region
  $region22: #{deepconvnet_forward.1} parent=0 // pred_check
    _
  $region23: #{deepconvnet_forward.1} parent=0 // pred_check_branch
    %25 = sbr.rel (0) target = $region25
  $region24: #{deepconvnet_forward.1} parent=0 // pred_region
    _
  $region25: #{deepconvnet_forward.1} parent=0 // pred_fallthru
    _
  // Predicated region
  $region26: #{deepconvnet_forward.1} parent=0 // pred_check
    _
  $region27: #{deepconvnet_forward.1} parent=0 // pred_check_branch
    %27 = sbr.rel (0) target = $region29
  $region28: #{deepconvnet_forward.1} parent=0 // pred_region
    _
  $region29: #{deepconvnet_forward.1} parent=0 // pred_fallthru
    _
  // Predicated region
  $region30: #{deepconvnet_forward.1} parent=0 // pred_check
    _
  $region31: #{deepconvnet_forward.1} parent=0 // pred_check_branch
    %29 = sbr.rel (0) target = $region33
  $region32: #{deepconvnet_forward.1} parent=0 // pred_region
    _
  $region33: #{deepconvnet_forward.1} parent=0 // pred_fallthru
    _
  // Predicated region
  $region34: #{deepconvnet_forward.1} parent=0 // pred_check
    _
  $region35: #{deepconvnet_forward.1} parent=0 // pred_check_branch
    %31 = sbr.rel (0) target = $region37
  $region36: #{deepconvnet_forward.1} parent=0 // pred_region
    _
  $region37: #{deepconvnet_forward.1} parent=0 // pred_fallthru
    _
  %v33 = vld [vmem:[%s6] sm:$0xf]
  %v34 = vld [vmem:[%s6 + $0x4] sm:$0xf]
  %v35 = vld [vmem:[%s6 + $0x8] sm:$0xf]
  %v36 = vld [vmem:[%s6 + $0xc] sm:$0xf]
  %v37 = vld [vmem:[%s6 + $0x10] sm:$0xf]
  %v38 = vld [vmem:[%s6 + $0x14] sm:$0xf]
  %v39 = vld [vmem:[%s6 + $0x18] sm:$0xf]
  %v40 = vld [vmem:[%s6 + $0x1c] sm:$0xf]
  %v41 = vld [vmem:[%s6 + $0x20] sm:$0xf]
  %v42 = vld [vmem:[%s6 + $0x24] sm:$0xf]
  %v43 = vld [vmem:[%s6 + $0x28] sm:$0xf]
  %v44 = vld [vmem:[%s6 + $0x2c] sm:$0xf]
  %v45 = vld [vmem:[%s6 + $0x30] sm:$0xf]
  %v46 = vld [vmem:[%s6 + $0x34] sm:$0xf]
  %v47 = vld [vmem:[%s6 + $0x38] sm:$0xf]
  %v48 = vld [vmem:[%s6 + $0x3c] sm:$0xf]
  %v49 = vld [vmem:[%s6 + $0x40] sm:$0xf]
  %v50 = vld [vmem:[%s6 + $0x44] sm:$0xf]
  %v51 = vld [vmem:[%s6 + $0x48] sm:$0xf]
  %v52 = vld [vmem:[%s6 + $0x4c] sm:$0xf]
  %v53 = vld [vmem:[%s6 + $0x50] sm:$0xf]
  %v54 = vld [vmem:[%s6 + $0x54] sm:$0xf]
  %v55 = vld [vmem:[%s6 + $0x58] sm:$0xf]
  %v56 = vld [vmem:[%s6 + $0x5c] sm:$0xf]
  %v57 = vld [vmem:[%s6 + $0x60] sm:$0xf]
  %v58 = vld [vmem:[%s6 + $0x64] sm:$0xf]
  %v59 = vld [vmem:[%s6 + $0x68] sm:$0xf]
  %v60 = vld [vmem:[%s6 + $0x6c] sm:$0xf]
  %v61 = vld [vmem:[%s6 + $0x70] sm:$0xf]
  %v62 = vld [vmem:[%s6 + $0x74] sm:$0xf]
  %v63 = vld [vmem:[%s6 + $0x78] sm:$0xf]
  %v64 = vld [vmem:[%s6 + $0x7c] sm:$0xf]
  %v65 = vld [vmem:[%s0] sm:$0xff]
  %v66 = vld [vmem:[%s0 + $0x8] sm:$0xff]
  %v67 = vld [vmem:[%s0 + $0x10] sm:$0xff]
  %v68 = vld [vmem:[%s0 + $0x18] sm:$0xff]
  %v69 = vld [vmem:[%s0 + $0x20] sm:$0xff]
  %v70 = vld [vmem:[%s0 + $0x28] sm:$0xff]
  %v71 = vld [vmem:[%s0 + $0x30] sm:$0xff]
  %v72 = vld [vmem:[%s0 + $0x38] sm:$0xff]
  %v73 = vld [vmem:[%s0 + $0x40] sm:$0xff]
  %v74 = vld [vmem:[%s0 + $0x48] sm:$0xff]
  %v75 = vld [vmem:[%s0 + $0x50] sm:$0xff]
  %v76 = vld [vmem:[%s0 + $0x58] sm:$0xff]
  %v77 = vld [vmem:[%s5] sm:$0xff]
  %v78 = vld [vmem:[%s5 + $0x8] sm:$0xff]
  %v79 = vld [vmem:[%s5 + $0x10] sm:$0xff]
  %v80 = vld [vmem:[%s5 + $0x18] sm:$0xff]
  %v81 = vpack.c.bf16 %v65, %v65
  %v82 = vpack.c.bf16 %v66, %v66
  %v83 = vpack.c.bf16 %v67, %v67
  %v84 = vpack.c.bf16 %v68, %v68
  %v85 = vpack.c.bf16 %v69, %v69
  %v86 = vpack.c.bf16 %v70, %v70
  %v87 = vpack.c.bf16 %v71, %v71
  %v88 = vpack.c.bf16 %v72, %v72
  %v89 = vpack.c.bf16 %v73, %v73
  %v90 = vpack.c.bf16 %v74, %v74
  %v91 = vpack.c.bf16 %v75, %v75
  %v92 = vpack.c.bf16 %v76, %v76
  %v105 = vrot.slane %v81, 4
  %v106 = vrot.slane %v82, 4
  %v107 = vrot.slane %v83, 4
  %v108 = vrot.slane %v84, 4
  %v109 = vrot.slane %v85, 4
  %v110 = vrot.slane %v86, 4
  %v111 = vrot.slane %v87, 4
  %v112 = vrot.slane %v88, 4
  %v113 = vrot.slane %v89, 4
  %v114 = vrot.slane %v90, 4
  %v115 = vrot.slane %v91, 4
  %v116 = vrot.slane %v92, 4
  %117 = vrot.lane.b32.xlu0 %v105, 127
  %v118 = vpop.permute.xlu0 %117
  %119 = vrot.lane.b32.xlu0 %v106, 127
  %v120 = vpop.permute.xlu0 %119
  %121 = vrot.lane.b32.xlu0 %v107, 127
  %v122 = vpop.permute.xlu0 %121
  %123 = vrot.lane.b32.xlu0 %v108, 127
  %v124 = vpop.permute.xlu0 %123
  %125 = vrot.lane.b32.xlu0 %v109, 127
  %v126 = vpop.permute.xlu0 %125
  %127 = vrot.lane.b32.xlu0 %v110, 127
  %v128 = vpop.permute.xlu0 %127
  %129 = vrot.lane.b32.xlu0 %v111, 127
  %v130 = vpop.permute.xlu0 %129
  %131 = vrot.lane.b32.xlu0 %v112, 127
  %v132 = vpop.permute.xlu0 %131
  %133 = vrot.lane.b32.xlu0 %v113, 127
  %v134 = vpop.permute.xlu0 %133
  %135 = vrot.lane.b32.xlu0 %v114, 127
  %v136 = vpop.permute.xlu0 %135
  %137 = vrot.lane.b32.xlu0 %v115, 127
  %v138 = vpop.permute.xlu0 %137
  %139 = vrot.lane.b32.xlu0 %v116, 127
  %v140 = vpop.permute.xlu0 %139
  %vm141 = vcmask 1039360
  %v142 = vsel %vm141, %v118, %v120
  %v143 = vsel %vm141, %v120, %v122
  %v144 = vsel %vm141, %v122, %v124
  %v145 = vsel %vm141, %v124, %v126
  %v146 = vsel %vm141, %v126, %v128
  %v147 = vsel %vm141, %v128, %v130
  %v148 = vsel %vm141, %v130, %v132
  %v149 = vsel %vm141, %v132, %v134
  %v150 = vsel %vm141, %v134, %v136
  %v151 = vsel %vm141, %v136, %v138
  %v152 = vsel %vm141, %v138, %v140
  %153 = vrot.lane.b32.xlu0 %v81, 126
  %v154 = vpop.permute.xlu0 %153
  %155 = vrot.lane.b32.xlu0 %v82, 126
  %v156 = vpop.permute.xlu0 %155
  %157 = vrot.lane.b32.xlu0 %v83, 126
  %v158 = vpop.permute.xlu0 %157
  %159 = vrot.lane.b32.xlu0 %v84, 126
  %v160 = vpop.permute.xlu0 %159
  %161 = vrot.lane.b32.xlu0 %v85, 126
  %v162 = vpop.permute.xlu0 %161
  %163 = vrot.lane.b32.xlu0 %v86, 126
  %v164 = vpop.permute.xlu0 %163
  %165 = vrot.lane.b32.xlu0 %v87, 126
  %v166 = vpop.permute.xlu0 %165
  %167 = vrot.lane.b32.xlu0 %v88, 126
  %v168 = vpop.permute.xlu0 %167
  %169 = vrot.lane.b32.xlu0 %v89, 126
  %v170 = vpop.permute.xlu0 %169
  %171 = vrot.lane.b32.xlu0 %v90, 126
  %v172 = vpop.permute.xlu0 %171
  %173 = vrot.lane.b32.xlu0 %v91, 126
  %v174 = vpop.permute.xlu0 %173
  %175 = vrot.lane.b32.xlu0 %v92, 126
  %v176 = vpop.permute.xlu0 %175
  %vm177 = vcmask 1031168
  %v178 = vsel %vm177, %v154, %v156
  %v179 = vsel %vm177, %v156, %v158
  %v180 = vsel %vm177, %v158, %v160
  %v181 = vsel %vm177, %v160, %v162
  %v182 = vsel %vm177, %v162, %v164
  %v183 = vsel %vm177, %v164, %v166
  %v184 = vsel %vm177, %v166, %v168
  %v185 = vsel %vm177, %v168, %v170
  %v186 = vsel %vm177, %v170, %v172
  %v187 = vsel %vm177, %v172, %v174
  %v188 = vsel %vm177, %v174, %v176
  %189 = vrot.lane.b32.xlu0 %v105, 125
  %v190 = vpop.permute.xlu0 %189
  %191 = vrot.lane.b32.xlu0 %v106, 125
  %v192 = vpop.permute.xlu0 %191
  %193 = vrot.lane.b32.xlu0 %v107, 125
  %v194 = vpop.permute.xlu0 %193
  %195 = vrot.lane.b32.xlu0 %v108, 125
  %v196 = vpop.permute.xlu0 %195
  %197 = vrot.lane.b32.xlu0 %v109, 125
  %v198 = vpop.permute.xlu0 %197
  %199 = vrot.lane.b32.xlu0 %v110, 125
  %v200 = vpop.permute.xlu0 %199
  %201 = vrot.lane.b32.xlu0 %v111, 125
  %v202 = vpop.permute.xlu0 %201
  %203 = vrot.lane.b32.xlu0 %v112, 125
  %v204 = vpop.permute.xlu0 %203
  %205 = vrot.lane.b32.xlu0 %v113, 125
  %v206 = vpop.permute.xlu0 %205
  %207 = vrot.lane.b32.xlu0 %v114, 125
  %v208 = vpop.permute.xlu0 %207
  %209 = vrot.lane.b32.xlu0 %v115, 125
  %v210 = vpop.permute.xlu0 %209
  %211 = vrot.lane.b32.xlu0 %v116, 125
  %v212 = vpop.permute.xlu0 %211
  %vm213 = vcmask 1022976
  %v214 = vsel %vm213, %v190, %v192
  %v215 = vsel %vm213, %v192, %v194
  %v216 = vsel %vm213, %v194, %v196
  %v217 = vsel %vm213, %v196, %v198
  %v218 = vsel %vm213, %v198, %v200
  %v219 = vsel %vm213, %v200, %v202
  %v220 = vsel %vm213, %v202, %v204
  %v221 = vsel %vm213, %v204, %v206
  %v222 = vsel %vm213, %v206, %v208
  %v223 = vsel %vm213, %v208, %v210
  %v224 = vsel %vm213, %v210, %v212
  %225 = vrot.lane.b32.xlu0 %v81, 124
  %v226 = vpop.permute.xlu0 %225
  %227 = vrot.lane.b32.xlu0 %v82, 124
  %v228 = vpop.permute.xlu0 %227
  %229 = vrot.lane.b32.xlu0 %v83, 124
  %v230 = vpop.permute.xlu0 %229
  %231 = vrot.lane.b32.xlu0 %v84, 124
  %v232 = vpop.permute.xlu0 %231
  %233 = vrot.lane.b32.xlu0 %v85, 124
  %v234 = vpop.permute.xlu0 %233
  %235 = vrot.lane.b32.xlu0 %v86, 124
  %v236 = vpop.permute.xlu0 %235
  %237 = vrot.lane.b32.xlu0 %v87, 124
  %v238 = vpop.permute.xlu0 %237
  %239 = vrot.lane.b32.xlu0 %v88, 124
  %v240 = vpop.permute.xlu0 %239
  %241 = vrot.lane.b32.xlu0 %v89, 124
  %v242 = vpop.permute.xlu0 %241
  %243 = vrot.lane.b32.xlu0 %v90, 124
  %v244 = vpop.permute.xlu0 %243
  %245 = vrot.lane.b32.xlu0 %v91, 124
  %v246 = vpop.permute.xlu0 %245
  %247 = vrot.lane.b32.xlu0 %v92, 124
  %v248 = vpop.permute.xlu0 %247
  %vm249 = vcmask 1014784
  %v250 = vsel %vm249, %v226, %v228
  %v251 = vsel %vm249, %v228, %v230
  %v252 = vsel %vm249, %v230, %v232
  %v253 = vsel %vm249, %v232, %v234
  %v254 = vsel %vm249, %v234, %v236
  %v255 = vsel %vm249, %v236, %v238
  %v256 = vsel %vm249, %v238, %v240
  %v257 = vsel %vm249, %v240, %v242
  %v258 = vsel %vm249, %v242, %v244
  %v259 = vsel %vm249, %v244, %v246
  %v260 = vsel %vm249, %v246, %v248
  %vm261 = vcmask 1043456
  %v264 = vsel %vm261, %v81, %v142
  %v268 = vsel %vm261, %v82, %v143
  %v272 = vsel %vm261, %v83, %v144
  %v276 = vsel %vm261, %v84, %v145
  %v280 = vsel %vm261, %v85, %v146
  %v284 = vsel %vm261, %v86, %v147
  %v288 = vsel %vm261, %v87, %v148
  %v292 = vsel %vm261, %v88, %v149
  %v296 = vsel %vm261, %v89, %v150
  %v300 = vsel %vm261, %v90, %v151
  %v304 = vsel %vm261, %v91, %v152
  %v308 = vsel %vm261, %v92, %v140
  %v312 = vsel %vm261, %v178, %v214
  %v316 = vsel %vm261, %v179, %v215
  %v320 = vsel %vm261, %v180, %v216
  %v324 = vsel %vm261, %v181, %v217
  %v328 = vsel %vm261, %v182, %v218
  %v332 = vsel %vm261, %v183, %v219
  %v336 = vsel %vm261, %v184, %v220
  %v340 = vsel %vm261, %v185, %v221
  %v344 = vsel %vm261, %v186, %v222
  %v348 = vsel %vm261, %v187, %v223
  %v352 = vsel %vm261, %v188, %v224
  %v356 = vsel %vm261, %v176, %v212
  %v358 = vld [vmem:[%s1] sm:$0xf]
  %v359 = vld [vmem:[%s1 + $0x4] sm:$0xf]
  %v360 = vld [vmem:[%s1 + $0x8] sm:$0xf]
  %v361 = vld [vmem:[%s1 + $0xc] sm:$0xf]
  %363 = vset.pattern.permute.xlu0 0
  %364 = vperm.xlu0 %363, %v77
  %v365 = vpop.permute.xlu0 %364
  %368 = vset.pattern.permute.xlu0 0
  %369 = vperm.xlu0 %368, %v78
  %v370 = vpop.permute.xlu0 %369
  %373 = vset.pattern.permute.xlu0 0
  %374 = vperm.xlu0 %373, %v79
  %v375 = vpop.permute.xlu0 %374
  %378 = vset.pattern.permute.xlu0 0
  %379 = vperm.xlu0 %378, %v80
  %v380 = vpop.permute.xlu0 %379
  %v386 = vunpack.c.l.b16 %v358
  %v387 = vunpack.c.l.b16 %v359
  %v388 = vunpack.c.l.b16 %v360
  %v389 = vunpack.c.l.b16 %v361
  %v390 = vpack.c.b16 %v387, %v386
  %v391 = vpack.c.b16 %v389, %v388
  %vm392 = vcmask 326656
  %v394 = vsel %vm392, %v390, 0
  %v397 = vsel %vm392, %v391, 0
  %v400 = vsel %vm261, %v250, 0
  %v403 = vsel %vm261, %v251, 0
  %v406 = vsel %vm261, %v252, 0
  %v409 = vsel %vm261, %v253, 0
  %v412 = vsel %vm261, %v254, 0
  %v415 = vsel %vm261, %v255, 0
  %v418 = vsel %vm261, %v256, 0
  %v421 = vsel %vm261, %v257, 0
  %v424 = vsel %vm261, %v258, 0
  %v427 = vsel %vm261, %v259, 0
  %v430 = vsel %vm261, %v260, 0
  %v433 = vsel %vm261, %v248, 0
  %435 = vmatprep.subr.bf16.mxu0 0
  %436 = vmatpush1.bf16.msra.mxu0 0
  %437 = vmatprep.subr.bf16.mxu0 0
  %438 = vmatpush1.bf16.msra.mxu0 0
  %439 = vmatprep.subr.bf16.mxu0 0
  %440 = vmatpush1.bf16.msra.mxu0 0
  %441 = vmatprep.subr.bf16.mxu0 0
  %442 = vmatpush1.bf16.msra.mxu0 0
  %443 = vmatprep.subr.bf16.mxu0 0
  %444 = vmatpush1.bf16.msra.mxu0 0
  %445 = vmatprep.subr.bf16.mxu0 %v403
  %446 = vmatpush1.bf16.msra.mxu0 %v400
  %447 = vmatprep.subr.bf16.mxu0 %v316
  %448 = vmatpush1.bf16.msra.mxu0 %v312
  %449 = vmatprep.subr.bf16.mxu0 %v268
  %450 = vmatpush1.bf16.msra.mxu0 %v264
  %451 = vmatprep.subr.bf16.mxu0 0
  %452 = vmatpush2.bf16.msra.mxu0 0
  %453 = vmatprep.subr.bf16.mxu0 0
  %454 = vmatpush2.bf16.msra.mxu0 0
  %455 = vmatprep.subr.bf16.mxu0 0
  %456 = vmatpush2.bf16.msra.mxu0 0
  %457 = vmatprep.subr.bf16.mxu0 0
  %458 = vmatpush2.bf16.msra.mxu0 0
  %459 = vmatprep.subr.bf16.mxu0 0
  %460 = vmatpush2.bf16.msra.mxu0 0
  %461 = vmatprep.subr.bf16.mxu0 0
  %462 = vmatpush2.bf16.msra.mxu0 0
  %463 = vmatprep.subr.bf16.mxu0 0
  %464 = vmatpush2.bf16.msra.mxu0 0
  %465 = vmatprep.subr.bf16.mxu0 0
  %466 = vmatpush2.bf16.msra.mxu0 0
  %467 = vmatprep.mubr.bf16.mxu0 0
  %468 = vmatmul.mubr.bf16.gmra.mxu0 %v394
  %v469 = vpop.f32.mrf.mxu0
  %v470 = vadd.f32 %v365, %v469
  %v471 = vpop.f32.mrf.mxu0
  %v472 = vadd.f32 %v365, %v471
  %v473 = vpop.f32.mrf.mxu0
  %v474 = vadd.f32 %v370, %v473
  %v475 = vpop.f32.mrf.mxu0
  %v476 = vadd.f32 %v370, %v475
  %477 = vmatprep.mubr.bf16.mxu0 0
  %478 = vmatmul.mubr.bf16.gmra.mxu0 %v397
  %v479 = vpop.f32.mrf.mxu0
  %v480 = vadd.f32 %v375, %v479
  %v481 = vpop.f32.mrf.mxu0
  %v482 = vadd.f32 %v375, %v481
  %v483 = vpop.f32.mrf.mxu0
  %v484 = vadd.f32 %v380, %v483
  %v485 = vpop.f32.mrf.mxu0
  %v486 = vadd.f32 %v380, %v485
  %487 = vdwg.mxu0
  %488 = vmatprep.subr.bf16.mxu0 0
  %489 = vmatpush1.bf16.msra.mxu0 0
  %490 = vmatprep.subr.bf16.mxu0 0
  %491 = vmatpush1.bf16.msra.mxu0 0
  %492 = vmatprep.subr.bf16.mxu0 0
  %493 = vmatpush1.bf16.msra.mxu0 0
  %494 = vmatprep.subr.bf16.mxu0 0
  %495 = vmatpush1.bf16.msra.mxu0 0
  %496 = vmatprep.subr.bf16.mxu0 0
  %497 = vmatpush1.bf16.msra.mxu0 0
  %498 = vmatprep.subr.bf16.mxu0 %v409
  %499 = vmatpush1.bf16.msra.mxu0 %v406
  %500 = vmatprep.subr.bf16.mxu0 %v324
  %501 = vmatpush1.bf16.msra.mxu0 %v320
  %502 = vmatprep.subr.bf16.mxu0 %v276
  %503 = vmatpush1.bf16.msra.mxu0 %v272
  %504 = vmatprep.subr.bf16.mxu0 0
  %505 = vmatpush2.bf16.msra.mxu0 0
  %506 = vmatprep.subr.bf16.mxu0 0
  %507 = vmatpush2.bf16.msra.mxu0 0
  %508 = vmatprep.subr.bf16.mxu0 0
  %509 = vmatpush2.bf16.msra.mxu0 0
  %510 = vmatprep.subr.bf16.mxu0 0
  %511 = vmatpush2.bf16.msra.mxu0 0
  %512 = vmatprep.subr.bf16.mxu0 0
  %513 = vmatpush2.bf16.msra.mxu0 0
  %514 = vmatprep.subr.bf16.mxu0 0
  %515 = vmatpush2.bf16.msra.mxu0 0
  %516 = vmatprep.subr.bf16.mxu0 0
  %517 = vmatpush2.bf16.msra.mxu0 0
  %518 = vmatprep.subr.bf16.mxu0 0
  %519 = vmatpush2.bf16.msra.mxu0 0
  %520 = vmatprep.mubr.bf16.mxu0 0
  %521 = vmatmul.mubr.bf16.gmra.mxu0 %v394
  %v522 = vpop.f32.mrf.mxu0
  %v523 = vadd.f32 %v365, %v522
  %v524 = vpop.f32.mrf.mxu0
  %v525 = vadd.f32 %v365, %v524
  %v526 = vpop.f32.mrf.mxu0
  %v527 = vadd.f32 %v370, %v526
  %v528 = vpop.f32.mrf.mxu0
  %v529 = vadd.f32 %v370, %v528
  %530 = vmatprep.mubr.bf16.mxu0 0
  %531 = vmatmul.mubr.bf16.gmra.mxu0 %v397
  %v532 = vpop.f32.mrf.mxu0
  %v533 = vadd.f32 %v375, %v532
  %v534 = vpop.f32.mrf.mxu0
  %v535 = vadd.f32 %v375, %v534
  %v536 = vpop.f32.mrf.mxu0
  %v537 = vadd.f32 %v380, %v536
  %v538 = vpop.f32.mrf.mxu0
  %v539 = vadd.f32 %v380, %v538
  %540 = vdwg.mxu0
  %541 = vmatprep.subr.bf16.mxu0 0
  %542 = vmatpush1.bf16.msra.mxu0 0
  %543 = vmatprep.subr.bf16.mxu0 0
  %544 = vmatpush1.bf16.msra.mxu0 0
  %545 = vmatprep.subr.bf16.mxu0 0
  %546 = vmatpush1.bf16.msra.mxu0 0
  %547 = vmatprep.subr.bf16.mxu0 0
  %548 = vmatpush1.bf16.msra.mxu0 0
  %549 = vmatprep.subr.bf16.mxu0 0
  %550 = vmatpush1.bf16.msra.mxu0 0
  %551 = vmatprep.subr.bf16.mxu0 %v415
  %552 = vmatpush1.bf16.msra.mxu0 %v412
  %553 = vmatprep.subr.bf16.mxu0 %v332
  %554 = vmatpush1.bf16.msra.mxu0 %v328
  %555 = vmatprep.subr.bf16.mxu0 %v284
  %556 = vmatpush1.bf16.msra.mxu0 %v280
  %557 = vmatprep.subr.bf16.mxu0 0
  %558 = vmatpush2.bf16.msra.mxu0 0
  %559 = vmatprep.subr.bf16.mxu0 0
  %560 = vmatpush2.bf16.msra.mxu0 0
  %561 = vmatprep.subr.bf16.mxu0 0
  %562 = vmatpush2.bf16.msra.mxu0 0
  %563 = vmatprep.subr.bf16.mxu0 0
  %564 = vmatpush2.bf16.msra.mxu0 0
  %565 = vmatprep.subr.bf16.mxu0 0
  %566 = vmatpush2.bf16.msra.mxu0 0
  %567 = vmatprep.subr.bf16.mxu0 0
  %568 = vmatpush2.bf16.msra.mxu0 0
  %569 = vmatprep.subr.bf16.mxu0 0
  %570 = vmatpush2.bf16.msra.mxu0 0
  %571 = vmatprep.subr.bf16.mxu0 0
  %572 = vmatpush2.bf16.msra.mxu0 0
  %573 = vmatprep.mubr.bf16.mxu0 0
  %574 = vmatmul.mubr.bf16.gmra.mxu0 %v394
  %v575 = vpop.f32.mrf.mxu0
  %v576 = vadd.f32 %v365, %v575
  %v577 = vpop.f32.mrf.mxu0
  %v578 = vadd.f32 %v365, %v577
  %v579 = vpop.f32.mrf.mxu0
  %v580 = vadd.f32 %v370, %v579
  %v581 = vpop.f32.mrf.mxu0
  %v582 = vadd.f32 %v370, %v581
  %583 = vmatprep.mubr.bf16.mxu0 0
  %584 = vmatmul.mubr.bf16.gmra.mxu0 %v397
  %v585 = vpop.f32.mrf.mxu0
  %v586 = vadd.f32 %v375, %v585
  %v587 = vpop.f32.mrf.mxu0
  %v588 = vadd.f32 %v375, %v587
  %v589 = vpop.f32.mrf.mxu0
  %v590 = vadd.f32 %v380, %v589
  %v591 = vpop.f32.mrf.mxu0
  %v592 = vadd.f32 %v380, %v591
  %593 = vdwg.mxu0
  %594 = vmatprep.subr.bf16.mxu0 0
  %595 = vmatpush1.bf16.msra.mxu0 0
  %596 = vmatprep.subr.bf16.mxu0 0
  %597 = vmatpush1.bf16.msra.mxu0 0
  %598 = vmatprep.subr.bf16.mxu0 0
  %599 = vmatpush1.bf16.msra.mxu0 0
  %600 = vmatprep.subr.bf16.mxu0 0
  %601 = vmatpush1.bf16.msra.mxu0 0
  %602 = vmatprep.subr.bf16.mxu0 0
  %603 = vmatpush1.bf16.msra.mxu0 0
  %604 = vmatprep.subr.bf16.mxu0 %v421
  %605 = vmatpush1.bf16.msra.mxu0 %v418
  %606 = vmatprep.subr.bf16.mxu0 %v340
  %607 = vmatpush1.bf16.msra.mxu0 %v336
  %608 = vmatprep.subr.bf16.mxu0 %v292
  %609 = vmatpush1.bf16.msra.mxu0 %v288
  %610 = vmatprep.subr.bf16.mxu0 0
  %611 = vmatpush2.bf16.msra.mxu0 0
  %612 = vmatprep.subr.bf16.mxu0 0
  %613 = vmatpush2.bf16.msra.mxu0 0
  %614 = vmatprep.subr.bf16.mxu0 0
  %615 = vmatpush2.bf16.msra.mxu0 0
  %616 = vmatprep.subr.bf16.mxu0 0
  %617 = vmatpush2.bf16.msra.mxu0 0
  %618 = vmatprep.subr.bf16.mxu0 0
  %619 = vmatpush2.bf16.msra.mxu0 0
  %620 = vmatprep.subr.bf16.mxu0 0
  %621 = vmatpush2.bf16.msra.mxu0 0
  %622 = vmatprep.subr.bf16.mxu0 0
  %623 = vmatpush2.bf16.msra.mxu0 0
  %624 = vmatprep.subr.bf16.mxu0 0
  %625 = vmatpush2.bf16.msra.mxu0 0
  %626 = vmatprep.mubr.bf16.mxu0 0
  %627 = vmatmul.mubr.bf16.gmra.mxu0 %v394
  %v628 = vpop.f32.mrf.mxu0
  %v629 = vadd.f32 %v365, %v628
  %v630 = vpop.f32.mrf.mxu0
  %v631 = vadd.f32 %v365, %v630
  %v632 = vpop.f32.mrf.mxu0
  %v633 = vadd.f32 %v370, %v632
  %v634 = vpop.f32.mrf.mxu0
  %v635 = vadd.f32 %v370, %v634
  %636 = vmatprep.mubr.bf16.mxu0 0
  %637 = vmatmul.mubr.bf16.gmra.mxu0 %v397
  %v638 = vpop.f32.mrf.mxu0
  %v639 = vadd.f32 %v375, %v638
  %v640 = vpop.f32.mrf.mxu0
  %v641 = vadd.f32 %v375, %v640
  %v642 = vpop.f32.mrf.mxu0
  %v643 = vadd.f32 %v380, %v642
  %v644 = vpop.f32.mrf.mxu0
  %v645 = vadd.f32 %v380, %v644
  %646 = vdwg.mxu0
  %647 = vmatprep.subr.bf16.mxu0 0
  %648 = vmatpush1.bf16.msra.mxu0 0
  %649 = vmatprep.subr.bf16.mxu0 0
  %650 = vmatpush1.bf16.msra.mxu0 0
  %651 = vmatprep.subr.bf16.mxu0 0
  %652 = vmatpush1.bf16.msra.mxu0 0
  %653 = vmatprep.subr.bf16.mxu0 0
  %654 = vmatpush1.bf16.msra.mxu0 0
  %655 = vmatprep.subr.bf16.mxu0 0
  %656 = vmatpush1.bf16.msra.mxu0 0
  %657 = vmatprep.subr.bf16.mxu0 %v427
  %658 = vmatpush1.bf16.msra.mxu0 %v424
  %659 = vmatprep.subr.bf16.mxu0 %v348
  %660 = vmatpush1.bf16.msra.mxu0 %v344
  %661 = vmatprep.subr.bf16.mxu0 %v300
  %662 = vmatpush1.bf16.msra.mxu0 %v296
  %663 = vmatprep.subr.bf16.mxu0 0
  %664 = vmatpush2.bf16.msra.mxu0 0
  %665 = vmatprep.subr.bf16.mxu0 0
  %666 = vmatpush2.bf16.msra.mxu0 0
  %667 = vmatprep.subr.bf16.mxu0 0
  %668 = vmatpush2.bf16.msra.mxu0 0
  %669 = vmatprep.subr.bf16.mxu0 0
  %670 = vmatpush2.bf16.msra.mxu0 0
  %671 = vmatprep.subr.bf16.mxu0 0
  %672 = vmatpush2.bf16.msra.mxu0 0
  %673 = vmatprep.subr.bf16.mxu0 0
  %674 = vmatpush2.bf16.msra.mxu0 0
  %675 = vmatprep.subr.bf16.mxu0 0
  %676 = vmatpush2.bf16.msra.mxu0 0
  %677 = vmatprep.subr.bf16.mxu0 0
  %678 = vmatpush2.bf16.msra.mxu0 0
  %679 = vmatprep.mubr.bf16.mxu0 0
  %680 = vmatmul.mubr.bf16.gmra.mxu0 %v394
  %v681 = vpop.f32.mrf.mxu0
  %v682 = vadd.f32 %v365, %v681
  %v683 = vpop.f32.mrf.mxu0
  %v684 = vadd.f32 %v365, %v683
  %v685 = vpop.f32.mrf.mxu0
  %v686 = vadd.f32 %v370, %v685
  %v687 = vpop.f32.mrf.mxu0
  %v688 = vadd.f32 %v370, %v687
  %689 = vmatprep.mubr.bf16.mxu0 0
  %690 = vmatmul.mubr.bf16.gmra.mxu0 %v397
  %v691 = vpop.f32.mrf.mxu0
  %v692 = vadd.f32 %v375, %v691
  %v693 = vpop.f32.mrf.mxu0
  %v694 = vadd.f32 %v375, %v693
  %v695 = vpop.f32.mrf.mxu0
  %v696 = vadd.f32 %v380, %v695
  %v697 = vpop.f32.mrf.mxu0
  %v698 = vadd.f32 %v380, %v697
  %699 = vdwg.mxu0
  %700 = vmatprep.subr.bf16.mxu0 0
  %701 = vmatpush1.bf16.msra.mxu0 0
  %702 = vmatprep.subr.bf16.mxu0 0
  %703 = vmatpush1.bf16.msra.mxu0 0
  %704 = vmatprep.subr.bf16.mxu0 0
  %705 = vmatpush1.bf16.msra.mxu0 0
  %706 = vmatprep.subr.bf16.mxu0 0
  %707 = vmatpush1.bf16.msra.mxu0 0
  %708 = vmatprep.subr.bf16.mxu0 0
  %709 = vmatpush1.bf16.msra.mxu0 0
  %710 = vmatprep.subr.bf16.mxu0 %v433
  %711 = vmatpush1.bf16.msra.mxu0 %v430
  %712 = vmatprep.subr.bf16.mxu0 %v356
  %713 = vmatpush1.bf16.msra.mxu0 %v352
  %714 = vmatprep.subr.bf16.mxu0 %v308
  %715 = vmatpush1.bf16.msra.mxu0 %v304
  %716 = vmatprep.subr.bf16.mxu0 0
  %717 = vmatpush2.bf16.msra.mxu0 0
  %718 = vmatprep.subr.bf16.mxu0 0
  %719 = vmatpush2.bf16.msra.mxu0 0
  %720 = vmatprep.subr.bf16.mxu0 0
  %721 = vmatpush2.bf16.msra.mxu0 0
  %722 = vmatprep.subr.bf16.mxu0 0
  %723 = vmatpush2.bf16.msra.mxu0 0
  %724 = vmatprep.subr.bf16.mxu0 0
  %725 = vmatpush2.bf16.msra.mxu0 0
  %726 = vmatprep.subr.bf16.mxu0 0
  %727 = vmatpush2.bf16.msra.mxu0 0
  %728 = vmatprep.subr.bf16.mxu0 0
  %729 = vmatpush2.bf16.msra.mxu0 0
  %730 = vmatprep.subr.bf16.mxu0 0
  %731 = vmatpush2.bf16.msra.mxu0 0
  %732 = vmatprep.mubr.bf16.mxu0 0
  %733 = vmatmul.mubr.bf16.gmra.mxu0 %v394
  %v734 = vpop.f32.mrf.mxu0
  %v735 = vadd.f32 %v365, %v734
  %v736 = vpop.f32.mrf.mxu0
  %v737 = vadd.f32 %v365, %v736
  %v738 = vpop.f32.mrf.mxu0
  %v739 = vadd.f32 %v370, %v738
  %v740 = vpop.f32.mrf.mxu0
  %v741 = vadd.f32 %v370, %v740
  %742 = vmatprep.mubr.bf16.mxu0 0
  %743 = vmatmul.mubr.bf16.gmra.mxu0 %v397
  %v744 = vpop.f32.mrf.mxu0
  %v745 = vadd.f32 %v375, %v744
  %v746 = vpop.f32.mrf.mxu0
  %v747 = vadd.f32 %v375, %v746
  %v748 = vpop.f32.mrf.mxu0
  %v749 = vadd.f32 %v380, %v748
  %v750 = vpop.f32.mrf.mxu0
  %v751 = vadd.f32 %v380, %v750
  %752 = vdwg.mxu0
  %v753 = vmax.f32 %v470, 0.0
  %v754 = vmax.f32 %v472, 0.0
  %v755 = vmax.f32 %v523, 0.0
  %v756 = vmax.f32 %v525, 0.0
  %v757 = vmax.f32 %v576, 0.0
  %v758 = vmax.f32 %v578, 0.0
  %v759 = vmax.f32 %v629, 0.0
  %v760 = vmax.f32 %v631, 0.0
  %v761 = vmax.f32 %v682, 0.0
  %v762 = vmax.f32 %v684, 0.0
  %v763 = vmax.f32 %v735, 0.0
  %v764 = vmax.f32 %v737, 0.0
  %v765 = vmax.f32 %v474, 0.0
  %v766 = vmax.f32 %v476, 0.0
  %v767 = vmax.f32 %v527, 0.0
  %v768 = vmax.f32 %v529, 0.0
  %v769 = vmax.f32 %v580, 0.0
  %v770 = vmax.f32 %v582, 0.0
  %v771 = vmax.f32 %v633, 0.0
  %v772 = vmax.f32 %v635, 0.0
  %v773 = vmax.f32 %v686, 0.0
  %v774 = vmax.f32 %v688, 0.0
  %v775 = vmax.f32 %v739, 0.0
  %v776 = vmax.f32 %v741, 0.0
  %v777 = vmax.f32 %v480, 0.0
  %v778 = vmax.f32 %v482, 0.0
  %v779 = vmax.f32 %v533, 0.0
  %v780 = vmax.f32 %v535, 0.0
  %v781 = vmax.f32 %v586, 0.0
  %v782 = vmax.f32 %v588, 0.0
  %v783 = vmax.f32 %v639, 0.0
  %v784 = vmax.f32 %v641, 0.0
  %v785 = vmax.f32 %v692, 0.0
  %v786 = vmax.f32 %v694, 0.0
  %v787 = vmax.f32 %v745, 0.0
  %v788 = vmax.f32 %v747, 0.0
  %v789 = vmax.f32 %v484, 0.0
  %v790 = vmax.f32 %v486, 0.0
  %v791 = vmax.f32 %v537, 0.0
  %v792 = vmax.f32 %v539, 0.0
  %v793 = vmax.f32 %v590, 0.0
  %v794 = vmax.f32 %v592, 0.0
  %v795 = vmax.f32 %v643, 0.0
  %v796 = vmax.f32 %v645, 0.0
  %v797 = vmax.f32 %v696, 0.0
  %v798 = vmax.f32 %v698, 0.0
  %v799 = vmax.f32 %v749, 0.0
  %v800 = vmax.f32 %v751, 0.0
  %849 = vrot.lane.b32.xlu0 %v753, 127
  %v850 = vpop.permute.xlu0 %849
  %851 = vrot.lane.b32.xlu0 %v754, 127
  %v852 = vpop.permute.xlu0 %851
  %853 = vrot.lane.b32.xlu0 %v755, 127
  %v854 = vpop.permute.xlu0 %853
  %855 = vrot.lane.b32.xlu0 %v756, 127
  %v856 = vpop.permute.xlu0 %855
  %857 = vrot.lane.b32.xlu0 %v757, 127
  %v858 = vpop.permute.xlu0 %857
  %859 = vrot.lane.b32.xlu0 %v758, 127
  %v860 = vpop.permute.xlu0 %859
  %861 = vrot.lane.b32.xlu0 %v759, 127
  %v862 = vpop.permute.xlu0 %861
  %863 = vrot.lane.b32.xlu0 %v760, 127
  %v864 = vpop.permute.xlu0 %863
  %865 = vrot.lane.b32.xlu0 %v761, 127
  %v866 = vpop.permute.xlu0 %865
  %867 = vrot.lane.b32.xlu0 %v762, 127
  %v868 = vpop.permute.xlu0 %867
  %869 = vrot.lane.b32.xlu0 %v763, 127
  %v870 = vpop.permute.xlu0 %869
  %871 = vrot.lane.b32.xlu0 %v764, 127
  %v872 = vpop.permute.xlu0 %871
  %873 = vrot.lane.b32.xlu0 %v765, 127
  %v874 = vpop.permute.xlu0 %873
  %875 = vrot.lane.b32.xlu0 %v766, 127
  %v876 = vpop.permute.xlu0 %875
  %877 = vrot.lane.b32.xlu0 %v767, 127
  %v878 = vpop.permute.xlu0 %877
  %879 = vrot.lane.b32.xlu0 %v768, 127
  %v880 = vpop.permute.xlu0 %879
  %881 = vrot.lane.b32.xlu0 %v769, 127
  %v882 = vpop.permute.xlu0 %881
  %883 = vrot.lane.b32.xlu0 %v770, 127
  %v884 = vpop.permute.xlu0 %883
  %885 = vrot.lane.b32.xlu0 %v771, 127
  %v886 = vpop.permute.xlu0 %885
  %887 = vrot.lane.b32.xlu0 %v772, 127
  %v888 = vpop.permute.xlu0 %887
  %889 = vrot.lane.b32.xlu0 %v773, 127
  %v890 = vpop.permute.xlu0 %889
  %891 = vrot.lane.b32.xlu0 %v774, 127
  %v892 = vpop.permute.xlu0 %891
  %893 = vrot.lane.b32.xlu0 %v775, 127
  %v894 = vpop.permute.xlu0 %893
  %895 = vrot.lane.b32.xlu0 %v776, 127
  %v896 = vpop.permute.xlu0 %895
  %897 = vrot.lane.b32.xlu0 %v777, 127
  %v898 = vpop.permute.xlu0 %897
  %899 = vrot.lane.b32.xlu0 %v778, 127
  %v900 = vpop.permute.xlu0 %899
  %901 = vrot.lane.b32.xlu0 %v779, 127
  %v902 = vpop.permute.xlu0 %901
  %903 = vrot.lane.b32.xlu0 %v780, 127
  %v904 = vpop.permute.xlu0 %903
  %905 = vrot.lane.b32.xlu0 %v781, 127
  %v906 = vpop.permute.xlu0 %905
  %907 = vrot.lane.b32.xlu0 %v782, 127
  %v908 = vpop.permute.xlu0 %907
  %909 = vrot.lane.b32.xlu0 %v783, 127
  %v910 = vpop.permute.xlu0 %909
  %911 = vrot.lane.b32.xlu0 %v784, 127
  %v912 = vpop.permute.xlu0 %911
  %913 = vrot.lane.b32.xlu0 %v785, 127
  %v914 = vpop.permute.xlu0 %913
  %915 = vrot.lane.b32.xlu0 %v786, 127
  %v916 = vpop.permute.xlu0 %915
  %917 = vrot.lane.b32.xlu0 %v787, 127
  %v918 = vpop.permute.xlu0 %917
  %919 = vrot.lane.b32.xlu0 %v788, 127
  %v920 = vpop.permute.xlu0 %919
  %921 = vrot.lane.b32.xlu0 %v789, 127
  %v922 = vpop.permute.xlu0 %921
  %923 = vrot.lane.b32.xlu0 %v790, 127
  %v924 = vpop.permute.xlu0 %923
  %925 = vrot.lane.b32.xlu0 %v791, 127
  %v926 = vpop.permute.xlu0 %925
  %927 = vrot.lane.b32.xlu0 %v792, 127
  %v928 = vpop.permute.xlu0 %927
  %929 = vrot.lane.b32.xlu0 %v793, 127
  %v930 = vpop.permute.xlu0 %929
  %931 = vrot.lane.b32.xlu0 %v794, 127
  %v932 = vpop.permute.xlu0 %931
  %933 = vrot.lane.b32.xlu0 %v795, 127
  %v934 = vpop.permute.xlu0 %933
  %935 = vrot.lane.b32.xlu0 %v796, 127
  %v936 = vpop.permute.xlu0 %935
  %937 = vrot.lane.b32.xlu0 %v797, 127
  %v938 = vpop.permute.xlu0 %937
  %939 = vrot.lane.b32.xlu0 %v798, 127
  %v940 = vpop.permute.xlu0 %939
  %941 = vrot.lane.b32.xlu0 %v799, 127
  %v942 = vpop.permute.xlu0 %941
  %943 = vrot.lane.b32.xlu0 %v800, 127
  %v944 = vpop.permute.xlu0 %943
  %vm945 = vcmask 1039360
  %v946 = vsel %vm945, %v850, %v852
  %v947 = vsel %vm945, %v852, %v854
  %v948 = vsel %vm945, %v854, %v856
  %v949 = vsel %vm945, %v856, %v858
  %v950 = vsel %vm945, %v858, %v860
  %v951 = vsel %vm945, %v860, %v862
  %v952 = vsel %vm945, %v862, %v864
  %v953 = vsel %vm945, %v864, %v866
  %v954 = vsel %vm945, %v866, %v868
  %v955 = vsel %vm945, %v868, %v870
  %v956 = vsel %vm945, %v870, %v872
  %v957 = vsel %vm945, %v874, %v876
  %v958 = vsel %vm945, %v876, %v878
  %v959 = vsel %vm945, %v878, %v880
  %v960 = vsel %vm945, %v880, %v882
  %v961 = vsel %vm945, %v882, %v884
  %v962 = vsel %vm945, %v884, %v886
  %v963 = vsel %vm945, %v886, %v888
  %v964 = vsel %vm945, %v888, %v890
  %v965 = vsel %vm945, %v890, %v892
  %v966 = vsel %vm945, %v892, %v894
  %v967 = vsel %vm945, %v894, %v896
  %v968 = vsel %vm945, %v898, %v900
  %v969 = vsel %vm945, %v900, %v902
  %v970 = vsel %vm945, %v902, %v904
  %v971 = vsel %vm945, %v904, %v906
  %v972 = vsel %vm945, %v906, %v908
  %v973 = vsel %vm945, %v908, %v910
  %v974 = vsel %vm945, %v910, %v912
  %v975 = vsel %vm945, %v912, %v914
  %v976 = vsel %vm945, %v914, %v916
  %v977 = vsel %vm945, %v916, %v918
  %v978 = vsel %vm945, %v918, %v920
  %v979 = vsel %vm945, %v922, %v924
  %v980 = vsel %vm945, %v924, %v926
  %v981 = vsel %vm945, %v926, %v928
  %v982 = vsel %vm945, %v928, %v930
  %v983 = vsel %vm945, %v930, %v932
  %v984 = vsel %vm945, %v932, %v934
  %v985 = vsel %vm945, %v934, %v936
  %v986 = vsel %vm945, %v936, %v938
  %v987 = vsel %vm945, %v938, %v940
  %v988 = vsel %vm945, %v940, %v942
  %v989 = vsel %vm945, %v942, %v944
  %v1038 = vmax.f32 %v753, %v946
  %v1039 = vmax.f32 %v754, %v947
  %v1040 = vmax.f32 %v755, %v948
  %v1041 = vmax.f32 %v756, %v949
  %v1042 = vmax.f32 %v757, %v950
  %v1043 = vmax.f32 %v758, %v951
  %v1044 = vmax.f32 %v759, %v952
  %v1045 = vmax.f32 %v760, %v953
  %v1046 = vmax.f32 %v761, %v954
  %v1047 = vmax.f32 %v762, %v955
  %v1048 = vmax.f32 %v763, %v956
  %v1049 = vmax.f32 %v764, %v872
  %v1050 = vmax.f32 %v765, %v957
  %v1051 = vmax.f32 %v766, %v958
  %v1052 = vmax.f32 %v767, %v959
  %v1053 = vmax.f32 %v768, %v960
  %v1054 = vmax.f32 %v769, %v961
  %v1055 = vmax.f32 %v770, %v962
  %v1056 = vmax.f32 %v771, %v963
  %v1057 = vmax.f32 %v772, %v964
  %v1058 = vmax.f32 %v773, %v965
  %v1059 = vmax.f32 %v774, %v966
  %v1060 = vmax.f32 %v775, %v967
  %v1061 = vmax.f32 %v776, %v896
  %v1062 = vmax.f32 %v777, %v968
  %v1063 = vmax.f32 %v778, %v969
  %v1064 = vmax.f32 %v779, %v970
  %v1065 = vmax.f32 %v780, %v971
  %v1066 = vmax.f32 %v781, %v972
  %v1067 = vmax.f32 %v782, %v973
  %v1068 = vmax.f32 %v783, %v974
  %v1069 = vmax.f32 %v784, %v975
  %v1070 = vmax.f32 %v785, %v976
  %v1071 = vmax.f32 %v786, %v977
  %v1072 = vmax.f32 %v787, %v978
  %v1073 = vmax.f32 %v788, %v920
  %v1074 = vmax.f32 %v789, %v979
  %v1075 = vmax.f32 %v790, %v980
  %v1076 = vmax.f32 %v791, %v981
  %v1077 = vmax.f32 %v792, %v982
  %v1078 = vmax.f32 %v793, %v983
  %v1079 = vmax.f32 %v794, %v984
  %v1080 = vmax.f32 %v795, %v985
  %v1081 = vmax.f32 %v796, %v986
  %v1082 = vmax.f32 %v797, %v987
  %v1083 = vmax.f32 %v798, %v988
  %v1084 = vmax.f32 %v799, %v989
  %v1085 = vmax.f32 %v800, %v944
  %v1086 = vpack.c.bf16 %v1050, %v1038
  %v1087 = vpack.c.bf16 %v1051, %v1039
  %v1088 = vpack.c.bf16 %v1052, %v1040
  %v1089 = vpack.c.bf16 %v1053, %v1041
  %v1090 = vpack.c.bf16 %v1054, %v1042
  %v1091 = vpack.c.bf16 %v1055, %v1043
  %v1092 = vpack.c.bf16 %v1056, %v1044
  %v1093 = vpack.c.bf16 %v1057, %v1045
  %v1094 = vpack.c.bf16 %v1058, %v1046
  %v1095 = vpack.c.bf16 %v1059, %v1047
  %v1096 = vpack.c.bf16 %v1060, %v1048
  %v1097 = vpack.c.bf16 %v1061, %v1049
  %v1098 = vpack.c.bf16 %v1074, %v1062
  %v1099 = vpack.c.bf16 %v1075, %v1063
  %v1100 = vpack.c.bf16 %v1076, %v1064
  %v1101 = vpack.c.bf16 %v1077, %v1065
  %v1102 = vpack.c.bf16 %v1078, %v1066
  %v1103 = vpack.c.bf16 %v1079, %v1067
  %v1104 = vpack.c.bf16 %v1080, %v1068
  %v1105 = vpack.c.bf16 %v1081, %v1069
  %v1106 = vpack.c.bf16 %v1082, %v1070
  %v1107 = vpack.c.bf16 %v1083, %v1071
  %v1108 = vpack.c.bf16 %v1084, %v1072
  %v1109 = vpack.c.bf16 %v1085, %v1073
  %vm1110 = vcmask 1006592
  %v1113 = vsel %vm1110, %v1097, 0
  %v1116 = vsel %vm1110, %v1109, 0
  %v1150 = vunpack.c.l.b16 %v33
  %v1151 = vunpack.c.l.b16 %v34
  %v1152 = vunpack.c.l.b16 %v35
  %v1153 = vunpack.c.l.b16 %v36
  %v1154 = vunpack.c.l.b16 %v37
  %v1155 = vunpack.c.l.b16 %v38
  %v1156 = vunpack.c.l.b16 %v39
  %v1157 = vunpack.c.l.b16 %v40
  %v1158 = vunpack.c.l.b16 %v41
  %v1159 = vunpack.c.l.b16 %v42
  %v1160 = vunpack.c.l.b16 %v43
  %v1161 = vunpack.c.l.b16 %v44
  %v1162 = vunpack.c.l.b16 %v45
  %v1163 = vunpack.c.l.b16 %v46
  %v1164 = vunpack.c.l.b16 %v47
  %v1165 = vunpack.c.l.b16 %v48
  %v1166 = vunpack.c.l.b16 %v49
  %v1167 = vunpack.c.l.b16 %v50
  %v1168 = vunpack.c.l.b16 %v51
  %v1169 = vunpack.c.l.b16 %v52
  %v1170 = vunpack.c.l.b16 %v53
  %v1171 = vunpack.c.l.b16 %v54
  %v1172 = vunpack.c.l.b16 %v55
  %v1173 = vunpack.c.l.b16 %v56
  %v1174 = vunpack.c.l.b16 %v57
  %v1175 = vunpack.c.l.b16 %v58
  %v1176 = vunpack.c.l.b16 %v59
  %v1177 = vunpack.c.l.b16 %v60
  %v1178 = vunpack.c.l.b16 %v61
  %v1179 = vunpack.c.l.b16 %v62
  %v1180 = vunpack.c.l.b16 %v63
  %v1181 = vunpack.c.l.b16 %v64
  %v1182 = vpack.c.b16 %v1151, %v1150
  %v1183 = vpack.c.b16 %v1153, %v1152
  %v1184 = vpack.c.b16 %v1155, %v1154
  %v1185 = vpack.c.b16 %v1157, %v1156
  %v1186 = vpack.c.b16 %v1159, %v1158
  %v1187 = vpack.c.b16 %v1161, %v1160
  %v1188 = vpack.c.b16 %v1163, %v1162
  %v1189 = vpack.c.b16 %v1165, %v1164
  %v1190 = vpack.c.b16 %v1167, %v1166
  %v1191 = vpack.c.b16 %v1169, %v1168
  %v1192 = vpack.c.b16 %v1171, %v1170
  %v1193 = vpack.c.b16 %v1173, %v1172
  %v1194 = vpack.c.b16 %v1175, %v1174
  %v1195 = vpack.c.b16 %v1177, %v1176
  %v1196 = vpack.c.b16 %v1179, %v1178
  %v1197 = vpack.c.b16 %v1181, %v1180
  %1214 = vmatprep.subr.bf16.mxu0 0
  %1215 = vmatpush1.bf16.msra.mxu0 %v1189
  %1216 = vmatprep.subr.bf16.mxu0 0
  %1217 = vmatpush1.bf16.msra.mxu0 %v1188
  %1218 = vmatprep.subr.bf16.mxu0 0
  %1219 = vmatpush1.bf16.msra.mxu0 %v1187
  %1220 = vmatprep.subr.bf16.mxu0 0
  %1221 = vmatpush1.bf16.msra.mxu0 %v1186
  %1222 = vmatprep.subr.bf16.mxu0 0
  %1223 = vmatpush1.bf16.msra.mxu0 %v1185
  %1224 = vmatprep.subr.bf16.mxu0 0
  %1225 = vmatpush1.bf16.msra.mxu0 %v1184
  %1226 = vmatprep.subr.bf16.mxu0 0
  %1227 = vmatpush1.bf16.msra.mxu0 %v1183
  %1228 = vmatprep.subr.bf16.mxu0 0
  %1229 = vmatpush1.bf16.msra.mxu0 %v1182
  %1230 = vmatprep.subr.bf16.mxu0 0
  %1231 = vmatpush2.bf16.msra.mxu0 %v1197
  %1232 = vmatprep.subr.bf16.mxu0 0
  %1233 = vmatpush2.bf16.msra.mxu0 %v1196
  %1234 = vmatprep.subr.bf16.mxu0 0
  %1235 = vmatpush2.bf16.msra.mxu0 %v1195
  %1236 = vmatprep.subr.bf16.mxu0 0
  %1237 = vmatpush2.bf16.msra.mxu0 %v1194
  %1238 = vmatprep.subr.bf16.mxu0 0
  %1239 = vmatpush2.bf16.msra.mxu0 %v1193
  %1240 = vmatprep.subr.bf16.mxu0 0
  %1241 = vmatpush2.bf16.msra.mxu0 %v1192
  %1242 = vmatprep.subr.bf16.mxu0 0
  %1243 = vmatpush2.bf16.msra.mxu0 %v1191
  %1244 = vmatprep.subr.bf16.mxu0 0
  %1245 = vmatpush2.bf16.msra.mxu0 %v1190
  %1246 = vmatprep.mubr.bf16.mxu0 %v1087
  %1247 = vmatmul.mubr.bf16.gmra.mxu0 %v1086
  %v1248 = vpop.f32.mrf.mxu0
  %v1249 = vadd.f32 0.0, %v1248
  %v1250 = vpop.f32.mrf.mxu0
  %v1251 = vpop.f32.mrf.mxu0
  %v1252 = vadd.f32 0.0, %v1251
  %v1253 = vpop.f32.mrf.mxu0
  %1254 = vmatprep.mubr.bf16.mxu0 %v1099
  %1255 = vmatmul.mubr.bf16.gmra.mxu0 %v1098
  %v1256 = vpop.f32.mrf.mxu0
  %v1257 = vadd.f32 0.0, %v1256
  %v1258 = vpop.f32.mrf.mxu0
  %v1259 = vpop.f32.mrf.mxu0
  %v1260 = vadd.f32 0.0, %v1259
  %v1261 = vpop.f32.mrf.mxu0
  %1262 = vmatprep.mubr.bf16.mxu0 %v1089
  %1263 = vmatmul.mubr.bf16.gmra.mxu0 %v1088
  %v1264 = vpop.f32.mrf.mxu0
  %v1265 = vadd.f32 0.0, %v1264
  %v1266 = vpop.f32.mrf.mxu0
  %v1267 = vpop.f32.mrf.mxu0
  %v1268 = vadd.f32 0.0, %v1267
  %v1269 = vpop.f32.mrf.mxu0
  %1270 = vmatprep.mubr.bf16.mxu0 %v1101
  %1271 = vmatmul.mubr.bf16.gmra.mxu0 %v1100
  %v1272 = vpop.f32.mrf.mxu0
  %v1273 = vadd.f32 0.0, %v1272
  %v1274 = vpop.f32.mrf.mxu0
  %v1275 = vpop.f32.mrf.mxu0
  %v1276 = vadd.f32 0.0, %v1275
  %v1277 = vpop.f32.mrf.mxu0
  %1278 = vmatprep.mubr.bf16.mxu0 %v1091
  %1279 = vmatmul.mubr.bf16.gmra.mxu0 %v1090
  %v1280 = vpop.f32.mrf.mxu0
  %v1281 = vadd.f32 0.0, %v1280
  %v1282 = vpop.f32.mrf.mxu0
  %v1283 = vpop.f32.mrf.mxu0
  %v1284 = vadd.f32 0.0, %v1283
  %v1285 = vpop.f32.mrf.mxu0
  %1286 = vmatprep.mubr.bf16.mxu0 %v1103
  %1287 = vmatmul.mubr.bf16.gmra.mxu0 %v1102
  %v1288 = vpop.f32.mrf.mxu0
  %v1289 = vadd.f32 0.0, %v1288
  %v1290 = vpop.f32.mrf.mxu0
  %v1291 = vpop.f32.mrf.mxu0
  %v1292 = vadd.f32 0.0, %v1291
  %v1293 = vpop.f32.mrf.mxu0
  %1294 = vmatprep.mubr.bf16.mxu0 %v1093
  %1295 = vmatmul.mubr.bf16.gmra.mxu0 %v1092
  %v1296 = vpop.f32.mrf.mxu0
  %v1297 = vadd.f32 0.0, %v1296
  %v1298 = vpop.f32.mrf.mxu0
  %v1299 = vpop.f32.mrf.mxu0
  %v1300 = vadd.f32 0.0, %v1299
  %v1301 = vpop.f32.mrf.mxu0
  %1302 = vmatprep.mubr.bf16.mxu0 %v1105
  %1303 = vmatmul.mubr.bf16.gmra.mxu0 %v1104
  %v1304 = vpop.f32.mrf.mxu0
  %v1305 = vadd.f32 0.0, %v1304
  %v1306 = vpop.f32.mrf.mxu0
  %v1307 = vpop.f32.mrf.mxu0
  %v1308 = vadd.f32 0.0, %v1307
  %v1309 = vpop.f32.mrf.mxu0
  %1310 = vmatprep.mubr.bf16.mxu0 %v1095
  %1311 = vmatmul.mubr.bf16.gmra.mxu0 %v1094
  %v1312 = vpop.f32.mrf.mxu0
  %v1313 = vadd.f32 0.0, %v1312
  %v1314 = vpop.f32.mrf.mxu0
  %v1315 = vpop.f32.mrf.mxu0
  %v1316 = vadd.f32 0.0, %v1315
  %v1317 = vpop.f32.mrf.mxu0
  %1318 = vmatprep.mubr.bf16.mxu0 %v1107
  %1319 = vmatmul.mubr.bf16.gmra.mxu0 %v1106
  %v1320 = vpop.f32.mrf.mxu0
  %v1321 = vadd.f32 0.0, %v1320
  %v1322 = vpop.f32.mrf.mxu0
  %v1323 = vpop.f32.mrf.mxu0
  %v1324 = vadd.f32 0.0, %v1323
  %v1325 = vpop.f32.mrf.mxu0
  %1326 = vmatprep.mubr.bf16.mxu0 %v1113
  %1327 = vmatmul.mubr.bf16.gmra.mxu0 %v1096
  %v1328 = vpop.f32.mrf.mxu0
  %v1329 = vadd.f32 0.0, %v1328
  %v1330 = vpop.f32.mrf.mxu0
  %v1331 = vpop.f32.mrf.mxu0
  %v1332 = vadd.f32 0.0, %v1331
  %v1333 = vpop.f32.mrf.mxu0
  %1334 = vmatprep.mubr.bf16.mxu0 %v1116
  %1335 = vmatmul.mubr.bf16.gmra.mxu0 %v1108
  %v1336 = vpop.f32.mrf.mxu0
  %v1337 = vadd.f32 0.0, %v1336
  %v1338 = vpop.f32.mrf.mxu0
  %v1339 = vpop.f32.mrf.mxu0
  %v1340 = vadd.f32 0.0, %v1339
  %v1341 = vpop.f32.mrf.mxu0
  %1342 = vdwg.mxu0
  %v1343 = vld [vmem:[%s5] sm:$0xff]
  %v1344 = vld [vmem:[%s5 + $0x8] sm:$0xff]
  %v1345 = vld [vmem:[%s5 + $0x10] sm:$0xff]
  %v1346 = vld [vmem:[%s5 + $0x18] sm:$0xff]
  %v1347 = vld [vmem:[%s5 + $0x20] sm:$0xff]
  %v1348 = vld [vmem:[%s5 + $0x28] sm:$0xff]
  %v1349 = vld [vmem:[%s5 + $0x30] sm:$0xff]
  %v1350 = vpack.c.bf16 %v1252, %v1249
  %v1351 = vpack.c.bf16 %v1268, %v1265
  %v1352 = vpack.c.bf16 %v1284, %v1281
  %v1353 = vpack.c.bf16 %v1300, %v1297
  %v1354 = vpack.c.bf16 %v1316, %v1313
  %v1355 = vpack.c.bf16 %v1332, %v1329
  %v1356 = vpack.c.bf16 %v1260, %v1257
  %v1357 = vpack.c.bf16 %v1276, %v1273
  %v1358 = vpack.c.bf16 %v1292, %v1289
  %v1359 = vpack.c.bf16 %v1308, %v1305
  %v1360 = vpack.c.bf16 %v1324, %v1321
  %v1361 = vpack.c.bf16 %v1340, %v1337
  %1374 = vrot.lane.b32.xlu0 %v1350, 127
  %v1375 = vpop.permute.xlu0 %1374
  %1376 = vrot.lane.b32.xlu0 %v1351, 127
  %v1377 = vpop.permute.xlu0 %1376
  %1378 = vrot.lane.b32.xlu0 %v1352, 127
  %v1379 = vpop.permute.xlu0 %1378
  %1380 = vrot.lane.b32.xlu0 %v1353, 127
  %v1381 = vpop.permute.xlu0 %1380
  %1382 = vrot.lane.b32.xlu0 %v1354, 127
  %v1383 = vpop.permute.xlu0 %1382
  %1384 = vrot.lane.b32.xlu0 %v1355, 127
  %v1385 = vpop.permute.xlu0 %1384
  %1386 = vrot.lane.b32.xlu0 %v1356, 127
  %v1387 = vpop.permute.xlu0 %1386
  %1388 = vrot.lane.b32.xlu0 %v1357, 127
  %v1389 = vpop.permute.xlu0 %1388
  %1390 = vrot.lane.b32.xlu0 %v1358, 127
  %v1391 = vpop.permute.xlu0 %1390
  %1392 = vrot.lane.b32.xlu0 %v1359, 127
  %v1393 = vpop.permute.xlu0 %1392
  %1394 = vrot.lane.b32.xlu0 %v1360, 127
  %v1395 = vpop.permute.xlu0 %1394
  %1396 = vrot.lane.b32.xlu0 %v1361, 127
  %v1397 = vpop.permute.xlu0 %1396
  %v1398 = vsel %vm141, %v1375, %v1377
  %v1399 = vsel %vm141, %v1377, %v1379
  %v1400 = vsel %vm141, %v1379, %v1381
  %v1401 = vsel %vm141, %v1381, %v1383
  %v1402 = vsel %vm141, %v1383, %v1385
  %v1403 = vsel %vm141, %v1387, %v1389
  %v1404 = vsel %vm141, %v1389, %v1391
  %v1405 = vsel %vm141, %v1391, %v1393
  %v1406 = vsel %vm141, %v1393, %v1395
  %v1407 = vsel %vm141, %v1395, %v1397
  %1420 = vrot.lane.b32.xlu0 %v1350, 126
  %v1421 = vpop.permute.xlu0 %1420
  %1422 = vrot.lane.b32.xlu0 %v1351, 126
  %v1423 = vpop.permute.xlu0 %1422
  %1424 = vrot.lane.b32.xlu0 %v1352, 126
  %v1425 = vpop.permute.xlu0 %1424
  %1426 = vrot.lane.b32.xlu0 %v1353, 126
  %v1427 = vpop.permute.xlu0 %1426
  %1428 = vrot.lane.b32.xlu0 %v1354, 126
  %v1429 = vpop.permute.xlu0 %1428
  %1430 = vrot.lane.b32.xlu0 %v1355, 126
  %v1431 = vpop.permute.xlu0 %1430
  %1432 = vrot.lane.b32.xlu0 %v1356, 126
  %v1433 = vpop.permute.xlu0 %1432
  %1434 = vrot.lane.b32.xlu0 %v1357, 126
  %v1435 = vpop.permute.xlu0 %1434
  %1436 = vrot.lane.b32.xlu0 %v1358, 126
  %v1437 = vpop.permute.xlu0 %1436
  %1438 = vrot.lane.b32.xlu0 %v1359, 126
  %v1439 = vpop.permute.xlu0 %1438
  %1440 = vrot.lane.b32.xlu0 %v1360, 126
  %v1441 = vpop.permute.xlu0 %1440
  %1442 = vrot.lane.b32.xlu0 %v1361, 126
  %v1443 = vpop.permute.xlu0 %1442
  %v1444 = vsel %vm177, %v1421, %v1423
  %v1445 = vsel %vm177, %v1423, %v1425
  %v1446 = vsel %vm177, %v1425, %v1427
  %v1447 = vsel %vm177, %v1427, %v1429
  %v1448 = vsel %vm177, %v1429, %v1431
  %v1449 = vsel %vm177, %v1433, %v1435
  %v1450 = vsel %vm177, %v1435, %v1437
  %v1451 = vsel %vm177, %v1437, %v1439
  %v1452 = vsel %vm177, %v1439, %v1441
  %v1453 = vsel %vm177, %v1441, %v1443
  %1466 = vrot.lane.b32.xlu0 %v1350, 125
  %v1467 = vpop.permute.xlu0 %1466
  %1468 = vrot.lane.b32.xlu0 %v1351, 125
  %v1469 = vpop.permute.xlu0 %1468
  %1470 = vrot.lane.b32.xlu0 %v1352, 125
  %v1471 = vpop.permute.xlu0 %1470
  %1472 = vrot.lane.b32.xlu0 %v1353, 125
  %v1473 = vpop.permute.xlu0 %1472
  %1474 = vrot.lane.b32.xlu0 %v1354, 125
  %v1475 = vpop.permute.xlu0 %1474
  %1476 = vrot.lane.b32.xlu0 %v1355, 125
  %v1477 = vpop.permute.xlu0 %1476
  %1478 = vrot.lane.b32.xlu0 %v1356, 125
  %v1479 = vpop.permute.xlu0 %1478
  %1480 = vrot.lane.b32.xlu0 %v1357, 125
  %v1481 = vpop.permute.xlu0 %1480
  %1482 = vrot.lane.b32.xlu0 %v1358, 125
  %v1483 = vpop.permute.xlu0 %1482
  %1484 = vrot.lane.b32.xlu0 %v1359, 125
  %v1485 = vpop.permute.xlu0 %1484
  %1486 = vrot.lane.b32.xlu0 %v1360, 125
  %v1487 = vpop.permute.xlu0 %1486
  %1488 = vrot.lane.b32.xlu0 %v1361, 125
  %v1489 = vpop.permute.xlu0 %1488
  %v1490 = vsel %vm213, %v1467, %v1469
  %v1491 = vsel %vm213, %v1469, %v1471
  %v1492 = vsel %vm213, %v1471, %v1473
  %v1493 = vsel %vm213, %v1473, %v1475
  %v1494 = vsel %vm213, %v1475, %v1477
  %v1495 = vsel %vm213, %v1479, %v1481
  %v1496 = vsel %vm213, %v1481, %v1483
  %v1497 = vsel %vm213, %v1483, %v1485
  %v1498 = vsel %vm213, %v1485, %v1487
  %v1499 = vsel %vm213, %v1487, %v1489
  %1512 = vrot.lane.b32.xlu0 %v1350, 124
  %v1513 = vpop.permute.xlu0 %1512
  %1514 = vrot.lane.b32.xlu0 %v1351, 124
  %v1515 = vpop.permute.xlu0 %1514
  %1516 = vrot.lane.b32.xlu0 %v1352, 124
  %v1517 = vpop.permute.xlu0 %1516
  %1518 = vrot.lane.b32.xlu0 %v1353, 124
  %v1519 = vpop.permute.xlu0 %1518
  %1520 = vrot.lane.b32.xlu0 %v1354, 124
  %v1521 = vpop.permute.xlu0 %1520
  %1522 = vrot.lane.b32.xlu0 %v1355, 124
  %v1523 = vpop.permute.xlu0 %1522
  %1524 = vrot.lane.b32.xlu0 %v1356, 124
  %v1525 = vpop.permute.xlu0 %1524
  %1526 = vrot.lane.b32.xlu0 %v1357, 124
  %v1527 = vpop.permute.xlu0 %1526
  %1528 = vrot.lane.b32.xlu0 %v1358, 124
  %v1529 = vpop.permute.xlu0 %1528
  %1530 = vrot.lane.b32.xlu0 %v1359, 124
  %v1531 = vpop.permute.xlu0 %1530
  %1532 = vrot.lane.b32.xlu0 %v1360, 124
  %v1533 = vpop.permute.xlu0 %1532
  %1534 = vrot.lane.b32.xlu0 %v1361, 124
  %v1535 = vpop.permute.xlu0 %1534
  %v1536 = vsel %vm249, %v1513, %v1515
  %v1537 = vsel %vm249, %v1515, %v1517
  %v1538 = vsel %vm249, %v1517, %v1519
  %v1539 = vsel %vm249, %v1519, %v1521
  %v1540 = vsel %vm249, %v1521, %v1523
  %v1541 = vsel %vm249, %v1525, %v1527
  %v1542 = vsel %vm249, %v1527, %v1529
  %v1543 = vsel %vm249, %v1529, %v1531
  %v1544 = vsel %vm249, %v1531, %v1533
  %v1545 = vsel %vm249, %v1533, %v1535
  %v1558 = vld [vmem:[%s2] sm:$0xff]
  %v1559 = vld [vmem:[%s2 + $0x8] sm:$0xff]
  %v1560 = vld [vmem:[%s2 + $0x10] sm:$0xff]
  %v1561 = vld [vmem:[%s2 + $0x18] sm:$0xff]
  %v1562 = vld [vmem:[%s2 + $0x20] sm:$0xff]
  %v1563 = vld [vmem:[%s2 + $0x28] sm:$0xff]
  %v1564 = vld [vmem:[%s2 + $0x30] sm:$0xff]
  %1566 = vset.pattern.permute.xlu0 1
  %1567 = vperm.xlu0 %1566, %v1343
  %v1568 = vpop.permute.xlu0 %1567
  %1571 = vset.pattern.permute.xlu0 1
  %1572 = vperm.xlu0 %1571, %v1344
  %v1573 = vpop.permute.xlu0 %1572
  %1576 = vset.pattern.permute.xlu0 1
  %1577 = vperm.xlu0 %1576, %v1345
  %v1578 = vpop.permute.xlu0 %1577
  %1581 = vset.pattern.permute.xlu0 1
  %1582 = vperm.xlu0 %1581, %v1346
  %v1583 = vpop.permute.xlu0 %1582
  %1586 = vset.pattern.permute.xlu0 1
  %1587 = vperm.xlu0 %1586, %v1347
  %v1588 = vpop.permute.xlu0 %1587
  %1591 = vset.pattern.permute.xlu0 1
  %1592 = vperm.xlu0 %1591, %v1348
  %v1593 = vpop.permute.xlu0 %1592
  %1596 = vset.pattern.permute.xlu0 1
  %1597 = vperm.xlu0 %1596, %v1349
  %v1598 = vpop.permute.xlu0 %1597
  %v1607 = vunpack.c.l.b16 %v1558
  %v1608 = vunpack.c.h.b16 %v1558
  %v1609 = vunpack.c.l.b16 %v1559
  %v1610 = vunpack.c.h.b16 %v1559
  %v1611 = vunpack.c.l.b16 %v1560
  %v1612 = vunpack.c.h.b16 %v1560
  %v1613 = vunpack.c.l.b16 %v1561
  %v1614 = vunpack.c.h.b16 %v1561
  %v1615 = vunpack.c.l.b16 %v1562
  %v1616 = vunpack.c.h.b16 %v1562
  %v1617 = vunpack.c.l.b16 %v1563
  %v1618 = vunpack.c.h.b16 %v1563
  %v1619 = vunpack.c.l.b16 %v1564
  %v1620 = vunpack.c.h.b16 %v1564
  %v1621 = vpack.c.b16 %v1609, %v1607
  %v1622 = vpack.c.b16 %v1610, %v1608
  %v1623 = vpack.c.b16 %v1613, %v1611
  %v1624 = vpack.c.b16 %v1614, %v1612
  %v1625 = vpack.c.b16 %v1617, %v1615
  %v1626 = vpack.c.b16 %v1618, %v1616
  %v1627 = vpack.c.b16 %v1619, %v1619
  %v1628 = vpack.c.b16 %v1620, %v1620
  %vm1633 = vcmask 261120
  %v1635 = vsel %vm1633, %v1622, 0
  %v1638 = vsel %vm1633, %v1624, 0
  %v1641 = vsel %vm1633, %v1626, 0
  %v1644 = vsel %vm1633, %v1628, 0
  %1646 = vmatprep.subr.bf16.mxu0 %v1496
  %1647 = vmatpush1.bf16.msra.mxu0 %v1495
  %1648 = vmatprep.subr.bf16.mxu0 %v1491
  %1649 = vmatpush1.bf16.msra.mxu0 %v1490
  %1650 = vmatprep.subr.bf16.mxu0 %v1450
  %1651 = vmatpush1.bf16.msra.mxu0 %v1449
  %1652 = vmatprep.subr.bf16.mxu0 %v1445
  %1653 = vmatpush1.bf16.msra.mxu0 %v1444
  %1654 = vmatprep.subr.bf16.mxu0 %v1404
  %1655 = vmatpush1.bf16.msra.mxu0 %v1403
  %1656 = vmatprep.subr.bf16.mxu0 %v1399
  %1657 = vmatpush1.bf16.msra.mxu0 %v1398
  %1658 = vmatprep.subr.bf16.mxu0 %v1357
  %1659 = vmatpush1.bf16.msra.mxu0 %v1356
  %1660 = vmatprep.subr.bf16.mxu0 %v1351
  %1661 = vmatpush1.bf16.msra.mxu0 %v1350
  %1662 = vmatprep.subr.bf16.mxu0 0
  %1663 = vmatpush2.bf16.msra.mxu0 0
  %1664 = vmatprep.subr.bf16.mxu0 0
  %1665 = vmatpush2.bf16.msra.mxu0 0
  %1666 = vmatprep.subr.bf16.mxu0 0
  %1667 = vmatpush2.bf16.msra.mxu0 0
  %1668 = vmatprep.subr.bf16.mxu0 0
  %1669 = vmatpush2.bf16.msra.mxu0 0
  %1670 = vmatprep.subr.bf16.mxu0 0
  %1671 = vmatpush2.bf16.msra.mxu0 0
  %1672 = vmatprep.subr.bf16.mxu0 0
  %1673 = vmatpush2.bf16.msra.mxu0 0
  %1674 = vmatprep.subr.bf16.mxu0 %v1542
  %1675 = vmatpush2.bf16.msra.mxu0 %v1541
  %1676 = vmatprep.subr.bf16.mxu0 %v1537
  %1677 = vmatpush2.bf16.msra.mxu0 %v1536
  %1678 = vmatprep.mubr.bf16.mxu0 %v1635
  %1679 = vmatmul.mubr.bf16.gmra.mxu0 %v1621
  %v1680 = vpop.f32.mrf.mxu0
  %v1681 = vadd.f32 %v1568, %v1680
  %v1682 = vpop.f32.mrf.mxu0
  %v1683 = vadd.f32 %v1568, %v1682
  %v1684 = vpop.f32.mrf.mxu0
  %v1685 = vadd.f32 %v1573, %v1684
  %v1686 = vpop.f32.mrf.mxu0
  %v1687 = vadd.f32 %v1573, %v1686
  %1688 = vmatprep.mubr.bf16.mxu0 %v1638
  %1689 = vmatmul.mubr.bf16.gmra.mxu0 %v1623
  %v1690 = vpop.f32.mrf.mxu0
  %v1691 = vadd.f32 %v1578, %v1690
  %v1692 = vpop.f32.mrf.mxu0
  %v1693 = vadd.f32 %v1578, %v1692
  %v1694 = vpop.f32.mrf.mxu0
  %v1695 = vadd.f32 %v1583, %v1694
  %v1696 = vpop.f32.mrf.mxu0
  %v1697 = vadd.f32 %v1583, %v1696
  %1698 = vmatprep.mubr.bf16.mxu0 %v1641
  %1699 = vmatmul.mubr.bf16.gmra.mxu0 %v1625
  %v1700 = vpop.f32.mrf.mxu0
  %v1701 = vadd.f32 %v1588, %v1700
  %v1702 = vpop.f32.mrf.mxu0
  %v1703 = vadd.f32 %v1588, %v1702
  %v1704 = vpop.f32.mrf.mxu0
  %v1705 = vadd.f32 %v1593, %v1704
  %v1706 = vpop.f32.mrf.mxu0
  %v1707 = vadd.f32 %v1593, %v1706
  %1708 = vmatprep.mubr.bf16.mxu0 %v1644
  %1709 = vmatmul.mubr.bf16.gmra.mxu0 %v1627
  %v1710 = vpop.f32.mrf.mxu0
  %v1711 = vadd.f32 %v1598, %v1710
  %v1712 = vpop.f32.mrf.mxu0
  %v1713 = vadd.f32 %v1598, %v1712
  %v1714 = vpop.f32.mrf.mxu0
  %v1715 = vpop.f32.mrf.mxu0
  %1716 = vdwg.mxu0
  %1717 = vmatprep.subr.bf16.mxu0 %v1498
  %1718 = vmatpush1.bf16.msra.mxu0 %v1497
  %1719 = vmatprep.subr.bf16.mxu0 %v1493
  %1720 = vmatpush1.bf16.msra.mxu0 %v1492
  %1721 = vmatprep.subr.bf16.mxu0 %v1452
  %1722 = vmatpush1.bf16.msra.mxu0 %v1451
  %1723 = vmatprep.subr.bf16.mxu0 %v1447
  %1724 = vmatpush1.bf16.msra.mxu0 %v1446
  %1725 = vmatprep.subr.bf16.mxu0 %v1406
  %1726 = vmatpush1.bf16.msra.mxu0 %v1405
  %1727 = vmatprep.subr.bf16.mxu0 %v1401
  %1728 = vmatpush1.bf16.msra.mxu0 %v1400
  %1729 = vmatprep.subr.bf16.mxu0 %v1359
  %1730 = vmatpush1.bf16.msra.mxu0 %v1358
  %1731 = vmatprep.subr.bf16.mxu0 %v1353
  %1732 = vmatpush1.bf16.msra.mxu0 %v1352
  %1733 = vmatprep.subr.bf16.mxu0 0
  %1734 = vmatpush2.bf16.msra.mxu0 0
  %1735 = vmatprep.subr.bf16.mxu0 0
  %1736 = vmatpush2.bf16.msra.mxu0 0
  %1737 = vmatprep.subr.bf16.mxu0 0
  %1738 = vmatpush2.bf16.msra.mxu0 0
  %1739 = vmatprep.subr.bf16.mxu0 0
  %1740 = vmatpush2.bf16.msra.mxu0 0
  %1741 = vmatprep.subr.bf16.mxu0 0
  %1742 = vmatpush2.bf16.msra.mxu0 0
  %1743 = vmatprep.subr.bf16.mxu0 0
  %1744 = vmatpush2.bf16.msra.mxu0 0
  %1745 = vmatprep.subr.bf16.mxu0 %v1544
  %1746 = vmatpush2.bf16.msra.mxu0 %v1543
  %1747 = vmatprep.subr.bf16.mxu0 %v1539
  %1748 = vmatpush2.bf16.msra.mxu0 %v1538
  %1749 = vmatprep.mubr.bf16.mxu0 %v1635
  %1750 = vmatmul.mubr.bf16.gmra.mxu0 %v1621
  %v1751 = vpop.f32.mrf.mxu0
  %v1752 = vadd.f32 %v1568, %v1751
  %v1753 = vpop.f32.mrf.mxu0
  %v1754 = vadd.f32 %v1568, %v1753
  %v1755 = vpop.f32.mrf.mxu0
  %v1756 = vadd.f32 %v1573, %v1755
  %v1757 = vpop.f32.mrf.mxu0
  %v1758 = vadd.f32 %v1573, %v1757
  %1759 = vmatprep.mubr.bf16.mxu0 %v1638
  %1760 = vmatmul.mubr.bf16.gmra.mxu0 %v1623
  %v1761 = vpop.f32.mrf.mxu0
  %v1762 = vadd.f32 %v1578, %v1761
  %v1763 = vpop.f32.mrf.mxu0
  %v1764 = vadd.f32 %v1578, %v1763
  %v1765 = vpop.f32.mrf.mxu0
  %v1766 = vadd.f32 %v1583, %v1765
  %v1767 = vpop.f32.mrf.mxu0
  %v1768 = vadd.f32 %v1583, %v1767
  %1769 = vmatprep.mubr.bf16.mxu0 %v1641
  %1770 = vmatmul.mubr.bf16.gmra.mxu0 %v1625
  %v1771 = vpop.f32.mrf.mxu0
  %v1772 = vadd.f32 %v1588, %v1771
  %v1773 = vpop.f32.mrf.mxu0
  %v1774 = vadd.f32 %v1588, %v1773
  %v1775 = vpop.f32.mrf.mxu0
  %v1776 = vadd.f32 %v1593, %v1775
  %v1777 = vpop.f32.mrf.mxu0
  %v1778 = vadd.f32 %v1593, %v1777
  %1779 = vmatprep.mubr.bf16.mxu0 %v1644
  %1780 = vmatmul.mubr.bf16.gmra.mxu0 %v1627
  %v1781 = vpop.f32.mrf.mxu0
  %v1782 = vadd.f32 %v1598, %v1781
  %v1783 = vpop.f32.mrf.mxu0
  %v1784 = vadd.f32 %v1598, %v1783
  %v1785 = vpop.f32.mrf.mxu0
  %v1786 = vpop.f32.mrf.mxu0
  %1787 = vdwg.mxu0
  %1788 = vmatprep.subr.bf16.mxu0 %v1489
  %1789 = vmatpush1.bf16.msra.mxu0 %v1499
  %1790 = vmatprep.subr.bf16.mxu0 %v1477
  %1791 = vmatpush1.bf16.msra.mxu0 %v1494
  %1792 = vmatprep.subr.bf16.mxu0 %v1443
  %1793 = vmatpush1.bf16.msra.mxu0 %v1453
  %1794 = vmatprep.subr.bf16.mxu0 %v1431
  %1795 = vmatpush1.bf16.msra.mxu0 %v1448
  %1796 = vmatprep.subr.bf16.mxu0 %v1397
  %1797 = vmatpush1.bf16.msra.mxu0 %v1407
  %1798 = vmatprep.subr.bf16.mxu0 %v1385
  %1799 = vmatpush1.bf16.msra.mxu0 %v1402
  %1800 = vmatprep.subr.bf16.mxu0 %v1361
  %1801 = vmatpush1.bf16.msra.mxu0 %v1360
  %1802 = vmatprep.subr.bf16.mxu0 %v1355
  %1803 = vmatpush1.bf16.msra.mxu0 %v1354
  %1804 = vmatprep.subr.bf16.mxu0 0
  %1805 = vmatpush2.bf16.msra.mxu0 0
  %1806 = vmatprep.subr.bf16.mxu0 0
  %1807 = vmatpush2.bf16.msra.mxu0 0
  %1808 = vmatprep.subr.bf16.mxu0 0
  %1809 = vmatpush2.bf16.msra.mxu0 0
  %1810 = vmatprep.subr.bf16.mxu0 0
  %1811 = vmatpush2.bf16.msra.mxu0 0
  %1812 = vmatprep.subr.bf16.mxu0 0
  %1813 = vmatpush2.bf16.msra.mxu0 0
  %1814 = vmatprep.subr.bf16.mxu0 0
  %1815 = vmatpush2.bf16.msra.mxu0 0
  %1816 = vmatprep.subr.bf16.mxu0 %v1535
  %1817 = vmatpush2.bf16.msra.mxu0 %v1545
  %1818 = vmatprep.subr.bf16.mxu0 %v1523
  %1819 = vmatpush2.bf16.msra.mxu0 %v1540
  %1820 = vmatprep.mubr.bf16.mxu0 %v1635
  %1821 = vmatmul.mubr.bf16.gmra.mxu0 %v1621
  %v1822 = vpop.f32.mrf.mxu0
  %v1823 = vadd.f32 %v1568, %v1822
  %v1824 = vpop.f32.mrf.mxu0
  %v1825 = vadd.f32 %v1568, %v1824
  %v1826 = vpop.f32.mrf.mxu0
  %v1827 = vadd.f32 %v1573, %v1826
  %v1828 = vpop.f32.mrf.mxu0
  %v1829 = vadd.f32 %v1573, %v1828
  %1830 = vmatprep.mubr.bf16.mxu0 %v1638
  %1831 = vmatmul.mubr.bf16.gmra.mxu0 %v1623
  %v1832 = vpop.f32.mrf.mxu0
  %v1833 = vadd.f32 %v1578, %v1832
  %v1834 = vpop.f32.mrf.mxu0
  %v1835 = vadd.f32 %v1578, %v1834
  %v1836 = vpop.f32.mrf.mxu0
  %v1837 = vadd.f32 %v1583, %v1836
  %v1838 = vpop.f32.mrf.mxu0
  %v1839 = vadd.f32 %v1583, %v1838
  %1840 = vmatprep.mubr.bf16.mxu0 %v1641
  %1841 = vmatmul.mubr.bf16.gmra.mxu0 %v1625
  %v1842 = vpop.f32.mrf.mxu0
  %v1843 = vadd.f32 %v1588, %v1842
  %v1844 = vpop.f32.mrf.mxu0
  %v1845 = vadd.f32 %v1588, %v1844
  %v1846 = vpop.f32.mrf.mxu0
  %v1847 = vadd.f32 %v1593, %v1846
  %v1848 = vpop.f32.mrf.mxu0
  %v1849 = vadd.f32 %v1593, %v1848
  %1850 = vmatprep.mubr.bf16.mxu0 %v1644
  %1851 = vmatmul.mubr.bf16.gmra.mxu0 %v1627
  %v1852 = vpop.f32.mrf.mxu0
  %v1853 = vadd.f32 %v1598, %v1852
  %v1854 = vpop.f32.mrf.mxu0
  %v1855 = vadd.f32 %v1598, %v1854
  %v1856 = vpop.f32.mrf.mxu0
  %v1857 = vpop.f32.mrf.mxu0
  %1858 = vdwg.mxu0
  %v1859 = vmax.f32 %v1681, 0.0
  %v1860 = vmax.f32 %v1683, 0.0
  %v1861 = vmax.f32 %v1752, 0.0
  %v1862 = vmax.f32 %v1754, 0.0
  %v1863 = vmax.f32 %v1823, 0.0
  %v1864 = vmax.f32 %v1825, 0.0
  %v1865 = vmax.f32 %v1685, 0.0
  %v1866 = vmax.f32 %v1687, 0.0
  %v1867 = vmax.f32 %v1756, 0.0
  %v1868 = vmax.f32 %v1758, 0.0
  %v1869 = vmax.f32 %v1827, 0.0
  %v1870 = vmax.f32 %v1829, 0.0
  %v1871 = vmax.f32 %v1691, 0.0
  %v1872 = vmax.f32 %v1693, 0.0
  %v1873 = vmax.f32 %v1762, 0.0
  %v1874 = vmax.f32 %v1764, 0.0
  %v1875 = vmax.f32 %v1833, 0.0
  %v1876 = vmax.f32 %v1835, 0.0
  %v1877 = vmax.f32 %v1695, 0.0
  %v1878 = vmax.f32 %v1697, 0.0
  %v1879 = vmax.f32 %v1766, 0.0
  %v1880 = vmax.f32 %v1768, 0.0
  %v1881 = vmax.f32 %v1837, 0.0
  %v1882 = vmax.f32 %v1839, 0.0
  %v1883 = vmax.f32 %v1701, 0.0
  %v1884 = vmax.f32 %v1703, 0.0
  %v1885 = vmax.f32 %v1772, 0.0
  %v1886 = vmax.f32 %v1774, 0.0
  %v1887 = vmax.f32 %v1843, 0.0
  %v1888 = vmax.f32 %v1845, 0.0
  %v1889 = vmax.f32 %v1705, 0.0
  %v1890 = vmax.f32 %v1707, 0.0
  %v1891 = vmax.f32 %v1776, 0.0
  %v1892 = vmax.f32 %v1778, 0.0
  %v1893 = vmax.f32 %v1847, 0.0
  %v1894 = vmax.f32 %v1849, 0.0
  %v1895 = vmax.f32 %v1711, 0.0
  %v1896 = vmax.f32 %v1713, 0.0
  %v1897 = vmax.f32 %v1782, 0.0
  %v1898 = vmax.f32 %v1784, 0.0
  %v1899 = vmax.f32 %v1853, 0.0
  %v1900 = vmax.f32 %v1855, 0.0
  %1943 = vrot.lane.b32.xlu0 %v1859, 127
  %v1944 = vpop.permute.xlu0 %1943
  %1945 = vrot.lane.b32.xlu0 %v1860, 127
  %v1946 = vpop.permute.xlu0 %1945
  %1947 = vrot.lane.b32.xlu0 %v1861, 127
  %v1948 = vpop.permute.xlu0 %1947
  %1949 = vrot.lane.b32.xlu0 %v1862, 127
  %v1950 = vpop.permute.xlu0 %1949
  %1951 = vrot.lane.b32.xlu0 %v1863, 127
  %v1952 = vpop.permute.xlu0 %1951
  %1953 = vrot.lane.b32.xlu0 %v1864, 127
  %v1954 = vpop.permute.xlu0 %1953
  %1955 = vrot.lane.b32.xlu0 %v1865, 127
  %v1956 = vpop.permute.xlu0 %1955
  %1957 = vrot.lane.b32.xlu0 %v1866, 127
  %v1958 = vpop.permute.xlu0 %1957
  %1959 = vrot.lane.b32.xlu0 %v1867, 127
  %v1960 = vpop.permute.xlu0 %1959
  %1961 = vrot.lane.b32.xlu0 %v1868, 127
  %v1962 = vpop.permute.xlu0 %1961
  %1963 = vrot.lane.b32.xlu0 %v1869, 127
  %v1964 = vpop.permute.xlu0 %1963
  %1965 = vrot.lane.b32.xlu0 %v1870, 127
  %v1966 = vpop.permute.xlu0 %1965
  %1967 = vrot.lane.b32.xlu0 %v1871, 127
  %v1968 = vpop.permute.xlu0 %1967
  %1969 = vrot.lane.b32.xlu0 %v1872, 127
  %v1970 = vpop.permute.xlu0 %1969
  %1971 = vrot.lane.b32.xlu0 %v1873, 127
  %v1972 = vpop.permute.xlu0 %1971
  %1973 = vrot.lane.b32.xlu0 %v1874, 127
  %v1974 = vpop.permute.xlu0 %1973
  %1975 = vrot.lane.b32.xlu0 %v1875, 127
  %v1976 = vpop.permute.xlu0 %1975
  %1977 = vrot.lane.b32.xlu0 %v1876, 127
  %v1978 = vpop.permute.xlu0 %1977
  %1979 = vrot.lane.b32.xlu0 %v1877, 127
  %v1980 = vpop.permute.xlu0 %1979
  %1981 = vrot.lane.b32.xlu0 %v1878, 127
  %v1982 = vpop.permute.xlu0 %1981
  %1983 = vrot.lane.b32.xlu0 %v1879, 127
  %v1984 = vpop.permute.xlu0 %1983
  %1985 = vrot.lane.b32.xlu0 %v1880, 127
  %v1986 = vpop.permute.xlu0 %1985
  %1987 = vrot.lane.b32.xlu0 %v1881, 127
  %v1988 = vpop.permute.xlu0 %1987
  %1989 = vrot.lane.b32.xlu0 %v1882, 127
  %v1990 = vpop.permute.xlu0 %1989
  %1991 = vrot.lane.b32.xlu0 %v1883, 127
  %v1992 = vpop.permute.xlu0 %1991
  %1993 = vrot.lane.b32.xlu0 %v1884, 127
  %v1994 = vpop.permute.xlu0 %1993
  %1995 = vrot.lane.b32.xlu0 %v1885, 127
  %v1996 = vpop.permute.xlu0 %1995
  %1997 = vrot.lane.b32.xlu0 %v1886, 127
  %v1998 = vpop.permute.xlu0 %1997
  %1999 = vrot.lane.b32.xlu0 %v1887, 127
  %v2000 = vpop.permute.xlu0 %1999
  %2001 = vrot.lane.b32.xlu0 %v1888, 127
  %v2002 = vpop.permute.xlu0 %2001
  %2003 = vrot.lane.b32.xlu0 %v1889, 127
  %v2004 = vpop.permute.xlu0 %2003
  %2005 = vrot.lane.b32.xlu0 %v1890, 127
  %v2006 = vpop.permute.xlu0 %2005
  %2007 = vrot.lane.b32.xlu0 %v1891, 127
  %v2008 = vpop.permute.xlu0 %2007
  %2009 = vrot.lane.b32.xlu0 %v1892, 127
  %v2010 = vpop.permute.xlu0 %2009
  %2011 = vrot.lane.b32.xlu0 %v1893, 127
  %v2012 = vpop.permute.xlu0 %2011
  %2013 = vrot.lane.b32.xlu0 %v1894, 127
  %v2014 = vpop.permute.xlu0 %2013
  %2015 = vrot.lane.b32.xlu0 %v1895, 127
  %v2016 = vpop.permute.xlu0 %2015
  %2017 = vrot.lane.b32.xlu0 %v1896, 127
  %v2018 = vpop.permute.xlu0 %2017
  %2019 = vrot.lane.b32.xlu0 %v1897, 127
  %v2020 = vpop.permute.xlu0 %2019
  %2021 = vrot.lane.b32.xlu0 %v1898, 127
  %v2022 = vpop.permute.xlu0 %2021
  %2023 = vrot.lane.b32.xlu0 %v1899, 127
  %v2024 = vpop.permute.xlu0 %2023
  %2025 = vrot.lane.b32.xlu0 %v1900, 127
  %v2026 = vpop.permute.xlu0 %2025
  %v2027 = vsel %vm945, %v1944, %v1946
  %v2028 = vsel %vm945, %v1946, %v1948
  %v2029 = vsel %vm945, %v1948, %v1950
  %v2030 = vsel %vm945, %v1950, %v1952
  %v2031 = vsel %vm945, %v1952, %v1954
  %v2032 = vsel %vm945, %v1956, %v1958
  %v2033 = vsel %vm945, %v1958, %v1960
  %v2034 = vsel %vm945, %v1960, %v1962
  %v2035 = vsel %vm945, %v1962, %v1964
  %v2036 = vsel %vm945, %v1964, %v1966
  %v2037 = vsel %vm945, %v1968, %v1970
  %v2038 = vsel %vm945, %v1970, %v1972
  %v2039 = vsel %vm945, %v1972, %v1974
  %v2040 = vsel %vm945, %v1974, %v1976
  %v2041 = vsel %vm945, %v1976, %v1978
  %v2042 = vsel %vm945, %v1980, %v1982
  %v2043 = vsel %vm945, %v1982, %v1984
  %v2044 = vsel %vm945, %v1984, %v1986
  %v2045 = vsel %vm945, %v1986, %v1988
  %v2046 = vsel %vm945, %v1988, %v1990
  %v2047 = vsel %vm945, %v1992, %v1994
  %v2048 = vsel %vm945, %v1994, %v1996
  %v2049 = vsel %vm945, %v1996, %v1998
  %v2050 = vsel %vm945, %v1998, %v2000
  %v2051 = vsel %vm945, %v2000, %v2002
  %v2052 = vsel %vm945, %v2004, %v2006
  %v2053 = vsel %vm945, %v2006, %v2008
  %v2054 = vsel %vm945, %v2008, %v2010
  %v2055 = vsel %vm945, %v2010, %v2012
  %v2056 = vsel %vm945, %v2012, %v2014
  %v2057 = vsel %vm945, %v2016, %v2018
  %v2058 = vsel %vm945, %v2018, %v2020
  %v2059 = vsel %vm945, %v2020, %v2022
  %v2060 = vsel %vm945, %v2022, %v2024
  %v2061 = vsel %vm945, %v2024, %v2026
  %v2104 = vmax.f32 %v1859, %v2027
  %v2105 = vmax.f32 %v1860, %v2028
  %v2106 = vmax.f32 %v1861, %v2029
  %v2107 = vmax.f32 %v1862, %v2030
  %v2108 = vmax.f32 %v1863, %v2031
  %v2109 = vmax.f32 %v1864, %v1954
  %v2110 = vmax.f32 %v1865, %v2032
  %v2111 = vmax.f32 %v1866, %v2033
  %v2112 = vmax.f32 %v1867, %v2034
  %v2113 = vmax.f32 %v1868, %v2035
  %v2114 = vmax.f32 %v1869, %v2036
  %v2115 = vmax.f32 %v1870, %v1966
  %v2116 = vmax.f32 %v1871, %v2037
  %v2117 = vmax.f32 %v1872, %v2038
  %v2118 = vmax.f32 %v1873, %v2039
  %v2119 = vmax.f32 %v1874, %v2040
  %v2120 = vmax.f32 %v1875, %v2041
  %v2121 = vmax.f32 %v1876, %v1978
  %v2122 = vmax.f32 %v1877, %v2042
  %v2123 = vmax.f32 %v1878, %v2043
  %v2124 = vmax.f32 %v1879, %v2044
  %v2125 = vmax.f32 %v1880, %v2045
  %v2126 = vmax.f32 %v1881, %v2046
  %v2127 = vmax.f32 %v1882, %v1990
  %v2128 = vmax.f32 %v1883, %v2047
  %v2129 = vmax.f32 %v1884, %v2048
  %v2130 = vmax.f32 %v1885, %v2049
  %v2131 = vmax.f32 %v1886, %v2050
  %v2132 = vmax.f32 %v1887, %v2051
  %v2133 = vmax.f32 %v1888, %v2002
  %v2134 = vmax.f32 %v1889, %v2052
  %v2135 = vmax.f32 %v1890, %v2053
  %v2136 = vmax.f32 %v1891, %v2054
  %v2137 = vmax.f32 %v1892, %v2055
  %v2138 = vmax.f32 %v1893, %v2056
  %v2139 = vmax.f32 %v1894, %v2014
  %v2140 = vmax.f32 %v1895, %v2057
  %v2141 = vmax.f32 %v1896, %v2058
  %v2142 = vmax.f32 %v1897, %v2059
  %v2143 = vmax.f32 %v1898, %v2060
  %v2144 = vmax.f32 %v1899, %v2061
  %v2145 = vmax.f32 %v1900, %v2026
  %v2146 = vpack.c.bf16 %v2110, %v2104
  %v2147 = vpack.c.bf16 %v2111, %v2105
  %v2148 = vpack.c.bf16 %v2112, %v2106
  %v2149 = vpack.c.bf16 %v2113, %v2107
  %v2150 = vpack.c.bf16 %v2114, %v2108
  %v2151 = vpack.c.bf16 %v2115, %v2109
  %v2152 = vpack.c.bf16 %v2122, %v2116
  %v2153 = vpack.c.bf16 %v2123, %v2117
  %v2154 = vpack.c.bf16 %v2124, %v2118
  %v2155 = vpack.c.bf16 %v2125, %v2119
  %v2156 = vpack.c.bf16 %v2126, %v2120
  %v2157 = vpack.c.bf16 %v2127, %v2121
  %v2158 = vpack.c.bf16 %v2134, %v2128
  %v2159 = vpack.c.bf16 %v2135, %v2129
  %v2160 = vpack.c.bf16 %v2136, %v2130
  %v2161 = vpack.c.bf16 %v2137, %v2131
  %v2162 = vpack.c.bf16 %v2138, %v2132
  %v2163 = vpack.c.bf16 %v2139, %v2133
  %v2164 = vpack.c.bf16 %v2140, %v2140
  %v2165 = vpack.c.bf16 %v2141, %v2141
  %v2166 = vpack.c.bf16 %v2142, %v2142
  %v2167 = vpack.c.bf16 %v2143, %v2143
  %v2168 = vpack.c.bf16 %v2144, %v2144
  %v2169 = vpack.c.bf16 %v2145, %v2145
  %v2171 = vsel %vm1110, %v2151, 0
  %v2174 = vsel %vm1110, %v2157, 0
  %v2177 = vsel %vm1110, %v2163, 0
  %v2180 = vsel %vm1110, %v2169, 0
  %vm2190 = vcmask 1043456
  %v2191 = vrot.slane %v2148, 4
  %v2192 = vrot.slane %v2149, 4
  %v2193 = vrot.slane %v2154, 4
  %v2194 = vsel %vm2190, %v2191, %v2193
  %v2195 = vrot.slane %v2155, 4
  %v2196 = vsel %vm2190, %v2192, %v2195
  %v2197 = vrot.slane %v2160, 4
  %v2198 = vsel %vm2190, %v2193, %v2197
  %v2199 = vrot.slane %v2161, 4
  %v2200 = vsel %vm2190, %v2195, %v2199
  %v2201 = vrot.slane %v2166, 4
  %v2202 = vsel %vm2190, %v2197, %v2201
  %v2203 = vrot.slane %v2167, 4
  %v2204 = vsel %vm2190, %v2199, %v2203
  %v2213 = vsel %vm261, %v2164, %v2191
  %v2217 = vsel %vm261, %v2165, %v2192
  %2219 = vmatprep.subr.bf16.mxu0 0
  %2220 = vmatpush1.bf16.msra.mxu0 %v1189
  %2221 = vmatprep.subr.bf16.mxu0 0
  %2222 = vmatpush1.bf16.msra.mxu0 %v1188
  %2223 = vmatprep.subr.bf16.mxu0 0
  %2224 = vmatpush1.bf16.msra.mxu0 %v1187
  %2225 = vmatprep.subr.bf16.mxu0 0
  %2226 = vmatpush1.bf16.msra.mxu0 %v1186
  %2227 = vmatprep.subr.bf16.mxu0 0
  %2228 = vmatpush1.bf16.msra.mxu0 %v1185
  %2229 = vmatprep.subr.bf16.mxu0 0
  %2230 = vmatpush1.bf16.msra.mxu0 %v1184
  %2231 = vmatprep.subr.bf16.mxu0 0
  %2232 = vmatpush1.bf16.msra.mxu0 %v1183
  %2233 = vmatprep.subr.bf16.mxu0 0
  %2234 = vmatpush1.bf16.msra.mxu0 %v1182
  %2235 = vmatprep.subr.bf16.mxu0 0
  %2236 = vmatpush2.bf16.msra.mxu0 %v1197
  %2237 = vmatprep.subr.bf16.mxu0 0
  %2238 = vmatpush2.bf16.msra.mxu0 %v1196
  %2239 = vmatprep.subr.bf16.mxu0 0
  %2240 = vmatpush2.bf16.msra.mxu0 %v1195
  %2241 = vmatprep.subr.bf16.mxu0 0
  %2242 = vmatpush2.bf16.msra.mxu0 %v1194
  %2243 = vmatprep.subr.bf16.mxu0 0
  %2244 = vmatpush2.bf16.msra.mxu0 %v1193
  %2245 = vmatprep.subr.bf16.mxu0 0
  %2246 = vmatpush2.bf16.msra.mxu0 %v1192
  %2247 = vmatprep.subr.bf16.mxu0 0
  %2248 = vmatpush2.bf16.msra.mxu0 %v1191
  %2249 = vmatprep.subr.bf16.mxu0 0
  %2250 = vmatpush2.bf16.msra.mxu0 %v1190
  %2251 = vmatprep.mubr.bf16.mxu0 %v2147
  %2252 = vmatmul.mubr.bf16.gmra.mxu0 %v2146
  %v2253 = vpop.f32.mrf.mxu0
  %v2254 = vadd.f32 0.0, %v2253
  %v2255 = vpop.f32.mrf.mxu0
  %v2256 = vpop.f32.mrf.mxu0
  %v2257 = vadd.f32 0.0, %v2256
  %v2258 = vpop.f32.mrf.mxu0
  %2259 = vmatprep.mubr.bf16.mxu0 %v2153
  %2260 = vmatmul.mubr.bf16.gmra.mxu0 %v2152
  %v2261 = vpop.f32.mrf.mxu0
  %v2262 = vadd.f32 0.0, %v2261
  %v2263 = vpop.f32.mrf.mxu0
  %v2264 = vpop.f32.mrf.mxu0
  %v2265 = vadd.f32 0.0, %v2264
  %v2266 = vpop.f32.mrf.mxu0
  %2267 = vmatprep.mubr.bf16.mxu0 %v2159
  %2268 = vmatmul.mubr.bf16.gmra.mxu0 %v2158
  %v2269 = vpop.f32.mrf.mxu0
  %v2270 = vadd.f32 0.0, %v2269
  %v2271 = vpop.f32.mrf.mxu0
  %v2272 = vpop.f32.mrf.mxu0
  %v2273 = vadd.f32 0.0, %v2272
  %v2274 = vpop.f32.mrf.mxu0
  %2275 = vmatprep.mubr.bf16.mxu0 %v2217
  %2276 = vmatmul.mubr.bf16.gmra.mxu0 %v2213
  %v2277 = vpop.f32.mrf.mxu0
  %v2278 = vadd.f32 0.0, %v2277
  %v2279 = vpop.f32.mrf.mxu0
  %v2280 = vpop.f32.mrf.mxu0
  %v2281 = vadd.f32 0.0, %v2280
  %v2282 = vpop.f32.mrf.mxu0
  %2283 = vmatprep.mubr.bf16.mxu0 %v2196
  %2284 = vmatmul.mubr.bf16.gmra.mxu0 %v2194
  %v2285 = vpop.f32.mrf.mxu0
  %v2286 = vadd.f32 0.0, %v2285
  %v2287 = vpop.f32.mrf.mxu0
  %v2288 = vpop.f32.mrf.mxu0
  %v2289 = vadd.f32 0.0, %v2288
  %v2290 = vpop.f32.mrf.mxu0
  %2291 = vmatprep.mubr.bf16.mxu0 %v2200
  %2292 = vmatmul.mubr.bf16.gmra.mxu0 %v2198
  %v2293 = vpop.f32.mrf.mxu0
  %v2294 = vadd.f32 0.0, %v2293
  %v2295 = vpop.f32.mrf.mxu0
  %v2296 = vpop.f32.mrf.mxu0
  %v2297 = vadd.f32 0.0, %v2296
  %v2298 = vpop.f32.mrf.mxu0
  %2299 = vmatprep.mubr.bf16.mxu0 %v2204
  %2300 = vmatmul.mubr.bf16.gmra.mxu0 %v2202
  %v2301 = vpop.f32.mrf.mxu0
  %v2302 = vadd.f32 0.0, %v2301
  %v2303 = vpop.f32.mrf.mxu0
  %v2304 = vpop.f32.mrf.mxu0
  %v2305 = vadd.f32 0.0, %v2304
  %v2306 = vpop.f32.mrf.mxu0
  %2307 = vmatprep.mubr.bf16.mxu0 %v2171
  %2308 = vmatmul.mubr.bf16.gmra.mxu0 %v2150
  %v2309 = vpop.f32.mrf.mxu0
  %v2310 = vadd.f32 0.0, %v2309
  %v2311 = vpop.f32.mrf.mxu0
  %v2312 = vpop.f32.mrf.mxu0
  %v2313 = vadd.f32 0.0, %v2312
  %v2314 = vpop.f32.mrf.mxu0
  %2315 = vmatprep.mubr.bf16.mxu0 %v2174
  %2316 = vmatmul.mubr.bf16.gmra.mxu0 %v2156
  %v2317 = vpop.f32.mrf.mxu0
  %v2318 = vadd.f32 0.0, %v2317
  %v2319 = vpop.f32.mrf.mxu0
  %v2320 = vpop.f32.mrf.mxu0
  %v2321 = vadd.f32 0.0, %v2320
  %v2322 = vpop.f32.mrf.mxu0
  %2323 = vmatprep.mubr.bf16.mxu0 %v2177
  %2324 = vmatmul.mubr.bf16.gmra.mxu0 %v2162
  %v2325 = vpop.f32.mrf.mxu0
  %v2326 = vadd.f32 0.0, %v2325
  %v2327 = vpop.f32.mrf.mxu0
  %v2328 = vpop.f32.mrf.mxu0
  %v2329 = vadd.f32 0.0, %v2328
  %v2330 = vpop.f32.mrf.mxu0
  %2331 = vmatprep.mubr.bf16.mxu0 %v2180
  %2332 = vmatmul.mubr.bf16.gmra.mxu0 %v2168
  %v2333 = vpop.f32.mrf.mxu0
  %v2334 = vadd.f32 0.0, %v2333
  %v2335 = vpop.f32.mrf.mxu0
  %v2336 = vpop.f32.mrf.mxu0
  %v2337 = vpop.f32.mrf.mxu0
  %2338 = vdwg.mxu0
  %v2339 = vld [vmem:[%s5] sm:$0xff]
  %v2340 = vld [vmem:[%s5 + $0x8] sm:$0xff]
  %v2341 = vld [vmem:[%s5 + $0x10] sm:$0xff]
  %v2342 = vld [vmem:[%s5 + $0x18] sm:$0xff]
  %v2343 = vld [vmem:[%s5 + $0x20] sm:$0xff]
  %v2344 = vld [vmem:[%s5 + $0x28] sm:$0xff]
  %v2345 = vld [vmem:[%s5 + $0x30] sm:$0xff]
  %v2346 = vld [vmem:[%s5 + $0x38] sm:$0xff]
  %v2347 = vld [vmem:[%s5 + $0x40] sm:$0xff]
  %v2348 = vld [vmem:[%s5 + $0x48] sm:$0xff]
  %v2349 = vld [vmem:[%s5 + $0x50] sm:$0xff]
  %v2350 = vld [vmem:[%s5 + $0x58] sm:$0xff]
  %v2351 = vld [vmem:[%s5 + $0x60] sm:$0xff]
  %v2352 = vpack.c.bf16 %v2257, %v2254
  %v2353 = vpack.c.bf16 %v2286, %v2281
  %v2354 = vpack.c.bf16 %v2313, %v2310
  %v2355 = vpack.c.bf16 %v2265, %v2262
  %v2356 = vpack.c.bf16 %v2294, %v2289
  %v2357 = vpack.c.bf16 %v2321, %v2318
  %v2358 = vpack.c.bf16 %v2273, %v2270
  %v2359 = vpack.c.bf16 %v2302, %v2297
  %v2360 = vpack.c.bf16 %v2329, %v2326
  %v2361 = vpack.c.bf16 %v2278, %v2278
  %v2362 = vpack.c.bf16 %v2305, %v2305
  %v2363 = vpack.c.bf16 %v2334, %v2334
  %v2376 = vrot.slane %v2352, 4
  %v2377 = vrot.slane %v2353, 4
  %v2378 = vrot.slane %v2354, 4
  %v2379 = vrot.slane %v2355, 4
  %v2380 = vsel %vm2190, %v2376, %v2379
  %v2381 = vrot.slane %v2356, 4
  %v2382 = vsel %vm2190, %v2377, %v2381
  %v2383 = vrot.slane %v2357, 4
  %v2384 = vsel %vm2190, %v2378, %v2383
  %v2385 = vrot.slane %v2358, 4
  %v2386 = vsel %vm2190, %v2379, %v2385
  %v2387 = vrot.slane %v2359, 4
  %v2388 = vsel %vm2190, %v2381, %v2387
  %v2389 = vrot.slane %v2360, 4
  %v2390 = vsel %vm2190, %v2383, %v2389
  %v2391 = vrot.slane %v2361, 4
  %v2392 = vsel %vm2190, %v2385, %v2391
  %v2393 = vrot.slane %v2362, 4
  %v2394 = vsel %vm2190, %v2387, %v2393
  %v2395 = vrot.slane %v2363, 4
  %v2396 = vsel %vm2190, %v2389, %v2395
  %2397 = vrot.lane.b32.xlu0 %v2376, 127
  %v2398 = vpop.permute.xlu0 %2397
  %2399 = vrot.lane.b32.xlu0 %v2377, 127
  %v2400 = vpop.permute.xlu0 %2399
  %2401 = vrot.lane.b32.xlu0 %v2378, 127
  %v2402 = vpop.permute.xlu0 %2401
  %2403 = vrot.lane.b32.xlu0 %v2380, 127
  %v2404 = vpop.permute.xlu0 %2403
  %2405 = vrot.lane.b32.xlu0 %v2382, 127
  %v2406 = vpop.permute.xlu0 %2405
  %2407 = vrot.lane.b32.xlu0 %v2384, 127
  %v2408 = vpop.permute.xlu0 %2407
  %2409 = vrot.lane.b32.xlu0 %v2386, 127
  %v2410 = vpop.permute.xlu0 %2409
  %2411 = vrot.lane.b32.xlu0 %v2388, 127
  %v2412 = vpop.permute.xlu0 %2411
  %2413 = vrot.lane.b32.xlu0 %v2390, 127
  %v2414 = vpop.permute.xlu0 %2413
  %2415 = vrot.lane.b32.xlu0 %v2392, 127
  %v2416 = vpop.permute.xlu0 %2415
  %2417 = vrot.lane.b32.xlu0 %v2394, 127
  %v2418 = vpop.permute.xlu0 %2417
  %2419 = vrot.lane.b32.xlu0 %v2396, 127
  %v2420 = vpop.permute.xlu0 %2419
  %v2421 = vsel %vm141, %v2398, %v2400
  %v2422 = vsel %vm141, %v2400, %v2402
  %v2423 = vsel %vm141, %v2404, %v2406
  %v2424 = vsel %vm141, %v2406, %v2408
  %v2425 = vsel %vm141, %v2410, %v2412
  %v2426 = vsel %vm141, %v2412, %v2414
  %v2427 = vsel %vm141, %v2416, %v2418
  %v2428 = vsel %vm141, %v2418, %v2420
  %2438 = vrot.lane.b32.xlu0 %v2352, 126
  %v2439 = vpop.permute.xlu0 %2438
  %2440 = vrot.lane.b32.xlu0 %v2353, 126
  %v2441 = vpop.permute.xlu0 %2440
  %2442 = vrot.lane.b32.xlu0 %v2354, 126
  %v2443 = vpop.permute.xlu0 %2442
  %2444 = vrot.lane.b32.xlu0 %v2355, 126
  %v2445 = vpop.permute.xlu0 %2444
  %2446 = vrot.lane.b32.xlu0 %v2356, 126
  %v2447 = vpop.permute.xlu0 %2446
  %2448 = vrot.lane.b32.xlu0 %v2357, 126
  %v2449 = vpop.permute.xlu0 %2448
  %2450 = vrot.lane.b32.xlu0 %v2358, 126
  %v2451 = vpop.permute.xlu0 %2450
  %2452 = vrot.lane.b32.xlu0 %v2359, 126
  %v2453 = vpop.permute.xlu0 %2452
  %2454 = vrot.lane.b32.xlu0 %v2360, 126
  %v2455 = vpop.permute.xlu0 %2454
  %2456 = vrot.lane.b32.xlu0 %v2361, 126
  %v2457 = vpop.permute.xlu0 %2456
  %2458 = vrot.lane.b32.xlu0 %v2362, 126
  %v2459 = vpop.permute.xlu0 %2458
  %2460 = vrot.lane.b32.xlu0 %v2363, 126
  %v2461 = vpop.permute.xlu0 %2460
  %v2462 = vsel %vm177, %v2439, %v2441
  %v2463 = vsel %vm177, %v2441, %v2443
  %v2464 = vsel %vm177, %v2445, %v2447
  %v2465 = vsel %vm177, %v2447, %v2449
  %v2466 = vsel %vm177, %v2451, %v2453
  %v2467 = vsel %vm177, %v2453, %v2455
  %v2468 = vsel %vm177, %v2457, %v2459
  %v2469 = vsel %vm177, %v2459, %v2461
  %2479 = vrot.lane.b32.xlu0 %v2376, 125
  %v2480 = vpop.permute.xlu0 %2479
  %2481 = vrot.lane.b32.xlu0 %v2377, 125
  %v2482 = vpop.permute.xlu0 %2481
  %2483 = vrot.lane.b32.xlu0 %v2378, 125
  %v2484 = vpop.permute.xlu0 %2483
  %2485 = vrot.lane.b32.xlu0 %v2380, 125
  %v2486 = vpop.permute.xlu0 %2485
  %2487 = vrot.lane.b32.xlu0 %v2382, 125
  %v2488 = vpop.permute.xlu0 %2487
  %2489 = vrot.lane.b32.xlu0 %v2384, 125
  %v2490 = vpop.permute.xlu0 %2489
  %2491 = vrot.lane.b32.xlu0 %v2386, 125
  %v2492 = vpop.permute.xlu0 %2491
  %2493 = vrot.lane.b32.xlu0 %v2388, 125
  %v2494 = vpop.permute.xlu0 %2493
  %2495 = vrot.lane.b32.xlu0 %v2390, 125
  %v2496 = vpop.permute.xlu0 %2495
  %2497 = vrot.lane.b32.xlu0 %v2392, 125
  %v2498 = vpop.permute.xlu0 %2497
  %2499 = vrot.lane.b32.xlu0 %v2394, 125
  %v2500 = vpop.permute.xlu0 %2499
  %2501 = vrot.lane.b32.xlu0 %v2396, 125
  %v2502 = vpop.permute.xlu0 %2501
  %v2503 = vsel %vm213, %v2480, %v2482
  %v2504 = vsel %vm213, %v2482, %v2484
  %v2505 = vsel %vm213, %v2486, %v2488
  %v2506 = vsel %vm213, %v2488, %v2490
  %v2507 = vsel %vm213, %v2492, %v2494
  %v2508 = vsel %vm213, %v2494, %v2496
  %v2509 = vsel %vm213, %v2498, %v2500
  %v2510 = vsel %vm213, %v2500, %v2502
  %2520 = vrot.lane.b32.xlu0 %v2352, 124
  %v2521 = vpop.permute.xlu0 %2520
  %2522 = vrot.lane.b32.xlu0 %v2353, 124
  %v2523 = vpop.permute.xlu0 %2522
  %2524 = vrot.lane.b32.xlu0 %v2354, 124
  %v2525 = vpop.permute.xlu0 %2524
  %2526 = vrot.lane.b32.xlu0 %v2355, 124
  %v2527 = vpop.permute.xlu0 %2526
  %2528 = vrot.lane.b32.xlu0 %v2356, 124
  %v2529 = vpop.permute.xlu0 %2528
  %2530 = vrot.lane.b32.xlu0 %v2357, 124
  %v2531 = vpop.permute.xlu0 %2530
  %2532 = vrot.lane.b32.xlu0 %v2358, 124
  %v2533 = vpop.permute.xlu0 %2532
  %2534 = vrot.lane.b32.xlu0 %v2359, 124
  %v2535 = vpop.permute.xlu0 %2534
  %2536 = vrot.lane.b32.xlu0 %v2360, 124
  %v2537 = vpop.permute.xlu0 %2536
  %2538 = vrot.lane.b32.xlu0 %v2361, 124
  %v2539 = vpop.permute.xlu0 %2538
  %2540 = vrot.lane.b32.xlu0 %v2362, 124
  %v2541 = vpop.permute.xlu0 %2540
  %2542 = vrot.lane.b32.xlu0 %v2363, 124
  %v2543 = vpop.permute.xlu0 %2542
  %v2544 = vsel %vm249, %v2521, %v2523
  %v2545 = vsel %vm249, %v2523, %v2525
  %v2546 = vsel %vm249, %v2527, %v2529
  %v2547 = vsel %vm249, %v2529, %v2531
  %v2548 = vsel %vm249, %v2533, %v2535
  %v2549 = vsel %vm249, %v2535, %v2537
  %v2550 = vsel %vm249, %v2539, %v2541
  %v2551 = vsel %vm249, %v2541, %v2543
  %v2563 = vsel %vm261, %v2361, %v2421
  %v2567 = vsel %vm261, %v2362, %v2422
  %v2571 = vsel %vm261, %v2363, %v2402
  %v2575 = vsel %vm261, %v2468, %v2503
  %v2579 = vsel %vm261, %v2469, %v2504
  %v2583 = vsel %vm261, %v2461, %v2484
  %v2585 = vld [vmem:[%s3] sm:$0xff]
  %v2586 = vld [vmem:[%s3 + $0x8] sm:$0xf]
  %v2587 = vld [vmem:[%s3 + $0xc] sm:$0xff]
  %v2588 = vld [vmem:[%s3 + $0x14] sm:$0xf]
  %v2589 = vld [vmem:[%s3 + $0x18] sm:$0xff]
  %v2590 = vld [vmem:[%s3 + $0x20] sm:$0xf]
  %v2591 = vld [vmem:[%s3 + $0x24] sm:$0xff]
  %v2592 = vld [vmem:[%s3 + $0x2c] sm:$0xf]
  %v2593 = vld [vmem:[%s3 + $0x30] sm:$0xff]
  %v2594 = vld [vmem:[%s3 + $0x38] sm:$0xf]
  %v2595 = vld [vmem:[%s3 + $0x3c] sm:$0xff]
  %v2596 = vld [vmem:[%s3 + $0x44] sm:$0xf]
  %v2597 = vld [vmem:[%s3 + $0x48] sm:$0xff]
  %v2598 = vld [vmem:[%s3 + $0x50] sm:$0xf]
  %v2599 = vld [vmem:[%s3 + $0x54] sm:$0xff]
  %v2600 = vld [vmem:[%s3 + $0x5c] sm:$0xf]
  %v2601 = vld [vmem:[%s3 + $0x60] sm:$0xff]
  %v2602 = vld [vmem:[%s3 + $0x68] sm:$0xf]
  %v2603 = vld [vmem:[%s3 + $0x6c] sm:$0xff]
  %v2604 = vld [vmem:[%s3 + $0x74] sm:$0xf]
  %v2605 = vld [vmem:[%s3 + $0x78] sm:$0xff]
  %v2606 = vld [vmem:[%s3 + $0x80] sm:$0xf]
  %v2607 = vld [vmem:[%s3 + $0x84] sm:$0xff]
  %v2608 = vld [vmem:[%s3 + $0x8c] sm:$0xf]
  %v2609 = vld [vmem:[%s3 + $0x90] sm:$0xff]
  %v2610 = vld [vmem:[%s3 + $0x98] sm:$0xf]
  %2612 = vset.pattern.permute.xlu0 2
  %2613 = vperm.xlu0 %2612, %v2339
  %v2614 = vpop.permute.xlu0 %2613
  %2617 = vset.pattern.permute.xlu0 2
  %2618 = vperm.xlu0 %2617, %v2340
  %v2619 = vpop.permute.xlu0 %2618
  %2622 = vset.pattern.permute.xlu0 2
  %2623 = vperm.xlu0 %2622, %v2341
  %v2624 = vpop.permute.xlu0 %2623
  %2627 = vset.pattern.permute.xlu0 2
  %2628 = vperm.xlu0 %2627, %v2342
  %v2629 = vpop.permute.xlu0 %2628
  %2632 = vset.pattern.permute.xlu0 2
  %2633 = vperm.xlu0 %2632, %v2343
  %v2634 = vpop.permute.xlu0 %2633
  %2637 = vset.pattern.permute.xlu0 2
  %2638 = vperm.xlu0 %2637, %v2344
  %v2639 = vpop.permute.xlu0 %2638
  %2642 = vset.pattern.permute.xlu0 2
  %2643 = vperm.xlu0 %2642, %v2345
  %v2644 = vpop.permute.xlu0 %2643
  %2647 = vset.pattern.permute.xlu0 2
  %2648 = vperm.xlu0 %2647, %v2346
  %v2649 = vpop.permute.xlu0 %2648
  %2652 = vset.pattern.permute.xlu0 2
  %2653 = vperm.xlu0 %2652, %v2347
  %v2654 = vpop.permute.xlu0 %2653
  %2657 = vset.pattern.permute.xlu0 2
  %2658 = vperm.xlu0 %2657, %v2348
  %v2659 = vpop.permute.xlu0 %2658
  %2662 = vset.pattern.permute.xlu0 2
  %2663 = vperm.xlu0 %2662, %v2349
  %v2664 = vpop.permute.xlu0 %2663
  %2667 = vset.pattern.permute.xlu0 2
  %2668 = vperm.xlu0 %2667, %v2350
  %v2669 = vpop.permute.xlu0 %2668
  %2672 = vset.pattern.permute.xlu0 2
  %2673 = vperm.xlu0 %2672, %v2351
  %v2674 = vpop.permute.xlu0 %2673
  %v2702 = vunpack.c.l.b16 %v2585
  %v2703 = vunpack.c.h.b16 %v2585
  %v2704 = vunpack.c.l.b16 %v2586
  %v2705 = vunpack.c.l.b16 %v2587
  %v2706 = vunpack.c.h.b16 %v2587
  %v2707 = vunpack.c.l.b16 %v2588
  %v2708 = vunpack.c.l.b16 %v2589
  %v2709 = vunpack.c.h.b16 %v2589
  %v2710 = vunpack.c.l.b16 %v2590
  %v2711 = vunpack.c.l.b16 %v2591
  %v2712 = vunpack.c.h.b16 %v2591
  %v2713 = vunpack.c.l.b16 %v2592
  %v2714 = vunpack.c.l.b16 %v2593
  %v2715 = vunpack.c.h.b16 %v2593
  %v2716 = vunpack.c.l.b16 %v2594
  %v2717 = vunpack.c.l.b16 %v2595
  %v2718 = vunpack.c.h.b16 %v2595
  %v2719 = vunpack.c.l.b16 %v2596
  %v2720 = vunpack.c.l.b16 %v2597
  %v2721 = vunpack.c.h.b16 %v2597
  %v2722 = vunpack.c.l.b16 %v2598
  %v2723 = vunpack.c.l.b16 %v2599
  %v2724 = vunpack.c.h.b16 %v2599
  %v2725 = vunpack.c.l.b16 %v2600
  %v2726 = vunpack.c.l.b16 %v2601
  %v2727 = vunpack.c.h.b16 %v2601
  %v2728 = vunpack.c.l.b16 %v2602
  %v2729 = vunpack.c.l.b16 %v2603
  %v2730 = vunpack.c.h.b16 %v2603
  %v2731 = vunpack.c.l.b16 %v2604
  %v2732 = vunpack.c.l.b16 %v2605
  %v2733 = vunpack.c.h.b16 %v2605
  %v2734 = vunpack.c.l.b16 %v2606
  %v2735 = vunpack.c.l.b16 %v2607
  %v2736 = vunpack.c.h.b16 %v2607
  %v2737 = vunpack.c.l.b16 %v2608
  %v2738 = vunpack.c.l.b16 %v2609
  %v2739 = vunpack.c.h.b16 %v2609
  %v2740 = vunpack.c.l.b16 %v2610
  %v2741 = vpack.c.b16 %v2705, %v2702
  %v2742 = vpack.c.b16 %v2706, %v2703
  %v2743 = vpack.c.b16 %v2707, %v2704
  %v2744 = vpack.c.b16 %v2711, %v2708
  %v2745 = vpack.c.b16 %v2712, %v2709
  %v2746 = vpack.c.b16 %v2713, %v2710
  %v2747 = vpack.c.b16 %v2717, %v2714
  %v2748 = vpack.c.b16 %v2718, %v2715
  %v2749 = vpack.c.b16 %v2719, %v2716
  %v2750 = vpack.c.b16 %v2723, %v2720
  %v2751 = vpack.c.b16 %v2724, %v2721
  %v2752 = vpack.c.b16 %v2725, %v2722
  %v2753 = vpack.c.b16 %v2729, %v2726
  %v2754 = vpack.c.b16 %v2730, %v2727
  %v2755 = vpack.c.b16 %v2731, %v2728
  %v2756 = vpack.c.b16 %v2735, %v2732
  %v2757 = vpack.c.b16 %v2736, %v2733
  %v2758 = vpack.c.b16 %v2737, %v2734
  %v2759 = vpack.c.b16 %v2738, %v2738
  %v2760 = vpack.c.b16 %v2739, %v2739
  %v2761 = vpack.c.b16 %v2740, %v2740
  %vm2776 = vcmask 195584
  %v2778 = vsel %vm2776, %v2743, 0
  %v2781 = vsel %vm2776, %v2746, 0
  %v2784 = vsel %vm2776, %v2749, 0
  %v2787 = vsel %vm2776, %v2752, 0
  %v2790 = vsel %vm2776, %v2755, 0
  %v2793 = vsel %vm2776, %v2758, 0
  %v2796 = vsel %vm2776, %v2761, 0
  %v2799 = vsel %vm261, %v2550, 0
  %v2802 = vsel %vm261, %v2551, 0
  %v2805 = vsel %vm261, %v2543, 0
  %2807 = vmatprep.subr.bf16.mxu0 %v2463
  %2808 = vmatpush1.bf16.msra.mxu0 %v2462
  %2809 = vmatprep.subr.bf16.mxu0 %v2428
  %2810 = vmatpush1.bf16.msra.mxu0 %v2427
  %2811 = vmatprep.subr.bf16.mxu0 %v2426
  %2812 = vmatpush1.bf16.msra.mxu0 %v2425
  %2813 = vmatprep.subr.bf16.mxu0 %v2424
  %2814 = vmatpush1.bf16.msra.mxu0 %v2423
  %2815 = vmatprep.subr.bf16.mxu0 %v2567
  %2816 = vmatpush1.bf16.msra.mxu0 %v2563
  %2817 = vmatprep.subr.bf16.mxu0 %v2359
  %2818 = vmatpush1.bf16.msra.mxu0 %v2358
  %2819 = vmatprep.subr.bf16.mxu0 %v2356
  %2820 = vmatpush1.bf16.msra.mxu0 %v2355
  %2821 = vmatprep.subr.bf16.mxu0 %v2353
  %2822 = vmatpush1.bf16.msra.mxu0 %v2352
  %2823 = vmatprep.subr.bf16.mxu0 %v2547
  %2824 = vmatpush2.bf16.msra.mxu0 %v2546
  %2825 = vmatprep.subr.bf16.mxu0 %v2545
  %2826 = vmatpush2.bf16.msra.mxu0 %v2544
  %2827 = vmatprep.subr.bf16.mxu0 %v2510
  %2828 = vmatpush2.bf16.msra.mxu0 %v2509
  %2829 = vmatprep.subr.bf16.mxu0 %v2508
  %2830 = vmatpush2.bf16.msra.mxu0 %v2507
  %2831 = vmatprep.subr.bf16.mxu0 %v2506
  %2832 = vmatpush2.bf16.msra.mxu0 %v2505
  %2833 = vmatprep.subr.bf16.mxu0 %v2579
  %2834 = vmatpush2.bf16.msra.mxu0 %v2575
  %2835 = vmatprep.subr.bf16.mxu0 %v2467
  %2836 = vmatpush2.bf16.msra.mxu0 %v2466
  %2837 = vmatprep.subr.bf16.mxu0 %v2465
  %2838 = vmatpush2.bf16.msra.mxu0 %v2464
  %2839 = vmatprep.mubr.bf16.mxu0 %v2742
  %2840 = vmatmul.mubr.bf16.gmra.mxu0 %v2741
  %v2841 = vpop.f32.mrf.mxu0
  %v2842 = vadd.f32 %v2614, %v2841
  %v2843 = vpop.f32.mrf.mxu0
  %v2844 = vadd.f32 %v2614, %v2843
  %v2845 = vpop.f32.mrf.mxu0
  %v2846 = vadd.f32 %v2619, %v2845
  %v2847 = vpop.f32.mrf.mxu0
  %v2848 = vadd.f32 %v2619, %v2847
  %2849 = vmatprep.mubr.bf16.mxu0 %v2745
  %2850 = vmatmul.mubr.bf16.gmra.mxu0 %v2744
  %v2851 = vpop.f32.mrf.mxu0
  %v2852 = vadd.f32 %v2624, %v2851
  %v2853 = vpop.f32.mrf.mxu0
  %v2854 = vadd.f32 %v2624, %v2853
  %v2855 = vpop.f32.mrf.mxu0
  %v2856 = vadd.f32 %v2629, %v2855
  %v2857 = vpop.f32.mrf.mxu0
  %v2858 = vadd.f32 %v2629, %v2857
  %2859 = vmatprep.mubr.bf16.mxu0 %v2748
  %2860 = vmatmul.mubr.bf16.gmra.mxu0 %v2747
  %v2861 = vpop.f32.mrf.mxu0
  %v2862 = vadd.f32 %v2634, %v2861
  %v2863 = vpop.f32.mrf.mxu0
  %v2864 = vadd.f32 %v2634, %v2863
  %v2865 = vpop.f32.mrf.mxu0
  %v2866 = vadd.f32 %v2639, %v2865
  %v2867 = vpop.f32.mrf.mxu0
  %v2868 = vadd.f32 %v2639, %v2867
  %2869 = vmatprep.mubr.bf16.mxu0 %v2751
  %2870 = vmatmul.mubr.bf16.gmra.mxu0 %v2750
  %v2871 = vpop.f32.mrf.mxu0
  %v2872 = vadd.f32 %v2644, %v2871
  %v2873 = vpop.f32.mrf.mxu0
  %v2874 = vadd.f32 %v2644, %v2873
  %v2875 = vpop.f32.mrf.mxu0
  %v2876 = vadd.f32 %v2649, %v2875
  %v2877 = vpop.f32.mrf.mxu0
  %v2878 = vadd.f32 %v2649, %v2877
  %2879 = vmatprep.mubr.bf16.mxu0 %v2754
  %2880 = vmatmul.mubr.bf16.gmra.mxu0 %v2753
  %v2881 = vpop.f32.mrf.mxu0
  %v2882 = vadd.f32 %v2654, %v2881
  %v2883 = vpop.f32.mrf.mxu0
  %v2884 = vadd.f32 %v2654, %v2883
  %v2885 = vpop.f32.mrf.mxu0
  %v2886 = vadd.f32 %v2659, %v2885
  %v2887 = vpop.f32.mrf.mxu0
  %v2888 = vadd.f32 %v2659, %v2887
  %2889 = vmatprep.mubr.bf16.mxu0 %v2757
  %2890 = vmatmul.mubr.bf16.gmra.mxu0 %v2756
  %v2891 = vpop.f32.mrf.mxu0
  %v2892 = vadd.f32 %v2664, %v2891
  %v2893 = vpop.f32.mrf.mxu0
  %v2894 = vadd.f32 %v2664, %v2893
  %v2895 = vpop.f32.mrf.mxu0
  %v2896 = vadd.f32 %v2669, %v2895
  %v2897 = vpop.f32.mrf.mxu0
  %v2898 = vadd.f32 %v2669, %v2897
  %2899 = vmatprep.mubr.bf16.mxu0 %v2760
  %2900 = vmatmul.mubr.bf16.gmra.mxu0 %v2759
  %v2901 = vpop.f32.mrf.mxu0
  %v2902 = vadd.f32 %v2674, %v2901
  %v2903 = vpop.f32.mrf.mxu0
  %v2904 = vadd.f32 %v2674, %v2903
  %v2905 = vpop.f32.mrf.mxu0
  %v2906 = vpop.f32.mrf.mxu0
  %2907 = vdwg.mxu0
  %2908 = vmatprep.subr.bf16.mxu0 0
  %2909 = vmatpush1.bf16.msra.mxu0 0
  %2910 = vmatprep.subr.bf16.mxu0 0
  %2911 = vmatpush1.bf16.msra.mxu0 0
  %2912 = vmatprep.subr.bf16.mxu0 0
  %2913 = vmatpush1.bf16.msra.mxu0 0
  %2914 = vmatprep.subr.bf16.mxu0 0
  %2915 = vmatpush1.bf16.msra.mxu0 0
  %2916 = vmatprep.subr.bf16.mxu0 0
  %2917 = vmatpush1.bf16.msra.mxu0 0
  %2918 = vmatprep.subr.bf16.mxu0 0
  %2919 = vmatpush1.bf16.msra.mxu0 0
  %2920 = vmatprep.subr.bf16.mxu0 %v2802
  %2921 = vmatpush1.bf16.msra.mxu0 %v2799
  %2922 = vmatprep.subr.bf16.mxu0 %v2549
  %2923 = vmatpush1.bf16.msra.mxu0 %v2548
  %2924 = vmatprep.subr.bf16.mxu0 0
  %2925 = vmatpush2.bf16.msra.mxu0 0
  %2926 = vmatprep.subr.bf16.mxu0 0
  %2927 = vmatpush2.bf16.msra.mxu0 0
  %2928 = vmatprep.subr.bf16.mxu0 0
  %2929 = vmatpush2.bf16.msra.mxu0 0
  %2930 = vmatprep.subr.bf16.mxu0 0
  %2931 = vmatpush2.bf16.msra.mxu0 0
  %2932 = vmatprep.subr.bf16.mxu0 0
  %2933 = vmatpush2.bf16.msra.mxu0 0
  %2934 = vmatprep.subr.bf16.mxu0 0
  %2935 = vmatpush2.bf16.msra.mxu0 0
  %2936 = vmatprep.subr.bf16.mxu0 0
  %2937 = vmatpush2.bf16.msra.mxu0 0
  %2938 = vmatprep.subr.bf16.mxu0 0
  %2939 = vmatpush2.bf16.msra.mxu0 0
  %2940 = vmatprep.mubr.bf16.mxu0 0
  %2941 = vmatmul.mubr.bf16.gmra.mxu0 %v2778
  %v2942 = vpop.f32.mrf.mxu0
  %v2943 = vadd.f32 %v2842, %v2942
  %v2944 = vpop.f32.mrf.mxu0
  %v2945 = vadd.f32 %v2844, %v2944
  %v2946 = vpop.f32.mrf.mxu0
  %v2947 = vadd.f32 %v2846, %v2946
  %v2948 = vpop.f32.mrf.mxu0
  %v2949 = vadd.f32 %v2848, %v2948
  %2950 = vmatprep.mubr.bf16.mxu0 0
  %2951 = vmatmul.mubr.bf16.gmra.mxu0 %v2781
  %v2952 = vpop.f32.mrf.mxu0
  %v2953 = vadd.f32 %v2852, %v2952
  %v2954 = vpop.f32.mrf.mxu0
  %v2955 = vadd.f32 %v2854, %v2954
  %v2956 = vpop.f32.mrf.mxu0
  %v2957 = vadd.f32 %v2856, %v2956
  %v2958 = vpop.f32.mrf.mxu0
  %v2959 = vadd.f32 %v2858, %v2958
  %2960 = vmatprep.mubr.bf16.mxu0 0
  %2961 = vmatmul.mubr.bf16.gmra.mxu0 %v2784
  %v2962 = vpop.f32.mrf.mxu0
  %v2963 = vadd.f32 %v2862, %v2962
  %v2964 = vpop.f32.mrf.mxu0
  %v2965 = vadd.f32 %v2864, %v2964
  %v2966 = vpop.f32.mrf.mxu0
  %v2967 = vadd.f32 %v2866, %v2966
  %v2968 = vpop.f32.mrf.mxu0
  %v2969 = vadd.f32 %v2868, %v2968
  %2970 = vmatprep.mubr.bf16.mxu0 0
  %2971 = vmatmul.mubr.bf16.gmra.mxu0 %v2787
  %v2972 = vpop.f32.mrf.mxu0
  %v2973 = vadd.f32 %v2872, %v2972
  %v2974 = vpop.f32.mrf.mxu0
  %v2975 = vadd.f32 %v2874, %v2974
  %v2976 = vpop.f32.mrf.mxu0
  %v2977 = vadd.f32 %v2876, %v2976
  %v2978 = vpop.f32.mrf.mxu0
  %v2979 = vadd.f32 %v2878, %v2978
  %2980 = vmatprep.mubr.bf16.mxu0 0
  %2981 = vmatmul.mubr.bf16.gmra.mxu0 %v2790
  %v2982 = vpop.f32.mrf.mxu0
  %v2983 = vadd.f32 %v2882, %v2982
  %v2984 = vpop.f32.mrf.mxu0
  %v2985 = vadd.f32 %v2884, %v2984
  %v2986 = vpop.f32.mrf.mxu0
  %v2987 = vadd.f32 %v2886, %v2986
  %v2988 = vpop.f32.mrf.mxu0
  %v2989 = vadd.f32 %v2888, %v2988
  %2990 = vmatprep.mubr.bf16.mxu0 0
  %2991 = vmatmul.mubr.bf16.gmra.mxu0 %v2793
  %v2992 = vpop.f32.mrf.mxu0
  %v2993 = vadd.f32 %v2892, %v2992
  %v2994 = vpop.f32.mrf.mxu0
  %v2995 = vadd.f32 %v2894, %v2994
  %v2996 = vpop.f32.mrf.mxu0
  %v2997 = vadd.f32 %v2896, %v2996
  %v2998 = vpop.f32.mrf.mxu0
  %v2999 = vadd.f32 %v2898, %v2998
  %3000 = vmatprep.mubr.bf16.mxu0 0
  %3001 = vmatmul.mubr.bf16.gmra.mxu0 %v2796
  %v3002 = vpop.f32.mrf.mxu0
  %v3003 = vadd.f32 %v2902, %v3002
  %v3004 = vpop.f32.mrf.mxu0
  %v3005 = vadd.f32 %v2904, %v3004
  %v3006 = vpop.f32.mrf.mxu0
  %v3007 = vpop.f32.mrf.mxu0
  %3008 = vdwg.mxu0
  %3009 = vmatprep.subr.bf16.mxu0 0
  %3010 = vmatpush1.bf16.msra.mxu0 %v2443
  %3011 = vmatprep.subr.bf16.mxu0 0
  %3012 = vmatpush1.bf16.msra.mxu0 %v2420
  %3013 = vmatprep.subr.bf16.mxu0 0
  %3014 = vmatpush1.bf16.msra.mxu0 %v2414
  %3015 = vmatprep.subr.bf16.mxu0 0
  %3016 = vmatpush1.bf16.msra.mxu0 %v2408
  %3017 = vmatprep.subr.bf16.mxu0 0
  %3018 = vmatpush1.bf16.msra.mxu0 %v2571
  %3019 = vmatprep.subr.bf16.mxu0 0
  %3020 = vmatpush1.bf16.msra.mxu0 %v2360
  %3021 = vmatprep.subr.bf16.mxu0 0
  %3022 = vmatpush1.bf16.msra.mxu0 %v2357
  %3023 = vmatprep.subr.bf16.mxu0 0
  %3024 = vmatpush1.bf16.msra.mxu0 %v2354
  %3025 = vmatprep.subr.bf16.mxu0 0
  %3026 = vmatpush2.bf16.msra.mxu0 %v2531
  %3027 = vmatprep.subr.bf16.mxu0 0
  %3028 = vmatpush2.bf16.msra.mxu0 %v2525
  %3029 = vmatprep.subr.bf16.mxu0 0
  %3030 = vmatpush2.bf16.msra.mxu0 %v2502
  %3031 = vmatprep.subr.bf16.mxu0 0
  %3032 = vmatpush2.bf16.msra.mxu0 %v2496
  %3033 = vmatprep.subr.bf16.mxu0 0
  %3034 = vmatpush2.bf16.msra.mxu0 %v2490
  %3035 = vmatprep.subr.bf16.mxu0 0
  %3036 = vmatpush2.bf16.msra.mxu0 %v2583
  %3037 = vmatprep.subr.bf16.mxu0 0
  %3038 = vmatpush2.bf16.msra.mxu0 %v2455
  %3039 = vmatprep.subr.bf16.mxu0 0
  %3040 = vmatpush2.bf16.msra.mxu0 %v2449
  %3041 = vmatprep.mubr.bf16.mxu0 %v2742
  %3042 = vmatmul.mubr.bf16.gmra.mxu0 %v2741
  %v3043 = vpop.f32.mrf.mxu0
  %v3044 = vadd.f32 %v2614, %v3043
  %v3045 = vpop.f32.mrf.mxu0
  %v3046 = vpop.f32.mrf.mxu0
  %v3047 = vadd.f32 %v2619, %v3046
  %v3048 = vpop.f32.mrf.mxu0
  %3049 = vmatprep.mubr.bf16.mxu0 %v2745
  %3050 = vmatmul.mubr.bf16.gmra.mxu0 %v2744
  %v3051 = vpop.f32.mrf.mxu0
  %v3052 = vadd.f32 %v2624, %v3051
  %v3053 = vpop.f32.mrf.mxu0
  %v3054 = vpop.f32.mrf.mxu0
  %v3055 = vadd.f32 %v2629, %v3054
  %v3056 = vpop.f32.mrf.mxu0
  %3057 = vmatprep.mubr.bf16.mxu0 %v2748
  %3058 = vmatmul.mubr.bf16.gmra.mxu0 %v2747
  %v3059 = vpop.f32.mrf.mxu0
  %v3060 = vadd.f32 %v2634, %v3059
  %v3061 = vpop.f32.mrf.mxu0
  %v3062 = vpop.f32.mrf.mxu0
  %v3063 = vadd.f32 %v2639, %v3062
  %v3064 = vpop.f32.mrf.mxu0
  %3065 = vmatprep.mubr.bf16.mxu0 %v2751
  %3066 = vmatmul.mubr.bf16.gmra.mxu0 %v2750
  %v3067 = vpop.f32.mrf.mxu0
  %v3068 = vadd.f32 %v2644, %v3067
  %v3069 = vpop.f32.mrf.mxu0
  %v3070 = vpop.f32.mrf.mxu0
  %v3071 = vadd.f32 %v2649, %v3070
  %v3072 = vpop.f32.mrf.mxu0
  %3073 = vmatprep.mubr.bf16.mxu0 %v2754
  %3074 = vmatmul.mubr.bf16.gmra.mxu0 %v2753
  %v3075 = vpop.f32.mrf.mxu0
  %v3076 = vadd.f32 %v2654, %v3075
  %v3077 = vpop.f32.mrf.mxu0
  %v3078 = vpop.f32.mrf.mxu0
  %v3079 = vadd.f32 %v2659, %v3078
  %v3080 = vpop.f32.mrf.mxu0
  %3081 = vmatprep.mubr.bf16.mxu0 %v2757
  %3082 = vmatmul.mubr.bf16.gmra.mxu0 %v2756
  %v3083 = vpop.f32.mrf.mxu0
  %v3084 = vadd.f32 %v2664, %v3083
  %v3085 = vpop.f32.mrf.mxu0
  %v3086 = vpop.f32.mrf.mxu0
  %v3087 = vadd.f32 %v2669, %v3086
  %v3088 = vpop.f32.mrf.mxu0
  %3089 = vmatprep.mubr.bf16.mxu0 %v2760
  %3090 = vmatmul.mubr.bf16.gmra.mxu0 %v2759
  %v3091 = vpop.f32.mrf.mxu0
  %v3092 = vadd.f32 %v2674, %v3091
  %v3093 = vpop.f32.mrf.mxu0
  %v3094 = vpop.f32.mrf.mxu0
  %v3095 = vpop.f32.mrf.mxu0
  %3096 = vdwg.mxu0
  %3097 = vmatprep.subr.bf16.mxu0 0
  %3098 = vmatpush1.bf16.msra.mxu0 0
  %3099 = vmatprep.subr.bf16.mxu0 0
  %3100 = vmatpush1.bf16.msra.mxu0 0
  %3101 = vmatprep.subr.bf16.mxu0 0
  %3102 = vmatpush1.bf16.msra.mxu0 0
  %3103 = vmatprep.subr.bf16.mxu0 0
  %3104 = vmatpush1.bf16.msra.mxu0 0
  %3105 = vmatprep.subr.bf16.mxu0 0
  %3106 = vmatpush1.bf16.msra.mxu0 0
  %3107 = vmatprep.subr.bf16.mxu0 0
  %3108 = vmatpush1.bf16.msra.mxu0 0
  %3109 = vmatprep.subr.bf16.mxu0 0
  %3110 = vmatpush1.bf16.msra.mxu0 %v2805
  %3111 = vmatprep.subr.bf16.mxu0 0
  %3112 = vmatpush1.bf16.msra.mxu0 %v2537
  %3113 = vmatprep.subr.bf16.mxu0 0
  %3114 = vmatpush2.bf16.msra.mxu0 0
  %3115 = vmatprep.subr.bf16.mxu0 0
  %3116 = vmatpush2.bf16.msra.mxu0 0
  %3117 = vmatprep.subr.bf16.mxu0 0
  %3118 = vmatpush2.bf16.msra.mxu0 0
  %3119 = vmatprep.subr.bf16.mxu0 0
  %3120 = vmatpush2.bf16.msra.mxu0 0
  %3121 = vmatprep.subr.bf16.mxu0 0
  %3122 = vmatpush2.bf16.msra.mxu0 0
  %3123 = vmatprep.subr.bf16.mxu0 0
  %3124 = vmatpush2.bf16.msra.mxu0 0
  %3125 = vmatprep.subr.bf16.mxu0 0
  %3126 = vmatpush2.bf16.msra.mxu0 0
  %3127 = vmatprep.subr.bf16.mxu0 0
  %3128 = vmatpush2.bf16.msra.mxu0 0
  %3129 = vmatprep.mubr.bf16.mxu0 0
  %3130 = vmatmul.mubr.bf16.gmra.mxu0 %v2778
  %v3131 = vpop.f32.mrf.mxu0
  %v3132 = vadd.f32 %v3044, %v3131
  %v3133 = vpop.f32.mrf.mxu0
  %v3134 = vpop.f32.mrf.mxu0
  %v3135 = vadd.f32 %v3047, %v3134
  %v3136 = vpop.f32.mrf.mxu0
  %3137 = vmatprep.mubr.bf16.mxu0 0
  %3138 = vmatmul.mubr.bf16.gmra.mxu0 %v2781
  %v3139 = vpop.f32.mrf.mxu0
  %v3140 = vadd.f32 %v3052, %v3139
  %v3141 = vpop.f32.mrf.mxu0
  %v3142 = vpop.f32.mrf.mxu0
  %v3143 = vadd.f32 %v3055, %v3142
  %v3144 = vpop.f32.mrf.mxu0
  %3145 = vmatprep.mubr.bf16.mxu0 0
  %3146 = vmatmul.mubr.bf16.gmra.mxu0 %v2784
  %v3147 = vpop.f32.mrf.mxu0
  %v3148 = vadd.f32 %v3060, %v3147
  %v3149 = vpop.f32.mrf.mxu0
  %v3150 = vpop.f32.mrf.mxu0
  %v3151 = vadd.f32 %v3063, %v3150
  %v3152 = vpop.f32.mrf.mxu0
  %3153 = vmatprep.mubr.bf16.mxu0 0
  %3154 = vmatmul.mubr.bf16.gmra.mxu0 %v2787
  %v3155 = vpop.f32.mrf.mxu0
  %v3156 = vadd.f32 %v3068, %v3155
  %v3157 = vpop.f32.mrf.mxu0
  %v3158 = vpop.f32.mrf.mxu0
  %v3159 = vadd.f32 %v3071, %v3158
  %v3160 = vpop.f32.mrf.mxu0
  %3161 = vmatprep.mubr.bf16.mxu0 0
  %3162 = vmatmul.mubr.bf16.gmra.mxu0 %v2790
  %v3163 = vpop.f32.mrf.mxu0
  %v3164 = vadd.f32 %v3076, %v3163
  %v3165 = vpop.f32.mrf.mxu0
  %v3166 = vpop.f32.mrf.mxu0
  %v3167 = vadd.f32 %v3079, %v3166
  %v3168 = vpop.f32.mrf.mxu0
  %3169 = vmatprep.mubr.bf16.mxu0 0
  %3170 = vmatmul.mubr.bf16.gmra.mxu0 %v2793
  %v3171 = vpop.f32.mrf.mxu0
  %v3172 = vadd.f32 %v3084, %v3171
  %v3173 = vpop.f32.mrf.mxu0
  %v3174 = vpop.f32.mrf.mxu0
  %v3175 = vadd.f32 %v3087, %v3174
  %v3176 = vpop.f32.mrf.mxu0
  %3177 = vmatprep.mubr.bf16.mxu0 0
  %3178 = vmatmul.mubr.bf16.gmra.mxu0 %v2796
  %v3179 = vpop.f32.mrf.mxu0
  %v3180 = vadd.f32 %v3092, %v3179
  %v3181 = vpop.f32.mrf.mxu0
  %v3182 = vpop.f32.mrf.mxu0
  %v3183 = vpop.f32.mrf.mxu0
  %3184 = vdwg.mxu0
  %v3185 = vmax.f32 %v2943, 0.0
  %v3186 = vmax.f32 %v2945, 0.0
  %v3187 = vmax.f32 %v3132, 0.0
  %v3188 = vmax.f32 %v2947, 0.0
  %v3189 = vmax.f32 %v2949, 0.0
  %v3190 = vmax.f32 %v3135, 0.0
  %v3191 = vmax.f32 %v2953, 0.0
  %v3192 = vmax.f32 %v2955, 0.0
  %v3193 = vmax.f32 %v3140, 0.0
  %v3194 = vmax.f32 %v2957, 0.0
  %v3195 = vmax.f32 %v2959, 0.0
  %v3196 = vmax.f32 %v3143, 0.0
  %v3197 = vmax.f32 %v2963, 0.0
  %v3198 = vmax.f32 %v2965, 0.0
  %v3199 = vmax.f32 %v3148, 0.0
  %v3200 = vmax.f32 %v2967, 0.0
  %v3201 = vmax.f32 %v2969, 0.0
  %v3202 = vmax.f32 %v3151, 0.0
  %v3203 = vmax.f32 %v2973, 0.0
  %v3204 = vmax.f32 %v2975, 0.0
  %v3205 = vmax.f32 %v3156, 0.0
  %v3206 = vmax.f32 %v2977, 0.0
  %v3207 = vmax.f32 %v2979, 0.0
  %v3208 = vmax.f32 %v3159, 0.0
  %v3209 = vmax.f32 %v2983, 0.0
  %v3210 = vmax.f32 %v2985, 0.0
  %v3211 = vmax.f32 %v3164, 0.0
  %v3212 = vmax.f32 %v2987, 0.0
  %v3213 = vmax.f32 %v2989, 0.0
  %v3214 = vmax.f32 %v3167, 0.0
  %v3215 = vmax.f32 %v2993, 0.0
  %v3216 = vmax.f32 %v2995, 0.0
  %v3217 = vmax.f32 %v3172, 0.0
  %v3218 = vmax.f32 %v2997, 0.0
  %v3219 = vmax.f32 %v2999, 0.0
  %v3220 = vmax.f32 %v3175, 0.0
  %v3221 = vmax.f32 %v3003, 0.0
  %v3222 = vmax.f32 %v3005, 0.0
  %v3223 = vmax.f32 %v3180, 0.0
  %3263 = vrot.lane.b32.xlu0 %v3185, 127
  %v3264 = vpop.permute.xlu0 %3263
  %3265 = vrot.lane.b32.xlu0 %v3186, 127
  %v3266 = vpop.permute.xlu0 %3265
  %3267 = vrot.lane.b32.xlu0 %v3187, 127
  %v3268 = vpop.permute.xlu0 %3267
  %3269 = vrot.lane.b32.xlu0 %v3188, 127
  %v3270 = vpop.permute.xlu0 %3269
  %3271 = vrot.lane.b32.xlu0 %v3189, 127
  %v3272 = vpop.permute.xlu0 %3271
  %3273 = vrot.lane.b32.xlu0 %v3190, 127
  %v3274 = vpop.permute.xlu0 %3273
  %3275 = vrot.lane.b32.xlu0 %v3191, 127
  %v3276 = vpop.permute.xlu0 %3275
  %3277 = vrot.lane.b32.xlu0 %v3192, 127
  %v3278 = vpop.permute.xlu0 %3277
  %3279 = vrot.lane.b32.xlu0 %v3193, 127
  %v3280 = vpop.permute.xlu0 %3279
  %3281 = vrot.lane.b32.xlu0 %v3194, 127
  %v3282 = vpop.permute.xlu0 %3281
  %3283 = vrot.lane.b32.xlu0 %v3195, 127
  %v3284 = vpop.permute.xlu0 %3283
  %3285 = vrot.lane.b32.xlu0 %v3196, 127
  %v3286 = vpop.permute.xlu0 %3285
  %3287 = vrot.lane.b32.xlu0 %v3197, 127
  %v3288 = vpop.permute.xlu0 %3287
  %3289 = vrot.lane.b32.xlu0 %v3198, 127
  %v3290 = vpop.permute.xlu0 %3289
  %3291 = vrot.lane.b32.xlu0 %v3199, 127
  %v3292 = vpop.permute.xlu0 %3291
  %3293 = vrot.lane.b32.xlu0 %v3200, 127
  %v3294 = vpop.permute.xlu0 %3293
  %3295 = vrot.lane.b32.xlu0 %v3201, 127
  %v3296 = vpop.permute.xlu0 %3295
  %3297 = vrot.lane.b32.xlu0 %v3202, 127
  %v3298 = vpop.permute.xlu0 %3297
  %3299 = vrot.lane.b32.xlu0 %v3203, 127
  %v3300 = vpop.permute.xlu0 %3299
  %3301 = vrot.lane.b32.xlu0 %v3204, 127
  %v3302 = vpop.permute.xlu0 %3301
  %3303 = vrot.lane.b32.xlu0 %v3205, 127
  %v3304 = vpop.permute.xlu0 %3303
  %3305 = vrot.lane.b32.xlu0 %v3206, 127
  %v3306 = vpop.permute.xlu0 %3305
  %3307 = vrot.lane.b32.xlu0 %v3207, 127
  %v3308 = vpop.permute.xlu0 %3307
  %3309 = vrot.lane.b32.xlu0 %v3208, 127
  %v3310 = vpop.permute.xlu0 %3309
  %3311 = vrot.lane.b32.xlu0 %v3209, 127
  %v3312 = vpop.permute.xlu0 %3311
  %3313 = vrot.lane.b32.xlu0 %v3210, 127
  %v3314 = vpop.permute.xlu0 %3313
  %3315 = vrot.lane.b32.xlu0 %v3211, 127
  %v3316 = vpop.permute.xlu0 %3315
  %3317 = vrot.lane.b32.xlu0 %v3212, 127
  %v3318 = vpop.permute.xlu0 %3317
  %3319 = vrot.lane.b32.xlu0 %v3213, 127
  %v3320 = vpop.permute.xlu0 %3319
  %3321 = vrot.lane.b32.xlu0 %v3214, 127
  %v3322 = vpop.permute.xlu0 %3321
  %3323 = vrot.lane.b32.xlu0 %v3215, 127
  %v3324 = vpop.permute.xlu0 %3323
  %3325 = vrot.lane.b32.xlu0 %v3216, 127
  %v3326 = vpop.permute.xlu0 %3325
  %3327 = vrot.lane.b32.xlu0 %v3217, 127
  %v3328 = vpop.permute.xlu0 %3327
  %3329 = vrot.lane.b32.xlu0 %v3218, 127
  %v3330 = vpop.permute.xlu0 %3329
  %3331 = vrot.lane.b32.xlu0 %v3219, 127
  %v3332 = vpop.permute.xlu0 %3331
  %3333 = vrot.lane.b32.xlu0 %v3220, 127
  %v3334 = vpop.permute.xlu0 %3333
  %3335 = vrot.lane.b32.xlu0 %v3221, 127
  %v3336 = vpop.permute.xlu0 %3335
  %3337 = vrot.lane.b32.xlu0 %v3222, 127
  %v3338 = vpop.permute.xlu0 %3337
  %3339 = vrot.lane.b32.xlu0 %v3223, 127
  %v3340 = vpop.permute.xlu0 %3339
  %v3341 = vsel %vm945, %v3264, %v3266
  %v3342 = vsel %vm945, %v3266, %v3268
  %v3343 = vsel %vm945, %v3270, %v3272
  %v3344 = vsel %vm945, %v3272, %v3274
  %v3345 = vsel %vm945, %v3276, %v3278
  %v3346 = vsel %vm945, %v3278, %v3280
  %v3347 = vsel %vm945, %v3282, %v3284
  %v3348 = vsel %vm945, %v3284, %v3286
  %v3349 = vsel %vm945, %v3288, %v3290
  %v3350 = vsel %vm945, %v3290, %v3292
  %v3351 = vsel %vm945, %v3294, %v3296
  %v3352 = vsel %vm945, %v3296, %v3298
  %v3353 = vsel %vm945, %v3300, %v3302
  %v3354 = vsel %vm945, %v3302, %v3304
  %v3355 = vsel %vm945, %v3306, %v3308
  %v3356 = vsel %vm945, %v3308, %v3310
  %v3357 = vsel %vm945, %v3312, %v3314
  %v3358 = vsel %vm945, %v3314, %v3316
  %v3359 = vsel %vm945, %v3318, %v3320
  %v3360 = vsel %vm945, %v3320, %v3322
  %v3361 = vsel %vm945, %v3324, %v3326
  %v3362 = vsel %vm945, %v3326, %v3328
  %v3363 = vsel %vm945, %v3330, %v3332
  %v3364 = vsel %vm945, %v3332, %v3334
  %v3365 = vsel %vm945, %v3336, %v3338
  %v3366 = vsel %vm945, %v3338, %v3340
  %v3406 = vmax.f32 %v3185, %v3341
  %v3407 = vmax.f32 %v3186, %v3342
  %v3408 = vmax.f32 %v3187, %v3268
  %v3409 = vmax.f32 %v3188, %v3343
  %v3410 = vmax.f32 %v3189, %v3344
  %v3411 = vmax.f32 %v3190, %v3274
  %v3412 = vmax.f32 %v3191, %v3345
  %v3413 = vmax.f32 %v3192, %v3346
  %v3414 = vmax.f32 %v3193, %v3280
  %v3415 = vmax.f32 %v3194, %v3347
  %v3416 = vmax.f32 %v3195, %v3348
  %v3417 = vmax.f32 %v3196, %v3286
  %v3418 = vmax.f32 %v3197, %v3349
  %v3419 = vmax.f32 %v3198, %v3350
  %v3420 = vmax.f32 %v3199, %v3292
  %v3421 = vmax.f32 %v3200, %v3351
  %v3422 = vmax.f32 %v3201, %v3352
  %v3423 = vmax.f32 %v3202, %v3298
  %v3424 = vmax.f32 %v3203, %v3353
  %v3425 = vmax.f32 %v3204, %v3354
  %v3426 = vmax.f32 %v3205, %v3304
  %v3427 = vmax.f32 %v3206, %v3355
  %v3428 = vmax.f32 %v3207, %v3356
  %v3429 = vmax.f32 %v3208, %v3310
  %v3430 = vmax.f32 %v3209, %v3357
  %v3431 = vmax.f32 %v3210, %v3358
  %v3432 = vmax.f32 %v3211, %v3316
  %v3433 = vmax.f32 %v3212, %v3359
  %v3434 = vmax.f32 %v3213, %v3360
  %v3435 = vmax.f32 %v3214, %v3322
  %v3436 = vmax.f32 %v3215, %v3361
  %v3437 = vmax.f32 %v3216, %v3362
  %v3438 = vmax.f32 %v3217, %v3328
  %v3439 = vmax.f32 %v3218, %v3363
  %v3440 = vmax.f32 %v3219, %v3364
  %v3441 = vmax.f32 %v3220, %v3334
  %v3442 = vmax.f32 %v3221, %v3365
  %v3443 = vmax.f32 %v3222, %v3366
  %v3444 = vmax.f32 %v3223, %v3340
  %v3445 = vpack.c.bf16 %v3409, %v3406
  %v3446 = vpack.c.bf16 %v3410, %v3407
  %v3447 = vpack.c.bf16 %v3411, %v3408
  %v3448 = vpack.c.bf16 %v3415, %v3412
  %v3449 = vpack.c.bf16 %v3416, %v3413
  %v3450 = vpack.c.bf16 %v3417, %v3414
  %v3451 = vpack.c.bf16 %v3421, %v3418
  %v3452 = vpack.c.bf16 %v3422, %v3419
  %v3453 = vpack.c.bf16 %v3423, %v3420
  %v3454 = vpack.c.bf16 %v3427, %v3424
  %v3455 = vpack.c.bf16 %v3428, %v3425
  %v3456 = vpack.c.bf16 %v3429, %v3426
  %v3457 = vpack.c.bf16 %v3433, %v3430
  %v3458 = vpack.c.bf16 %v3434, %v3431
  %v3459 = vpack.c.bf16 %v3435, %v3432
  %v3460 = vpack.c.bf16 %v3439, %v3436
  %v3461 = vpack.c.bf16 %v3440, %v3437
  %v3462 = vpack.c.bf16 %v3441, %v3438
  %v3463 = vpack.c.bf16 %v3442, %v3442
  %v3464 = vpack.c.bf16 %v3443, %v3443
  %v3465 = vpack.c.bf16 %v3444, %v3444
  %v3467 = vsel %vm1110, %v3447, 0
  %v3469 = vsel %vm1110, %v3450, 0
  %v3471 = vsel %vm1110, %v3453, 0
  %v3473 = vsel %vm1110, %v3456, 0
  %v3475 = vsel %vm1110, %v3459, 0
  %v3477 = vsel %vm1110, %v3462, 0
  %v3479 = vsel %vm1110, %v3465, 0
  %v3488 = vrot.slane %v3467, 4
  %v3489 = vrot.slane 0, 4
  %v3490 = vrot.slane %v3469, 4
  %v3491 = vsel %vm2190, %v3488, %v3490
  %v3492 = vsel %vm2190, %v3489, %v3489
  %v3493 = vrot.slane %v3471, 4
  %v3494 = vsel %vm2190, %v3490, %v3493
  %v3495 = vrot.slane %v3473, 4
  %v3496 = vsel %vm2190, %v3493, %v3495
  %v3497 = vrot.slane %v3475, 4
  %v3498 = vsel %vm2190, %v3495, %v3497
  %v3499 = vrot.slane %v3477, 4
  %v3500 = vsel %vm2190, %v3497, %v3499
  %v3501 = vrot.slane %v3479, 4
  %v3502 = vsel %vm2190, %v3499, %v3501
  %v3512 = vsel %vm261, %v3463, %v3488
  %v3516 = vsel %vm261, %v3464, %v3489
  %3518 = vmatprep.subr.bf16.mxu0 0
  %3519 = vmatpush1.bf16.msra.mxu0 %v1189
  %3520 = vmatprep.subr.bf16.mxu0 0
  %3521 = vmatpush1.bf16.msra.mxu0 %v1188
  %3522 = vmatprep.subr.bf16.mxu0 0
  %3523 = vmatpush1.bf16.msra.mxu0 %v1187
  %3524 = vmatprep.subr.bf16.mxu0 0
  %3525 = vmatpush1.bf16.msra.mxu0 %v1186
  %3526 = vmatprep.subr.bf16.mxu0 0
  %3527 = vmatpush1.bf16.msra.mxu0 %v1185
  %3528 = vmatprep.subr.bf16.mxu0 0
  %3529 = vmatpush1.bf16.msra.mxu0 %v1184
  %3530 = vmatprep.subr.bf16.mxu0 0
  %3531 = vmatpush1.bf16.msra.mxu0 %v1183
  %3532 = vmatprep.subr.bf16.mxu0 0
  %3533 = vmatpush1.bf16.msra.mxu0 %v1182
  %3534 = vmatprep.subr.bf16.mxu0 0
  %3535 = vmatpush2.bf16.msra.mxu0 %v1197
  %3536 = vmatprep.subr.bf16.mxu0 0
  %3537 = vmatpush2.bf16.msra.mxu0 %v1196
  %3538 = vmatprep.subr.bf16.mxu0 0
  %3539 = vmatpush2.bf16.msra.mxu0 %v1195
  %3540 = vmatprep.subr.bf16.mxu0 0
  %3541 = vmatpush2.bf16.msra.mxu0 %v1194
  %3542 = vmatprep.subr.bf16.mxu0 0
  %3543 = vmatpush2.bf16.msra.mxu0 %v1193
  %3544 = vmatprep.subr.bf16.mxu0 0
  %3545 = vmatpush2.bf16.msra.mxu0 %v1192
  %3546 = vmatprep.subr.bf16.mxu0 0
  %3547 = vmatpush2.bf16.msra.mxu0 %v1191
  %3548 = vmatprep.subr.bf16.mxu0 0
  %3549 = vmatpush2.bf16.msra.mxu0 %v1190
  %3550 = vmatprep.mubr.bf16.mxu0 %v3446
  %3551 = vmatmul.mubr.bf16.gmra.mxu0 %v3445
  %v3552 = vpop.f32.mrf.mxu0
  %v3553 = vadd.f32 0.0, %v3552
  %v3554 = vpop.f32.mrf.mxu0
  %v3555 = vpop.f32.mrf.mxu0
  %v3556 = vadd.f32 0.0, %v3555
  %v3557 = vpop.f32.mrf.mxu0
  %3558 = vmatprep.mubr.bf16.mxu0 %v3449
  %3559 = vmatmul.mubr.bf16.gmra.mxu0 %v3448
  %v3560 = vpop.f32.mrf.mxu0
  %v3561 = vadd.f32 0.0, %v3560
  %v3562 = vpop.f32.mrf.mxu0
  %v3563 = vpop.f32.mrf.mxu0
  %v3564 = vadd.f32 0.0, %v3563
  %v3565 = vpop.f32.mrf.mxu0
  %3566 = vmatprep.mubr.bf16.mxu0 %v3452
  %3567 = vmatmul.mubr.bf16.gmra.mxu0 %v3451
  %v3568 = vpop.f32.mrf.mxu0
  %v3569 = vadd.f32 0.0, %v3568
  %v3570 = vpop.f32.mrf.mxu0
  %v3571 = vpop.f32.mrf.mxu0
  %v3572 = vadd.f32 0.0, %v3571
  %v3573 = vpop.f32.mrf.mxu0
  %3574 = vmatprep.mubr.bf16.mxu0 %v3455
  %3575 = vmatmul.mubr.bf16.gmra.mxu0 %v3454
  %v3576 = vpop.f32.mrf.mxu0
  %v3577 = vadd.f32 0.0, %v3576
  %v3578 = vpop.f32.mrf.mxu0
  %v3579 = vpop.f32.mrf.mxu0
  %v3580 = vadd.f32 0.0, %v3579
  %v3581 = vpop.f32.mrf.mxu0
  %3582 = vmatprep.mubr.bf16.mxu0 %v3458
  %3583 = vmatmul.mubr.bf16.gmra.mxu0 %v3457
  %v3584 = vpop.f32.mrf.mxu0
  %v3585 = vadd.f32 0.0, %v3584
  %v3586 = vpop.f32.mrf.mxu0
  %v3587 = vpop.f32.mrf.mxu0
  %v3588 = vadd.f32 0.0, %v3587
  %v3589 = vpop.f32.mrf.mxu0
  %3590 = vmatprep.mubr.bf16.mxu0 %v3461
  %3591 = vmatmul.mubr.bf16.gmra.mxu0 %v3460
  %v3592 = vpop.f32.mrf.mxu0
  %v3593 = vadd.f32 0.0, %v3592
  %v3594 = vpop.f32.mrf.mxu0
  %v3595 = vpop.f32.mrf.mxu0
  %v3596 = vadd.f32 0.0, %v3595
  %v3597 = vpop.f32.mrf.mxu0
  %3598 = vmatprep.mubr.bf16.mxu0 %v3516
  %3599 = vmatmul.mubr.bf16.gmra.mxu0 %v3512
  %v3600 = vpop.f32.mrf.mxu0
  %v3601 = vadd.f32 0.0, %v3600
  %v3602 = vpop.f32.mrf.mxu0
  %v3603 = vpop.f32.mrf.mxu0
  %v3604 = vadd.f32 0.0, %v3603
  %v3605 = vpop.f32.mrf.mxu0
  %3606 = vmatprep.mubr.bf16.mxu0 %v3492
  %3607 = vmatmul.mubr.bf16.gmra.mxu0 %v3491
  %v3608 = vpop.f32.mrf.mxu0
  %v3609 = vadd.f32 0.0, %v3608
  %v3610 = vpop.f32.mrf.mxu0
  %v3611 = vpop.f32.mrf.mxu0
  %v3612 = vadd.f32 0.0, %v3611
  %v3613 = vpop.f32.mrf.mxu0
  %3614 = vmatprep.mubr.bf16.mxu0 %v3492
  %3615 = vmatmul.mubr.bf16.gmra.mxu0 %v3494
  %v3616 = vpop.f32.mrf.mxu0
  %v3617 = vadd.f32 0.0, %v3616
  %v3618 = vpop.f32.mrf.mxu0
  %v3619 = vpop.f32.mrf.mxu0
  %v3620 = vadd.f32 0.0, %v3619
  %v3621 = vpop.f32.mrf.mxu0
  %3622 = vmatprep.mubr.bf16.mxu0 %v3492
  %3623 = vmatmul.mubr.bf16.gmra.mxu0 %v3496
  %v3624 = vpop.f32.mrf.mxu0
  %v3625 = vadd.f32 0.0, %v3624
  %v3626 = vpop.f32.mrf.mxu0
  %v3627 = vpop.f32.mrf.mxu0
  %v3628 = vadd.f32 0.0, %v3627
  %v3629 = vpop.f32.mrf.mxu0
  %3630 = vmatprep.mubr.bf16.mxu0 %v3492
  %3631 = vmatmul.mubr.bf16.gmra.mxu0 %v3498
  %v3632 = vpop.f32.mrf.mxu0
  %v3633 = vadd.f32 0.0, %v3632
  %v3634 = vpop.f32.mrf.mxu0
  %v3635 = vpop.f32.mrf.mxu0
  %v3636 = vadd.f32 0.0, %v3635
  %v3637 = vpop.f32.mrf.mxu0
  %3638 = vmatprep.mubr.bf16.mxu0 %v3492
  %3639 = vmatmul.mubr.bf16.gmra.mxu0 %v3500
  %v3640 = vpop.f32.mrf.mxu0
  %v3641 = vadd.f32 0.0, %v3640
  %v3642 = vpop.f32.mrf.mxu0
  %v3643 = vpop.f32.mrf.mxu0
  %v3644 = vadd.f32 0.0, %v3643
  %v3645 = vpop.f32.mrf.mxu0
  %3646 = vmatprep.mubr.bf16.mxu0 %v3492
  %3647 = vmatmul.mubr.bf16.gmra.mxu0 %v3502
  %v3648 = vpop.f32.mrf.mxu0
  %v3649 = vadd.f32 0.0, %v3648
  %v3650 = vpop.f32.mrf.mxu0
  %v3651 = vpop.f32.mrf.mxu0
  %v3652 = vadd.f32 0.0, %v3651
  %v3653 = vpop.f32.mrf.mxu0
  %3654 = vdwg.mxu0
  %v3655 = vld [vmem:[%s5] sm:$0xff]
  %v3656 = vld [vmem:[%s5 + $0x8] sm:$0xff]
  %v3657 = vld [vmem:[%s5 + $0x10] sm:$0xff]
  %v3658 = vld [vmem:[%s5 + $0x18] sm:$0xff]
  %v3659 = vld [vmem:[%s5 + $0x20] sm:$0xff]
  %v3660 = vld [vmem:[%s5 + $0x28] sm:$0xff]
  %v3661 = vld [vmem:[%s5 + $0x30] sm:$0xff]
  %v3662 = vld [vmem:[%s5 + $0x38] sm:$0xff]
  %v3663 = vld [vmem:[%s5 + $0x40] sm:$0xff]
  %v3664 = vld [vmem:[%s5 + $0x48] sm:$0xff]
  %v3665 = vld [vmem:[%s5 + $0x50] sm:$0xff]
  %v3666 = vld [vmem:[%s5 + $0x58] sm:$0xff]
  %v3667 = vld [vmem:[%s5 + $0x60] sm:$0xff]
  %v3668 = vld [vmem:[%s5 + $0x68] sm:$0xff]
  %v3669 = vld [vmem:[%s5 + $0x70] sm:$0xff]
  %v3670 = vld [vmem:[%s5 + $0x78] sm:$0xff]
  %v3671 = vld [vmem:[%s5 + $0x80] sm:$0xff]
  %v3672 = vld [vmem:[%s5 + $0x88] sm:$0xff]
  %v3673 = vld [vmem:[%s5 + $0x90] sm:$0xff]
  %v3674 = vld [vmem:[%s5 + $0x98] sm:$0xff]
  %v3675 = vld [vmem:[%s5 + $0xa0] sm:$0xff]
  %v3676 = vld [vmem:[%s5 + $0xa8] sm:$0xff]
  %v3677 = vld [vmem:[%s5 + $0xb0] sm:$0xff]
  %v3678 = vld [vmem:[%s5 + $0xb8] sm:$0xff]
  %v3679 = vld [vmem:[%s5 + $0xc0] sm:$0xff]
  %v3680 = vpack.c.bf16 %v3556, %v3553
  %v3681 = vpack.c.bf16 %v3609, %v3604
  %v3682 = vpack.c.bf16 %v3564, %v3561
  %v3683 = vpack.c.bf16 %v3617, %v3612
  %v3684 = vpack.c.bf16 %v3572, %v3569
  %v3685 = vpack.c.bf16 %v3625, %v3620
  %v3686 = vpack.c.bf16 %v3580, %v3577
  %v3687 = vpack.c.bf16 %v3633, %v3628
  %v3688 = vpack.c.bf16 %v3588, %v3585
  %v3689 = vpack.c.bf16 %v3641, %v3636
  %v3690 = vpack.c.bf16 %v3596, %v3593
  %v3691 = vpack.c.bf16 %v3649, %v3644
  %v3692 = vpack.c.bf16 %v3601, %v3601
  %v3693 = vpack.c.bf16 %v3652, %v3652
  %v3708 = vrot.slane %v3680, 4
  %v3709 = vrot.slane %v3681, 4
  %v3710 = vrot.slane %v3682, 4
  %v3711 = vsel %vm2190, %v3708, %v3710
  %v3712 = vrot.slane %v3683, 4
  %v3713 = vsel %vm2190, %v3709, %v3712
  %v3714 = vrot.slane %v3684, 4
  %v3715 = vsel %vm2190, %v3710, %v3714
  %v3716 = vrot.slane %v3685, 4
  %v3717 = vsel %vm2190, %v3712, %v3716
  %v3718 = vrot.slane %v3686, 4
  %v3719 = vsel %vm2190, %v3714, %v3718
  %v3720 = vrot.slane %v3687, 4
  %v3721 = vsel %vm2190, %v3716, %v3720
  %v3722 = vrot.slane %v3688, 4
  %v3723 = vsel %vm2190, %v3718, %v3722
  %v3724 = vrot.slane %v3689, 4
  %v3725 = vsel %vm2190, %v3720, %v3724
  %v3726 = vrot.slane %v3690, 4
  %v3727 = vsel %vm2190, %v3722, %v3726
  %v3728 = vrot.slane %v3691, 4
  %v3729 = vsel %vm2190, %v3724, %v3728
  %v3730 = vrot.slane %v3692, 4
  %v3731 = vsel %vm2190, %v3726, %v3730
  %v3732 = vrot.slane %v3693, 4
  %v3733 = vsel %vm2190, %v3728, %v3732
  %3734 = vrot.lane.b32.xlu0 %v3708, 127
  %v3735 = vpop.permute.xlu0 %3734
  %3736 = vrot.lane.b32.xlu0 %v3709, 127
  %v3737 = vpop.permute.xlu0 %3736
  %3738 = vrot.lane.b32.xlu0 %v3711, 127
  %v3739 = vpop.permute.xlu0 %3738
  %3740 = vrot.lane.b32.xlu0 %v3713, 127
  %v3741 = vpop.permute.xlu0 %3740
  %3742 = vrot.lane.b32.xlu0 %v3715, 127
  %v3743 = vpop.permute.xlu0 %3742
  %3744 = vrot.lane.b32.xlu0 %v3717, 127
  %v3745 = vpop.permute.xlu0 %3744
  %3746 = vrot.lane.b32.xlu0 %v3719, 127
  %v3747 = vpop.permute.xlu0 %3746
  %3748 = vrot.lane.b32.xlu0 %v3721, 127
  %v3749 = vpop.permute.xlu0 %3748
  %3750 = vrot.lane.b32.xlu0 %v3723, 127
  %v3751 = vpop.permute.xlu0 %3750
  %3752 = vrot.lane.b32.xlu0 %v3725, 127
  %v3753 = vpop.permute.xlu0 %3752
  %3754 = vrot.lane.b32.xlu0 %v3727, 127
  %v3755 = vpop.permute.xlu0 %3754
  %3756 = vrot.lane.b32.xlu0 %v3729, 127
  %v3757 = vpop.permute.xlu0 %3756
  %3758 = vrot.lane.b32.xlu0 %v3731, 127
  %v3759 = vpop.permute.xlu0 %3758
  %3760 = vrot.lane.b32.xlu0 %v3733, 127
  %v3761 = vpop.permute.xlu0 %3760
  %v3762 = vsel %vm141, %v3735, %v3737
  %v3763 = vsel %vm141, %v3739, %v3741
  %v3764 = vsel %vm141, %v3743, %v3745
  %v3765 = vsel %vm141, %v3747, %v3749
  %v3766 = vsel %vm141, %v3751, %v3753
  %v3767 = vsel %vm141, %v3755, %v3757
  %v3768 = vsel %vm141, %v3759, %v3761
  %3781 = vrot.lane.b32.xlu0 %v3680, 126
  %v3782 = vpop.permute.xlu0 %3781
  %3783 = vrot.lane.b32.xlu0 %v3681, 126
  %v3784 = vpop.permute.xlu0 %3783
  %3785 = vrot.lane.b32.xlu0 %v3682, 126
  %v3786 = vpop.permute.xlu0 %3785
  %3787 = vrot.lane.b32.xlu0 %v3683, 126
  %v3788 = vpop.permute.xlu0 %3787
  %3789 = vrot.lane.b32.xlu0 %v3684, 126
  %v3790 = vpop.permute.xlu0 %3789
  %3791 = vrot.lane.b32.xlu0 %v3685, 126
  %v3792 = vpop.permute.xlu0 %3791
  %3793 = vrot.lane.b32.xlu0 %v3686, 126
  %v3794 = vpop.permute.xlu0 %3793
  %3795 = vrot.lane.b32.xlu0 %v3687, 126
  %v3796 = vpop.permute.xlu0 %3795
  %3797 = vrot.lane.b32.xlu0 %v3688, 126
  %v3798 = vpop.permute.xlu0 %3797
  %3799 = vrot.lane.b32.xlu0 %v3689, 126
  %v3800 = vpop.permute.xlu0 %3799
  %3801 = vrot.lane.b32.xlu0 %v3690, 126
  %v3802 = vpop.permute.xlu0 %3801
  %3803 = vrot.lane.b32.xlu0 %v3691, 126
  %v3804 = vpop.permute.xlu0 %3803
  %3805 = vrot.lane.b32.xlu0 %v3692, 126
  %v3806 = vpop.permute.xlu0 %3805
  %3807 = vrot.lane.b32.xlu0 %v3693, 126
  %v3808 = vpop.permute.xlu0 %3807
  %v3809 = vsel %vm177, %v3782, %v3784
  %v3810 = vsel %vm177, %v3786, %v3788
  %v3811 = vsel %vm177, %v3790, %v3792
  %v3812 = vsel %vm177, %v3794, %v3796
  %v3813 = vsel %vm177, %v3798, %v3800
  %v3814 = vsel %vm177, %v3802, %v3804
  %v3815 = vsel %vm177, %v3806, %v3808
  %3828 = vrot.lane.b32.xlu0 %v3708, 125
  %v3829 = vpop.permute.xlu0 %3828
  %3830 = vrot.lane.b32.xlu0 %v3709, 125
  %v3831 = vpop.permute.xlu0 %3830
  %3832 = vrot.lane.b32.xlu0 %v3711, 125
  %v3833 = vpop.permute.xlu0 %3832
  %3834 = vrot.lane.b32.xlu0 %v3713, 125
  %v3835 = vpop.permute.xlu0 %3834
  %3836 = vrot.lane.b32.xlu0 %v3715, 125
  %v3837 = vpop.permute.xlu0 %3836
  %3838 = vrot.lane.b32.xlu0 %v3717, 125
  %v3839 = vpop.permute.xlu0 %3838
  %3840 = vrot.lane.b32.xlu0 %v3719, 125
  %v3841 = vpop.permute.xlu0 %3840
  %3842 = vrot.lane.b32.xlu0 %v3721, 125
  %v3843 = vpop.permute.xlu0 %3842
  %3844 = vrot.lane.b32.xlu0 %v3723, 125
  %v3845 = vpop.permute.xlu0 %3844
  %3846 = vrot.lane.b32.xlu0 %v3725, 125
  %v3847 = vpop.permute.xlu0 %3846
  %3848 = vrot.lane.b32.xlu0 %v3727, 125
  %v3849 = vpop.permute.xlu0 %3848
  %3850 = vrot.lane.b32.xlu0 %v3729, 125
  %v3851 = vpop.permute.xlu0 %3850
  %3852 = vrot.lane.b32.xlu0 %v3731, 125
  %v3853 = vpop.permute.xlu0 %3852
  %3854 = vrot.lane.b32.xlu0 %v3733, 125
  %v3855 = vpop.permute.xlu0 %3854
  %v3856 = vsel %vm213, %v3829, %v3831
  %v3857 = vsel %vm213, %v3833, %v3835
  %v3858 = vsel %vm213, %v3837, %v3839
  %v3859 = vsel %vm213, %v3841, %v3843
  %v3860 = vsel %vm213, %v3845, %v3847
  %v3861 = vsel %vm213, %v3849, %v3851
  %v3862 = vsel %vm213, %v3853, %v3855
  %3875 = vrot.lane.b32.xlu0 %v3680, 124
  %v3876 = vpop.permute.xlu0 %3875
  %3877 = vrot.lane.b32.xlu0 %v3681, 124
  %v3878 = vpop.permute.xlu0 %3877
  %3879 = vrot.lane.b32.xlu0 %v3682, 124
  %v3880 = vpop.permute.xlu0 %3879
  %3881 = vrot.lane.b32.xlu0 %v3683, 124
  %v3882 = vpop.permute.xlu0 %3881
  %3883 = vrot.lane.b32.xlu0 %v3684, 124
  %v3884 = vpop.permute.xlu0 %3883
  %3885 = vrot.lane.b32.xlu0 %v3685, 124
  %v3886 = vpop.permute.xlu0 %3885
  %3887 = vrot.lane.b32.xlu0 %v3686, 124
  %v3888 = vpop.permute.xlu0 %3887
  %3889 = vrot.lane.b32.xlu0 %v3687, 124
  %v3890 = vpop.permute.xlu0 %3889
  %3891 = vrot.lane.b32.xlu0 %v3688, 124
  %v3892 = vpop.permute.xlu0 %3891
  %3893 = vrot.lane.b32.xlu0 %v3689, 124
  %v3894 = vpop.permute.xlu0 %3893
  %3895 = vrot.lane.b32.xlu0 %v3690, 124
  %v3896 = vpop.permute.xlu0 %3895
  %3897 = vrot.lane.b32.xlu0 %v3691, 124
  %v3898 = vpop.permute.xlu0 %3897
  %3899 = vrot.lane.b32.xlu0 %v3692, 124
  %v3900 = vpop.permute.xlu0 %3899
  %3901 = vrot.lane.b32.xlu0 %v3693, 124
  %v3902 = vpop.permute.xlu0 %3901
  %v3903 = vsel %vm249, %v3876, %v3878
  %v3904 = vsel %vm249, %v3880, %v3882
  %v3905 = vsel %vm249, %v3884, %v3886
  %v3906 = vsel %vm249, %v3888, %v3890
  %v3907 = vsel %vm249, %v3892, %v3894
  %v3908 = vsel %vm249, %v3896, %v3898
  %v3909 = vsel %vm249, %v3900, %v3902
  %v3924 = vsel %vm261, %v3692, %v3762
  %v3928 = vsel %vm261, %v3693, %v3737
  %v3932 = vsel %vm261, %v3815, %v3856
  %v3936 = vsel %vm261, %v3808, %v3831
  %v3938 = vld [vmem:[%s4] sm:$0xff]
  %v3939 = vld [vmem:[%s4 + $0x8] sm:$0xff]
  %v3940 = vld [vmem:[%s4 + $0x10] sm:$0xf]
  %v3941 = vld [vmem:[%s4 + $0x14] sm:$0xff]
  %v3942 = vld [vmem:[%s4 + $0x1c] sm:$0xff]
  %v3943 = vld [vmem:[%s4 + $0x24] sm:$0xf]
  %v3944 = vld [vmem:[%s4 + $0x28] sm:$0xff]
  %v3945 = vld [vmem:[%s4 + $0x30] sm:$0xff]
  %v3946 = vld [vmem:[%s4 + $0x38] sm:$0xf]
  %v3947 = vld [vmem:[%s4 + $0x3c] sm:$0xff]
  %v3948 = vld [vmem:[%s4 + $0x44] sm:$0xff]
  %v3949 = vld [vmem:[%s4 + $0x4c] sm:$0xf]
  %v3950 = vld [vmem:[%s4 + $0x50] sm:$0xff]
  %v3951 = vld [vmem:[%s4 + $0x58] sm:$0xff]
  %v3952 = vld [vmem:[%s4 + $0x60] sm:$0xf]
  %v3953 = vld [vmem:[%s4 + $0x64] sm:$0xff]
  %v3954 = vld [vmem:[%s4 + $0x6c] sm:$0xff]
  %v3955 = vld [vmem:[%s4 + $0x74] sm:$0xf]
  %v3956 = vld [vmem:[%s4 + $0x78] sm:$0xff]
  %v3957 = vld [vmem:[%s4 + $0x80] sm:$0xff]
  %v3958 = vld [vmem:[%s4 + $0x88] sm:$0xf]
  %v3959 = vld [vmem:[%s4 + $0x8c] sm:$0xff]
  %v3960 = vld [vmem:[%s4 + $0x94] sm:$0xff]
  %v3961 = vld [vmem:[%s4 + $0x9c] sm:$0xf]
  %v3962 = vld [vmem:[%s4 + $0xa0] sm:$0xff]
  %v3963 = vld [vmem:[%s4 + $0xa8] sm:$0xff]
  %v3964 = vld [vmem:[%s4 + $0xb0] sm:$0xf]
  %v3965 = vld [vmem:[%s4 + $0xb4] sm:$0xff]
  %v3966 = vld [vmem:[%s4 + $0xbc] sm:$0xff]
  %v3967 = vld [vmem:[%s4 + $0xc4] sm:$0xf]
  %v3968 = vld [vmem:[%s4 + $0xc8] sm:$0xff]
  %v3969 = vld [vmem:[%s4 + $0xd0] sm:$0xff]
  %v3970 = vld [vmem:[%s4 + $0xd8] sm:$0xf]
  %v3971 = vld [vmem:[%s4 + $0xdc] sm:$0xff]
  %v3972 = vld [vmem:[%s4 + $0xe4] sm:$0xff]
  %v3973 = vld [vmem:[%s4 + $0xec] sm:$0xf]
  %v3974 = vld [vmem:[%s4 + $0xf0] sm:$0xff]
  %v3975 = vld [vmem:[%s4 + $0xf8] sm:$0xff]
  %v3976 = vld [vmem:[%s4 + $0x100] sm:$0xf]
  %v3977 = vld [vmem:[%s4 + $0x104] sm:$0xff]
  %v3978 = vld [vmem:[%s4 + $0x10c] sm:$0xff]
  %v3979 = vld [vmem:[%s4 + $0x114] sm:$0xf]
  %v3980 = vld [vmem:[%s4 + $0x118] sm:$0xff]
  %v3981 = vld [vmem:[%s4 + $0x120] sm:$0xff]
  %v3982 = vld [vmem:[%s4 + $0x128] sm:$0xf]
  %v3983 = vld [vmem:[%s4 + $0x12c] sm:$0xff]
  %v3984 = vld [vmem:[%s4 + $0x134] sm:$0xff]
  %v3985 = vld [vmem:[%s4 + $0x13c] sm:$0xf]
  %v3986 = vld [vmem:[%s4 + $0x140] sm:$0xff]
  %v3987 = vld [vmem:[%s4 + $0x148] sm:$0xff]
  %v3988 = vld [vmem:[%s4 + $0x150] sm:$0xf]
  %v3989 = vld [vmem:[%s4 + $0x154] sm:$0xff]
  %v3990 = vld [vmem:[%s4 + $0x15c] sm:$0xff]
  %v3991 = vld [vmem:[%s4 + $0x164] sm:$0xf]
  %v3992 = vld [vmem:[%s4 + $0x168] sm:$0xff]
  %v3993 = vld [vmem:[%s4 + $0x170] sm:$0xff]
  %v3994 = vld [vmem:[%s4 + $0x178] sm:$0xf]
  %v3995 = vld [vmem:[%s4 + $0x17c] sm:$0xff]
  %v3996 = vld [vmem:[%s4 + $0x184] sm:$0xff]
  %v3997 = vld [vmem:[%s4 + $0x18c] sm:$0xf]
  %v3998 = vld [vmem:[%s4 + $0x190] sm:$0xff]
  %v3999 = vld [vmem:[%s4 + $0x198] sm:$0xff]
  %v4000 = vld [vmem:[%s4 + $0x1a0] sm:$0xf]
  %v4001 = vld [vmem:[%s4 + $0x1a4] sm:$0xff]
  %v4002 = vld [vmem:[%s4 + $0x1ac] sm:$0xff]
  %v4003 = vld [vmem:[%s4 + $0x1b4] sm:$0xf]
  %v4004 = vld [vmem:[%s4 + $0x1b8] sm:$0xff]
  %v4005 = vld [vmem:[%s4 + $0x1c0] sm:$0xff]
  %v4006 = vld [vmem:[%s4 + $0x1c8] sm:$0xf]
  %v4007 = vld [vmem:[%s4 + $0x1cc] sm:$0xff]
  %v4008 = vld [vmem:[%s4 + $0x1d4] sm:$0xff]
  %v4009 = vld [vmem:[%s4 + $0x1dc] sm:$0xf]
  %v4010 = vld [vmem:[%s4 + $0x1e0] sm:$0xff]
  %v4011 = vld [vmem:[%s4 + $0x1e8] sm:$0xff]
  %v4012 = vld [vmem:[%s4 + $0x1f0] sm:$0xf]
  %4014 = vset.pattern.permute.xlu0 3
  %4015 = vperm.xlu0 %4014, %v3655
  %v4016 = vpop.permute.xlu0 %4015
  %4019 = vset.pattern.permute.xlu0 3
  %4020 = vperm.xlu0 %4019, %v3656
  %v4021 = vpop.permute.xlu0 %4020
  %4024 = vset.pattern.permute.xlu0 3
  %4025 = vperm.xlu0 %4024, %v3657
  %v4026 = vpop.permute.xlu0 %4025
  %4029 = vset.pattern.permute.xlu0 3
  %4030 = vperm.xlu0 %4029, %v3658
  %v4031 = vpop.permute.xlu0 %4030
  %4034 = vset.pattern.permute.xlu0 3
  %4035 = vperm.xlu0 %4034, %v3659
  %v4036 = vpop.permute.xlu0 %4035
  %4039 = vset.pattern.permute.xlu0 3
  %4040 = vperm.xlu0 %4039, %v3660
  %v4041 = vpop.permute.xlu0 %4040
  %4044 = vset.pattern.permute.xlu0 3
  %4045 = vperm.xlu0 %4044, %v3661
  %v4046 = vpop.permute.xlu0 %4045
  %4049 = vset.pattern.permute.xlu0 3
  %4050 = vperm.xlu0 %4049, %v3662
  %v4051 = vpop.permute.xlu0 %4050
  %4054 = vset.pattern.permute.xlu0 3
  %4055 = vperm.xlu0 %4054, %v3663
  %v4056 = vpop.permute.xlu0 %4055
  %4059 = vset.pattern.permute.xlu0 3
  %4060 = vperm.xlu0 %4059, %v3664
  %v4061 = vpop.permute.xlu0 %4060
  %4064 = vset.pattern.permute.xlu0 3
  %4065 = vperm.xlu0 %4064, %v3665
  %v4066 = vpop.permute.xlu0 %4065
  %4069 = vset.pattern.permute.xlu0 3
  %4070 = vperm.xlu0 %4069, %v3666
  %v4071 = vpop.permute.xlu0 %4070
  %4074 = vset.pattern.permute.xlu0 3
  %4075 = vperm.xlu0 %4074, %v3667
  %v4076 = vpop.permute.xlu0 %4075
  %4079 = vset.pattern.permute.xlu0 3
  %4080 = vperm.xlu0 %4079, %v3668
  %v4081 = vpop.permute.xlu0 %4080
  %4084 = vset.pattern.permute.xlu0 3
  %4085 = vperm.xlu0 %4084, %v3669
  %v4086 = vpop.permute.xlu0 %4085
  %4089 = vset.pattern.permute.xlu0 3
  %4090 = vperm.xlu0 %4089, %v3670
  %v4091 = vpop.permute.xlu0 %4090
  %4094 = vset.pattern.permute.xlu0 3
  %4095 = vperm.xlu0 %4094, %v3671
  %v4096 = vpop.permute.xlu0 %4095
  %4099 = vset.pattern.permute.xlu0 3
  %4100 = vperm.xlu0 %4099, %v3672
  %v4101 = vpop.permute.xlu0 %4100
  %4104 = vset.pattern.permute.xlu0 3
  %4105 = vperm.xlu0 %4104, %v3673
  %v4106 = vpop.permute.xlu0 %4105
  %4109 = vset.pattern.permute.xlu0 3
  %4110 = vperm.xlu0 %4109, %v3674
  %v4111 = vpop.permute.xlu0 %4110
  %4114 = vset.pattern.permute.xlu0 3
  %4115 = vperm.xlu0 %4114, %v3675
  %v4116 = vpop.permute.xlu0 %4115
  %4119 = vset.pattern.permute.xlu0 3
  %4120 = vperm.xlu0 %4119, %v3676
  %v4121 = vpop.permute.xlu0 %4120
  %4124 = vset.pattern.permute.xlu0 3
  %4125 = vperm.xlu0 %4124, %v3677
  %v4126 = vpop.permute.xlu0 %4125
  %4129 = vset.pattern.permute.xlu0 3
  %4130 = vperm.xlu0 %4129, %v3678
  %v4131 = vpop.permute.xlu0 %4130
  %4134 = vset.pattern.permute.xlu0 3
  %4135 = vperm.xlu0 %4134, %v3679
  %v4136 = vpop.permute.xlu0 %4135
  %v4213 = vunpack.c.l.b16 %v3938
  %v4214 = vunpack.c.h.b16 %v3938
  %v4215 = vunpack.c.l.b16 %v3939
  %v4216 = vunpack.c.h.b16 %v3939
  %v4217 = vunpack.c.l.b16 %v3940
  %v4218 = vunpack.c.l.b16 %v3941
  %v4219 = vunpack.c.h.b16 %v3941
  %v4220 = vunpack.c.l.b16 %v3942
  %v4221 = vunpack.c.h.b16 %v3942
  %v4222 = vunpack.c.l.b16 %v3943
  %v4223 = vunpack.c.l.b16 %v3944
  %v4224 = vunpack.c.h.b16 %v3944
  %v4225 = vunpack.c.l.b16 %v3945
  %v4226 = vunpack.c.h.b16 %v3945
  %v4227 = vunpack.c.l.b16 %v3946
  %v4228 = vunpack.c.l.b16 %v3947
  %v4229 = vunpack.c.h.b16 %v3947
  %v4230 = vunpack.c.l.b16 %v3948
  %v4231 = vunpack.c.h.b16 %v3948
  %v4232 = vunpack.c.l.b16 %v3949
  %v4233 = vunpack.c.l.b16 %v3950
  %v4234 = vunpack.c.h.b16 %v3950
  %v4235 = vunpack.c.l.b16 %v3951
  %v4236 = vunpack.c.h.b16 %v3951
  %v4237 = vunpack.c.l.b16 %v3952
  %v4238 = vunpack.c.l.b16 %v3953
  %v4239 = vunpack.c.h.b16 %v3953
  %v4240 = vunpack.c.l.b16 %v3954
  %v4241 = vunpack.c.h.b16 %v3954
  %v4242 = vunpack.c.l.b16 %v3955
  %v4243 = vunpack.c.l.b16 %v3956
  %v4244 = vunpack.c.h.b16 %v3956
  %v4245 = vunpack.c.l.b16 %v3957
  %v4246 = vunpack.c.h.b16 %v3957
  %v4247 = vunpack.c.l.b16 %v3958
  %v4248 = vunpack.c.l.b16 %v3959
  %v4249 = vunpack.c.h.b16 %v3959
  %v4250 = vunpack.c.l.b16 %v3960
  %v4251 = vunpack.c.h.b16 %v3960
  %v4252 = vunpack.c.l.b16 %v3961
  %v4253 = vunpack.c.l.b16 %v3962
  %v4254 = vunpack.c.h.b16 %v3962
  %v4255 = vunpack.c.l.b16 %v3963
  %v4256 = vunpack.c.h.b16 %v3963
  %v4257 = vunpack.c.l.b16 %v3964
  %v4258 = vunpack.c.l.b16 %v3965
  %v4259 = vunpack.c.h.b16 %v3965
  %v4260 = vunpack.c.l.b16 %v3966
  %v4261 = vunpack.c.h.b16 %v3966
  %v4262 = vunpack.c.l.b16 %v3967
  %v4263 = vunpack.c.l.b16 %v3968
  %v4264 = vunpack.c.h.b16 %v3968
  %v4265 = vunpack.c.l.b16 %v3969
  %v4266 = vunpack.c.h.b16 %v3969
  %v4267 = vunpack.c.l.b16 %v3970
  %v4268 = vunpack.c.l.b16 %v3971
  %v4269 = vunpack.c.h.b16 %v3971
  %v4270 = vunpack.c.l.b16 %v3972
  %v4271 = vunpack.c.h.b16 %v3972
  %v4272 = vunpack.c.l.b16 %v3973
  %v4273 = vunpack.c.l.b16 %v3974
  %v4274 = vunpack.c.h.b16 %v3974
  %v4275 = vunpack.c.l.b16 %v3975
  %v4276 = vunpack.c.h.b16 %v3975
  %v4277 = vunpack.c.l.b16 %v3976
  %v4278 = vunpack.c.l.b16 %v3977
  %v4279 = vunpack.c.h.b16 %v3977
  %v4280 = vunpack.c.l.b16 %v3978
  %v4281 = vunpack.c.h.b16 %v3978
  %v4282 = vunpack.c.l.b16 %v3979
  %v4283 = vunpack.c.l.b16 %v3980
  %v4284 = vunpack.c.h.b16 %v3980
  %v4285 = vunpack.c.l.b16 %v3981
  %v4286 = vunpack.c.h.b16 %v3981
  %v4287 = vunpack.c.l.b16 %v3982
  %v4288 = vunpack.c.l.b16 %v3983
  %v4289 = vunpack.c.h.b16 %v3983
  %v4290 = vunpack.c.l.b16 %v3984
  %v4291 = vunpack.c.h.b16 %v3984
  %v4292 = vunpack.c.l.b16 %v3985
  %v4293 = vunpack.c.l.b16 %v3986
  %v4294 = vunpack.c.h.b16 %v3986
  %v4295 = vunpack.c.l.b16 %v3987
  %v4296 = vunpack.c.h.b16 %v3987
  %v4297 = vunpack.c.l.b16 %v3988
  %v4298 = vunpack.c.l.b16 %v3989
  %v4299 = vunpack.c.h.b16 %v3989
  %v4300 = vunpack.c.l.b16 %v3990
  %v4301 = vunpack.c.h.b16 %v3990
  %v4302 = vunpack.c.l.b16 %v3991
  %v4303 = vunpack.c.l.b16 %v3992
  %v4304 = vunpack.c.h.b16 %v3992
  %v4305 = vunpack.c.l.b16 %v3993
  %v4306 = vunpack.c.h.b16 %v3993
  %v4307 = vunpack.c.l.b16 %v3994
  %v4308 = vunpack.c.l.b16 %v3995
  %v4309 = vunpack.c.h.b16 %v3995
  %v4310 = vunpack.c.l.b16 %v3996
  %v4311 = vunpack.c.h.b16 %v3996
  %v4312 = vunpack.c.l.b16 %v3997
  %v4313 = vunpack.c.l.b16 %v3998
  %v4314 = vunpack.c.h.b16 %v3998
  %v4315 = vunpack.c.l.b16 %v3999
  %v4316 = vunpack.c.h.b16 %v3999
  %v4317 = vunpack.c.l.b16 %v4000
  %v4318 = vunpack.c.l.b16 %v4001
  %v4319 = vunpack.c.h.b16 %v4001
  %v4320 = vunpack.c.l.b16 %v4002
  %v4321 = vunpack.c.h.b16 %v4002
  %v4322 = vunpack.c.l.b16 %v4003
  %v4323 = vunpack.c.l.b16 %v4004
  %v4324 = vunpack.c.h.b16 %v4004
  %v4325 = vunpack.c.l.b16 %v4005
  %v4326 = vunpack.c.h.b16 %v4005
  %v4327 = vunpack.c.l.b16 %v4006
  %v4328 = vunpack.c.l.b16 %v4007
  %v4329 = vunpack.c.h.b16 %v4007
  %v4330 = vunpack.c.l.b16 %v4008
  %v4331 = vunpack.c.h.b16 %v4008
  %v4332 = vunpack.c.l.b16 %v4009
  %v4333 = vunpack.c.l.b16 %v4010
  %v4334 = vunpack.c.h.b16 %v4010
  %v4335 = vunpack.c.l.b16 %v4011
  %v4336 = vunpack.c.h.b16 %v4011
  %v4337 = vunpack.c.l.b16 %v4012
  %v4338 = vpack.c.b16 %v4218, %v4213
  %v4339 = vpack.c.b16 %v4219, %v4214
  %v4340 = vpack.c.b16 %v4220, %v4215
  %v4341 = vpack.c.b16 %v4221, %v4216
  %v4342 = vpack.c.b16 %v4222, %v4217
  %v4343 = vpack.c.b16 %v4228, %v4223
  %v4344 = vpack.c.b16 %v4229, %v4224
  %v4345 = vpack.c.b16 %v4230, %v4225
  %v4346 = vpack.c.b16 %v4231, %v4226
  %v4347 = vpack.c.b16 %v4232, %v4227
  %v4348 = vpack.c.b16 %v4238, %v4233
  %v4349 = vpack.c.b16 %v4239, %v4234
  %v4350 = vpack.c.b16 %v4240, %v4235
  %v4351 = vpack.c.b16 %v4241, %v4236
  %v4352 = vpack.c.b16 %v4242, %v4237
  %v4353 = vpack.c.b16 %v4248, %v4243
  %v4354 = vpack.c.b16 %v4249, %v4244
  %v4355 = vpack.c.b16 %v4250, %v4245
  %v4356 = vpack.c.b16 %v4251, %v4246
  %v4357 = vpack.c.b16 %v4252, %v4247
  %v4358 = vpack.c.b16 %v4258, %v4253
  %v4359 = vpack.c.b16 %v4259, %v4254
  %v4360 = vpack.c.b16 %v4260, %v4255
  %v4361 = vpack.c.b16 %v4261, %v4256
  %v4362 = vpack.c.b16 %v4262, %v4257
  %v4363 = vpack.c.b16 %v4268, %v4263
  %v4364 = vpack.c.b16 %v4269, %v4264
  %v4365 = vpack.c.b16 %v4270, %v4265
  %v4366 = vpack.c.b16 %v4271, %v4266
  %v4367 = vpack.c.b16 %v4272, %v4267
  %v4368 = vpack.c.b16 %v4278, %v4273
  %v4369 = vpack.c.b16 %v4279, %v4274
  %v4370 = vpack.c.b16 %v4280, %v4275
  %v4371 = vpack.c.b16 %v4281, %v4276
  %v4372 = vpack.c.b16 %v4282, %v4277
  %v4373 = vpack.c.b16 %v4288, %v4283
  %v4374 = vpack.c.b16 %v4289, %v4284
  %v4375 = vpack.c.b16 %v4290, %v4285
  %v4376 = vpack.c.b16 %v4291, %v4286
  %v4377 = vpack.c.b16 %v4292, %v4287
  %v4378 = vpack.c.b16 %v4298, %v4293
  %v4379 = vpack.c.b16 %v4299, %v4294
  %v4380 = vpack.c.b16 %v4300, %v4295
  %v4381 = vpack.c.b16 %v4301, %v4296
  %v4382 = vpack.c.b16 %v4302, %v4297
  %v4383 = vpack.c.b16 %v4308, %v4303
  %v4384 = vpack.c.b16 %v4309, %v4304
  %v4385 = vpack.c.b16 %v4310, %v4305
  %v4386 = vpack.c.b16 %v4311, %v4306
  %v4387 = vpack.c.b16 %v4312, %v4307
  %v4388 = vpack.c.b16 %v4318, %v4313
  %v4389 = vpack.c.b16 %v4319, %v4314
  %v4390 = vpack.c.b16 %v4320, %v4315
  %v4391 = vpack.c.b16 %v4321, %v4316
  %v4392 = vpack.c.b16 %v4322, %v4317
  %v4393 = vpack.c.b16 %v4328, %v4323
  %v4394 = vpack.c.b16 %v4329, %v4324
  %v4395 = vpack.c.b16 %v4330, %v4325
  %v4396 = vpack.c.b16 %v4331, %v4326
  %v4397 = vpack.c.b16 %v4332, %v4327
  %v4398 = vpack.c.b16 %v4333, %v4333
  %v4399 = vpack.c.b16 %v4334, %v4334
  %v4400 = vpack.c.b16 %v4335, %v4335
  %v4401 = vpack.c.b16 %v4336, %v4336
  %v4402 = vpack.c.b16 %v4337, %v4337
  %vm4455 = vcmask 64512
  %v4457 = vsel %vm4455, %v4342, 0
  %v4460 = vsel %vm4455, %v4347, 0
  %v4463 = vsel %vm4455, %v4352, 0
  %v4466 = vsel %vm4455, %v4357, 0
  %v4469 = vsel %vm4455, %v4362, 0
  %v4472 = vsel %vm4455, %v4367, 0
  %v4475 = vsel %vm4455, %v4372, 0
  %v4478 = vsel %vm4455, %v4377, 0
  %v4481 = vsel %vm4455, %v4382, 0
  %v4484 = vsel %vm4455, %v4387, 0
  %v4487 = vsel %vm4455, %v4392, 0
  %v4490 = vsel %vm4455, %v4397, 0
  %v4493 = vsel %vm4455, %v4402, 0
  %v4496 = vsel %vm261, %v3909, 0
  %v4499 = vsel %vm261, %v3902, 0
  %4501 = vmatprep.subr.bf16.mxu0 %v3741
  %4502 = vmatpush1.bf16.msra.mxu0 %v3763
  %4503 = vmatprep.subr.bf16.mxu0 %v3928
  %4504 = vmatpush1.bf16.msra.mxu0 %v3924
  %4505 = vmatprep.subr.bf16.mxu0 %v3691
  %4506 = vmatpush1.bf16.msra.mxu0 %v3690
  %4507 = vmatprep.subr.bf16.mxu0 %v3689
  %4508 = vmatpush1.bf16.msra.mxu0 %v3688
  %4509 = vmatprep.subr.bf16.mxu0 %v3687
  %4510 = vmatpush1.bf16.msra.mxu0 %v3686
  %4511 = vmatprep.subr.bf16.mxu0 %v3685
  %4512 = vmatpush1.bf16.msra.mxu0 %v3684
  %4513 = vmatprep.subr.bf16.mxu0 %v3683
  %4514 = vmatpush1.bf16.msra.mxu0 %v3682
  %4515 = vmatprep.subr.bf16.mxu0 %v3681
  %4516 = vmatpush1.bf16.msra.mxu0 %v3680
  %4517 = vmatprep.subr.bf16.mxu0 %v3792
  %4518 = vmatpush2.bf16.msra.mxu0 %v3811
  %4519 = vmatprep.subr.bf16.mxu0 %v3788
  %4520 = vmatpush2.bf16.msra.mxu0 %v3810
  %4521 = vmatprep.subr.bf16.mxu0 %v3784
  %4522 = vmatpush2.bf16.msra.mxu0 %v3809
  %4523 = vmatprep.subr.bf16.mxu0 %v3761
  %4524 = vmatpush2.bf16.msra.mxu0 %v3768
  %4525 = vmatprep.subr.bf16.mxu0 %v3757
  %4526 = vmatpush2.bf16.msra.mxu0 %v3767
  %4527 = vmatprep.subr.bf16.mxu0 %v3753
  %4528 = vmatpush2.bf16.msra.mxu0 %v3766
  %4529 = vmatprep.subr.bf16.mxu0 %v3749
  %4530 = vmatpush2.bf16.msra.mxu0 %v3765
  %4531 = vmatprep.subr.bf16.mxu0 %v3745
  %4532 = vmatpush2.bf16.msra.mxu0 %v3764
  %4533 = vmatprep.mubr.bf16.mxu0 %v4339
  %4534 = vmatmul.mubr.bf16.gmra.mxu0 %v4338
  %v4535 = vpop.f32.mrf.mxu0
  %v4536 = vadd.f32 %v4016, %v4535
  %v4537 = vpop.f32.mrf.mxu0
  %v4538 = vadd.f32 %v4016, %v4537
  %v4539 = vpop.f32.mrf.mxu0
  %v4540 = vadd.f32 %v4021, %v4539
  %v4541 = vpop.f32.mrf.mxu0
  %v4542 = vadd.f32 %v4021, %v4541
  %4543 = vmatprep.mubr.bf16.mxu0 %v4344
  %4544 = vmatmul.mubr.bf16.gmra.mxu0 %v4343
  %v4545 = vpop.f32.mrf.mxu0
  %v4546 = vadd.f32 %v4026, %v4545
  %v4547 = vpop.f32.mrf.mxu0
  %v4548 = vadd.f32 %v4026, %v4547
  %v4549 = vpop.f32.mrf.mxu0
  %v4550 = vadd.f32 %v4031, %v4549
  %v4551 = vpop.f32.mrf.mxu0
  %v4552 = vadd.f32 %v4031, %v4551
  %4553 = vmatprep.mubr.bf16.mxu0 %v4349
  %4554 = vmatmul.mubr.bf16.gmra.mxu0 %v4348
  %v4555 = vpop.f32.mrf.mxu0
  %v4556 = vadd.f32 %v4036, %v4555
  %v4557 = vpop.f32.mrf.mxu0
  %v4558 = vadd.f32 %v4036, %v4557
  %v4559 = vpop.f32.mrf.mxu0
  %v4560 = vadd.f32 %v4041, %v4559
  %v4561 = vpop.f32.mrf.mxu0
  %v4562 = vadd.f32 %v4041, %v4561
  %4563 = vmatprep.mubr.bf16.mxu0 %v4354
  %4564 = vmatmul.mubr.bf16.gmra.mxu0 %v4353
  %v4565 = vpop.f32.mrf.mxu0
  %v4566 = vadd.f32 %v4046, %v4565
  %v4567 = vpop.f32.mrf.mxu0
  %v4568 = vadd.f32 %v4046, %v4567
  %v4569 = vpop.f32.mrf.mxu0
  %v4570 = vadd.f32 %v4051, %v4569
  %v4571 = vpop.f32.mrf.mxu0
  %v4572 = vadd.f32 %v4051, %v4571
  %4573 = vmatprep.mubr.bf16.mxu0 %v4359
  %4574 = vmatmul.mubr.bf16.gmra.mxu0 %v4358
  %v4575 = vpop.f32.mrf.mxu0
  %v4576 = vadd.f32 %v4056, %v4575
  %v4577 = vpop.f32.mrf.mxu0
  %v4578 = vadd.f32 %v4056, %v4577
  %v4579 = vpop.f32.mrf.mxu0
  %v4580 = vadd.f32 %v4061, %v4579
  %v4581 = vpop.f32.mrf.mxu0
  %v4582 = vadd.f32 %v4061, %v4581
  %4583 = vmatprep.mubr.bf16.mxu0 %v4364
  %4584 = vmatmul.mubr.bf16.gmra.mxu0 %v4363
  %v4585 = vpop.f32.mrf.mxu0
  %v4586 = vadd.f32 %v4066, %v4585
  %v4587 = vpop.f32.mrf.mxu0
  %v4588 = vadd.f32 %v4066, %v4587
  %v4589 = vpop.f32.mrf.mxu0
  %v4590 = vadd.f32 %v4071, %v4589
  %v4591 = vpop.f32.mrf.mxu0
  %v4592 = vadd.f32 %v4071, %v4591
  %4593 = vmatprep.mubr.bf16.mxu0 %v4369
  %4594 = vmatmul.mubr.bf16.gmra.mxu0 %v4368
  %v4595 = vpop.f32.mrf.mxu0
  %v4596 = vadd.f32 %v4076, %v4595
  %v4597 = vpop.f32.mrf.mxu0
  %v4598 = vadd.f32 %v4076, %v4597
  %v4599 = vpop.f32.mrf.mxu0
  %v4600 = vadd.f32 %v4081, %v4599
  %v4601 = vpop.f32.mrf.mxu0
  %v4602 = vadd.f32 %v4081, %v4601
  %4603 = vmatprep.mubr.bf16.mxu0 %v4374
  %4604 = vmatmul.mubr.bf16.gmra.mxu0 %v4373
  %v4605 = vpop.f32.mrf.mxu0
  %v4606 = vadd.f32 %v4086, %v4605
  %v4607 = vpop.f32.mrf.mxu0
  %v4608 = vadd.f32 %v4086, %v4607
  %v4609 = vpop.f32.mrf.mxu0
  %v4610 = vadd.f32 %v4091, %v4609
  %v4611 = vpop.f32.mrf.mxu0
  %v4612 = vadd.f32 %v4091, %v4611
  %4613 = vmatprep.mubr.bf16.mxu0 %v4379
  %4614 = vmatmul.mubr.bf16.gmra.mxu0 %v4378
  %v4615 = vpop.f32.mrf.mxu0
  %v4616 = vadd.f32 %v4096, %v4615
  %v4617 = vpop.f32.mrf.mxu0
  %v4618 = vadd.f32 %v4096, %v4617
  %v4619 = vpop.f32.mrf.mxu0
  %v4620 = vadd.f32 %v4101, %v4619
  %v4621 = vpop.f32.mrf.mxu0
  %v4622 = vadd.f32 %v4101, %v4621
  %4623 = vmatprep.mubr.bf16.mxu0 %v4384
  %4624 = vmatmul.mubr.bf16.gmra.mxu0 %v4383
  %v4625 = vpop.f32.mrf.mxu0
  %v4626 = vadd.f32 %v4106, %v4625
  %v4627 = vpop.f32.mrf.mxu0
  %v4628 = vadd.f32 %v4106, %v4627
  %v4629 = vpop.f32.mrf.mxu0
  %v4630 = vadd.f32 %v4111, %v4629
  %v4631 = vpop.f32.mrf.mxu0
  %v4632 = vadd.f32 %v4111, %v4631
  %4633 = vmatprep.mubr.bf16.mxu0 %v4389
  %4634 = vmatmul.mubr.bf16.gmra.mxu0 %v4388
  %v4635 = vpop.f32.mrf.mxu0
  %v4636 = vadd.f32 %v4116, %v4635
  %v4637 = vpop.f32.mrf.mxu0
  %v4638 = vadd.f32 %v4116, %v4637
  %v4639 = vpop.f32.mrf.mxu0
  %v4640 = vadd.f32 %v4121, %v4639
  %v4641 = vpop.f32.mrf.mxu0
  %v4642 = vadd.f32 %v4121, %v4641
  %4643 = vmatprep.mubr.bf16.mxu0 %v4394
  %4644 = vmatmul.mubr.bf16.gmra.mxu0 %v4393
  %v4645 = vpop.f32.mrf.mxu0
  %v4646 = vadd.f32 %v4126, %v4645
  %v4647 = vpop.f32.mrf.mxu0
  %v4648 = vadd.f32 %v4126, %v4647
  %v4649 = vpop.f32.mrf.mxu0
  %v4650 = vadd.f32 %v4131, %v4649
  %v4651 = vpop.f32.mrf.mxu0
  %v4652 = vadd.f32 %v4131, %v4651
  %4653 = vmatprep.mubr.bf16.mxu0 %v4399
  %4654 = vmatmul.mubr.bf16.gmra.mxu0 %v4398
  %v4655 = vpop.f32.mrf.mxu0
  %v4656 = vadd.f32 %v4136, %v4655
  %v4657 = vpop.f32.mrf.mxu0
  %v4658 = vadd.f32 %v4136, %v4657
  %v4659 = vpop.f32.mrf.mxu0
  %v4660 = vpop.f32.mrf.mxu0
  %4661 = vdwg.mxu0
  %4662 = vmatprep.subr.bf16.mxu0 %v3847
  %4663 = vmatpush1.bf16.msra.mxu0 %v3860
  %4664 = vmatprep.subr.bf16.mxu0 %v3843
  %4665 = vmatpush1.bf16.msra.mxu0 %v3859
  %4666 = vmatprep.subr.bf16.mxu0 %v3839
  %4667 = vmatpush1.bf16.msra.mxu0 %v3858
  %4668 = vmatprep.subr.bf16.mxu0 %v3835
  %4669 = vmatpush1.bf16.msra.mxu0 %v3857
  %4670 = vmatprep.subr.bf16.mxu0 %v3936
  %4671 = vmatpush1.bf16.msra.mxu0 %v3932
  %4672 = vmatprep.subr.bf16.mxu0 %v3804
  %4673 = vmatpush1.bf16.msra.mxu0 %v3814
  %4674 = vmatprep.subr.bf16.mxu0 %v3800
  %4675 = vmatpush1.bf16.msra.mxu0 %v3813
  %4676 = vmatprep.subr.bf16.mxu0 %v3796
  %4677 = vmatpush1.bf16.msra.mxu0 %v3812
  %4678 = vmatprep.subr.bf16.mxu0 %v3898
  %4679 = vmatpush2.bf16.msra.mxu0 %v3908
  %4680 = vmatprep.subr.bf16.mxu0 %v3894
  %4681 = vmatpush2.bf16.msra.mxu0 %v3907
  %4682 = vmatprep.subr.bf16.mxu0 %v3890
  %4683 = vmatpush2.bf16.msra.mxu0 %v3906
  %4684 = vmatprep.subr.bf16.mxu0 %v3886
  %4685 = vmatpush2.bf16.msra.mxu0 %v3905
  %4686 = vmatprep.subr.bf16.mxu0 %v3882
  %4687 = vmatpush2.bf16.msra.mxu0 %v3904
  %4688 = vmatprep.subr.bf16.mxu0 %v3878
  %4689 = vmatpush2.bf16.msra.mxu0 %v3903
  %4690 = vmatprep.subr.bf16.mxu0 %v3855
  %4691 = vmatpush2.bf16.msra.mxu0 %v3862
  %4692 = vmatprep.subr.bf16.mxu0 %v3851
  %4693 = vmatpush2.bf16.msra.mxu0 %v3861
  %4694 = vmatprep.mubr.bf16.mxu0 %v4341
  %4695 = vmatmul.mubr.bf16.gmra.mxu0 %v4340
  %v4696 = vpop.f32.mrf.mxu0
  %v4697 = vadd.f32 %v4536, %v4696
  %v4698 = vpop.f32.mrf.mxu0
  %v4699 = vadd.f32 %v4538, %v4698
  %v4700 = vpop.f32.mrf.mxu0
  %v4701 = vadd.f32 %v4540, %v4700
  %v4702 = vpop.f32.mrf.mxu0
  %v4703 = vadd.f32 %v4542, %v4702
  %4704 = vmatprep.mubr.bf16.mxu0 %v4346
  %4705 = vmatmul.mubr.bf16.gmra.mxu0 %v4345
  %v4706 = vpop.f32.mrf.mxu0
  %v4707 = vadd.f32 %v4546, %v4706
  %v4708 = vpop.f32.mrf.mxu0
  %v4709 = vadd.f32 %v4548, %v4708
  %v4710 = vpop.f32.mrf.mxu0
  %v4711 = vadd.f32 %v4550, %v4710
  %v4712 = vpop.f32.mrf.mxu0
  %v4713 = vadd.f32 %v4552, %v4712
  %4714 = vmatprep.mubr.bf16.mxu0 %v4351
  %4715 = vmatmul.mubr.bf16.gmra.mxu0 %v4350
  %v4716 = vpop.f32.mrf.mxu0
  %v4717 = vadd.f32 %v4556, %v4716
  %v4718 = vpop.f32.mrf.mxu0
  %v4719 = vadd.f32 %v4558, %v4718
  %v4720 = vpop.f32.mrf.mxu0
  %v4721 = vadd.f32 %v4560, %v4720
  %v4722 = vpop.f32.mrf.mxu0
  %v4723 = vadd.f32 %v4562, %v4722
  %4724 = vmatprep.mubr.bf16.mxu0 %v4356
  %4725 = vmatmul.mubr.bf16.gmra.mxu0 %v4355
  %v4726 = vpop.f32.mrf.mxu0
  %v4727 = vadd.f32 %v4566, %v4726
  %v4728 = vpop.f32.mrf.mxu0
  %v4729 = vadd.f32 %v4568, %v4728
  %v4730 = vpop.f32.mrf.mxu0
  %v4731 = vadd.f32 %v4570, %v4730
  %v4732 = vpop.f32.mrf.mxu0
  %v4733 = vadd.f32 %v4572, %v4732
  %4734 = vmatprep.mubr.bf16.mxu0 %v4361
  %4735 = vmatmul.mubr.bf16.gmra.mxu0 %v4360
  %v4736 = vpop.f32.mrf.mxu0
  %v4737 = vadd.f32 %v4576, %v4736
  %v4738 = vpop.f32.mrf.mxu0
  %v4739 = vadd.f32 %v4578, %v4738
  %v4740 = vpop.f32.mrf.mxu0
  %v4741 = vadd.f32 %v4580, %v4740
  %v4742 = vpop.f32.mrf.mxu0
  %v4743 = vadd.f32 %v4582, %v4742
  %4744 = vmatprep.mubr.bf16.mxu0 %v4366
  %4745 = vmatmul.mubr.bf16.gmra.mxu0 %v4365
  %v4746 = vpop.f32.mrf.mxu0
  %v4747 = vadd.f32 %v4586, %v4746
  %v4748 = vpop.f32.mrf.mxu0
  %v4749 = vadd.f32 %v4588, %v4748
  %v4750 = vpop.f32.mrf.mxu0
  %v4751 = vadd.f32 %v4590, %v4750
  %v4752 = vpop.f32.mrf.mxu0
  %v4753 = vadd.f32 %v4592, %v4752
  %4754 = vmatprep.mubr.bf16.mxu0 %v4371
  %4755 = vmatmul.mubr.bf16.gmra.mxu0 %v4370
  %v4756 = vpop.f32.mrf.mxu0
  %v4757 = vadd.f32 %v4596, %v4756
  %v4758 = vpop.f32.mrf.mxu0
  %v4759 = vadd.f32 %v4598, %v4758
  %v4760 = vpop.f32.mrf.mxu0
  %v4761 = vadd.f32 %v4600, %v4760
  %v4762 = vpop.f32.mrf.mxu0
  %v4763 = vadd.f32 %v4602, %v4762
  %4764 = vmatprep.mubr.bf16.mxu0 %v4376
  %4765 = vmatmul.mubr.bf16.gmra.mxu0 %v4375
  %v4766 = vpop.f32.mrf.mxu0
  %v4767 = vadd.f32 %v4606, %v4766
  %v4768 = vpop.f32.mrf.mxu0
  %v4769 = vadd.f32 %v4608, %v4768
  %v4770 = vpop.f32.mrf.mxu0
  %v4771 = vadd.f32 %v4610, %v4770
  %v4772 = vpop.f32.mrf.mxu0
  %v4773 = vadd.f32 %v4612, %v4772
  %4774 = vmatprep.mubr.bf16.mxu0 %v4381
  %4775 = vmatmul.mubr.bf16.gmra.mxu0 %v4380
  %v4776 = vpop.f32.mrf.mxu0
  %v4777 = vadd.f32 %v4616, %v4776
  %v4778 = vpop.f32.mrf.mxu0
  %v4779 = vadd.f32 %v4618, %v4778
  %v4780 = vpop.f32.mrf.mxu0
  %v4781 = vadd.f32 %v4620, %v4780
  %v4782 = vpop.f32.mrf.mxu0
  %v4783 = vadd.f32 %v4622, %v4782
  %4784 = vmatprep.mubr.bf16.mxu0 %v4386
  %4785 = vmatmul.mubr.bf16.gmra.mxu0 %v4385
  %v4786 = vpop.f32.mrf.mxu0
  %v4787 = vadd.f32 %v4626, %v4786
  %v4788 = vpop.f32.mrf.mxu0
  %v4789 = vadd.f32 %v4628, %v4788
  %v4790 = vpop.f32.mrf.mxu0
  %v4791 = vadd.f32 %v4630, %v4790
  %v4792 = vpop.f32.mrf.mxu0
  %v4793 = vadd.f32 %v4632, %v4792
  %4794 = vmatprep.mubr.bf16.mxu0 %v4391
  %4795 = vmatmul.mubr.bf16.gmra.mxu0 %v4390
  %v4796 = vpop.f32.mrf.mxu0
  %v4797 = vadd.f32 %v4636, %v4796
  %v4798 = vpop.f32.mrf.mxu0
  %v4799 = vadd.f32 %v4638, %v4798
  %v4800 = vpop.f32.mrf.mxu0
  %v4801 = vadd.f32 %v4640, %v4800
  %v4802 = vpop.f32.mrf.mxu0
  %v4803 = vadd.f32 %v4642, %v4802
  %4804 = vmatprep.mubr.bf16.mxu0 %v4396
  %4805 = vmatmul.mubr.bf16.gmra.mxu0 %v4395
  %v4806 = vpop.f32.mrf.mxu0
  %v4807 = vadd.f32 %v4646, %v4806
  %v4808 = vpop.f32.mrf.mxu0
  %v4809 = vadd.f32 %v4648, %v4808
  %v4810 = vpop.f32.mrf.mxu0
  %v4811 = vadd.f32 %v4650, %v4810
  %v4812 = vpop.f32.mrf.mxu0
  %v4813 = vadd.f32 %v4652, %v4812
  %4814 = vmatprep.mubr.bf16.mxu0 %v4401
  %4815 = vmatmul.mubr.bf16.gmra.mxu0 %v4400
  %v4816 = vpop.f32.mrf.mxu0
  %v4817 = vadd.f32 %v4656, %v4816
  %v4818 = vpop.f32.mrf.mxu0
  %v4819 = vadd.f32 %v4658, %v4818
  %v4820 = vpop.f32.mrf.mxu0
  %v4821 = vpop.f32.mrf.mxu0
  %4822 = vdwg.mxu0
  %4823 = vmatprep.subr.bf16.mxu0 0
  %4824 = vmatpush1.bf16.msra.mxu0 0
  %4825 = vmatprep.subr.bf16.mxu0 0
  %4826 = vmatpush1.bf16.msra.mxu0 0
  %4827 = vmatprep.subr.bf16.mxu0 0
  %4828 = vmatpush1.bf16.msra.mxu0 0
  %4829 = vmatprep.subr.bf16.mxu0 0
  %4830 = vmatpush1.bf16.msra.mxu0 0
  %4831 = vmatprep.subr.bf16.mxu0 0
  %4832 = vmatpush1.bf16.msra.mxu0 0
  %4833 = vmatprep.subr.bf16.mxu0 0
  %4834 = vmatpush1.bf16.msra.mxu0 0
  %4835 = vmatprep.subr.bf16.mxu0 0
  %4836 = vmatpush1.bf16.msra.mxu0 0
  %4837 = vmatprep.subr.bf16.mxu0 %v4499
  %4838 = vmatpush1.bf16.msra.mxu0 %v4496
  %4839 = vmatprep.subr.bf16.mxu0 0
  %4840 = vmatpush2.bf16.msra.mxu0 0
  %4841 = vmatprep.subr.bf16.mxu0 0
  %4842 = vmatpush2.bf16.msra.mxu0 0
  %4843 = vmatprep.subr.bf16.mxu0 0
  %4844 = vmatpush2.bf16.msra.mxu0 0
  %4845 = vmatprep.subr.bf16.mxu0 0
  %4846 = vmatpush2.bf16.msra.mxu0 0
  %4847 = vmatprep.subr.bf16.mxu0 0
  %4848 = vmatpush2.bf16.msra.mxu0 0
  %4849 = vmatprep.subr.bf16.mxu0 0
  %4850 = vmatpush2.bf16.msra.mxu0 0
  %4851 = vmatprep.subr.bf16.mxu0 0
  %4852 = vmatpush2.bf16.msra.mxu0 0
  %4853 = vmatprep.subr.bf16.mxu0 0
  %4854 = vmatpush2.bf16.msra.mxu0 0
  %4855 = vmatprep.mubr.bf16.mxu0 0
  %4856 = vmatmul.mubr.bf16.gmra.mxu0 %v4457
  %v4857 = vpop.f32.mrf.mxu0
  %v4858 = vadd.f32 %v4697, %v4857
  %v4859 = vpop.f32.mrf.mxu0
  %v4860 = vadd.f32 %v4699, %v4859
  %v4861 = vpop.f32.mrf.mxu0
  %v4862 = vadd.f32 %v4701, %v4861
  %v4863 = vpop.f32.mrf.mxu0
  %v4864 = vadd.f32 %v4703, %v4863
  %4865 = vmatprep.mubr.bf16.mxu0 0
  %4866 = vmatmul.mubr.bf16.gmra.mxu0 %v4460
  %v4867 = vpop.f32.mrf.mxu0
  %v4868 = vadd.f32 %v4707, %v4867
  %v4869 = vpop.f32.mrf.mxu0
  %v4870 = vadd.f32 %v4709, %v4869
  %v4871 = vpop.f32.mrf.mxu0
  %v4872 = vadd.f32 %v4711, %v4871
  %v4873 = vpop.f32.mrf.mxu0
  %v4874 = vadd.f32 %v4713, %v4873
  %4875 = vmatprep.mubr.bf16.mxu0 0
  %4876 = vmatmul.mubr.bf16.gmra.mxu0 %v4463
  %v4877 = vpop.f32.mrf.mxu0
  %v4878 = vadd.f32 %v4717, %v4877
  %v4879 = vpop.f32.mrf.mxu0
  %v4880 = vadd.f32 %v4719, %v4879
  %v4881 = vpop.f32.mrf.mxu0
  %v4882 = vadd.f32 %v4721, %v4881
  %v4883 = vpop.f32.mrf.mxu0
  %v4884 = vadd.f32 %v4723, %v4883
  %4885 = vmatprep.mubr.bf16.mxu0 0
  %4886 = vmatmul.mubr.bf16.gmra.mxu0 %v4466
  %v4887 = vpop.f32.mrf.mxu0
  %v4888 = vadd.f32 %v4727, %v4887
  %v4889 = vpop.f32.mrf.mxu0
  %v4890 = vadd.f32 %v4729, %v4889
  %v4891 = vpop.f32.mrf.mxu0
  %v4892 = vadd.f32 %v4731, %v4891
  %v4893 = vpop.f32.mrf.mxu0
  %v4894 = vadd.f32 %v4733, %v4893
  %4895 = vmatprep.mubr.bf16.mxu0 0
  %4896 = vmatmul.mubr.bf16.gmra.mxu0 %v4469
  %v4897 = vpop.f32.mrf.mxu0
  %v4898 = vadd.f32 %v4737, %v4897
  %v4899 = vpop.f32.mrf.mxu0
  %v4900 = vadd.f32 %v4739, %v4899
  %v4901 = vpop.f32.mrf.mxu0
  %v4902 = vadd.f32 %v4741, %v4901
  %v4903 = vpop.f32.mrf.mxu0
  %v4904 = vadd.f32 %v4743, %v4903
  %4905 = vmatprep.mubr.bf16.mxu0 0
  %4906 = vmatmul.mubr.bf16.gmra.mxu0 %v4472
  %v4907 = vpop.f32.mrf.mxu0
  %v4908 = vadd.f32 %v4747, %v4907
  %v4909 = vpop.f32.mrf.mxu0
  %v4910 = vadd.f32 %v4749, %v4909
  %v4911 = vpop.f32.mrf.mxu0
  %v4912 = vadd.f32 %v4751, %v4911
  %v4913 = vpop.f32.mrf.mxu0
  %v4914 = vadd.f32 %v4753, %v4913
  %4915 = vmatprep.mubr.bf16.mxu0 0
  %4916 = vmatmul.mubr.bf16.gmra.mxu0 %v4475
  %v4917 = vpop.f32.mrf.mxu0
  %v4918 = vadd.f32 %v4757, %v4917
  %v4919 = vpop.f32.mrf.mxu0
  %v4920 = vadd.f32 %v4759, %v4919
  %v4921 = vpop.f32.mrf.mxu0
  %v4922 = vadd.f32 %v4761, %v4921
  %v4923 = vpop.f32.mrf.mxu0
  %v4924 = vadd.f32 %v4763, %v4923
  %4925 = vmatprep.mubr.bf16.mxu0 0
  %4926 = vmatmul.mubr.bf16.gmra.mxu0 %v4478
  %v4927 = vpop.f32.mrf.mxu0
  %v4928 = vadd.f32 %v4767, %v4927
  %v4929 = vpop.f32.mrf.mxu0
  %v4930 = vadd.f32 %v4769, %v4929
  %v4931 = vpop.f32.mrf.mxu0
  %v4932 = vadd.f32 %v4771, %v4931
  %v4933 = vpop.f32.mrf.mxu0
  %v4934 = vadd.f32 %v4773, %v4933
  %4935 = vmatprep.mubr.bf16.mxu0 0
  %4936 = vmatmul.mubr.bf16.gmra.mxu0 %v4481
  %v4937 = vpop.f32.mrf.mxu0
  %v4938 = vadd.f32 %v4777, %v4937
  %v4939 = vpop.f32.mrf.mxu0
  %v4940 = vadd.f32 %v4779, %v4939
  %v4941 = vpop.f32.mrf.mxu0
  %v4942 = vadd.f32 %v4781, %v4941
  %v4943 = vpop.f32.mrf.mxu0
  %v4944 = vadd.f32 %v4783, %v4943
  %4945 = vmatprep.mubr.bf16.mxu0 0
  %4946 = vmatmul.mubr.bf16.gmra.mxu0 %v4484
  %v4947 = vpop.f32.mrf.mxu0
  %v4948 = vadd.f32 %v4787, %v4947
  %v4949 = vpop.f32.mrf.mxu0
  %v4950 = vadd.f32 %v4789, %v4949
  %v4951 = vpop.f32.mrf.mxu0
  %v4952 = vadd.f32 %v4791, %v4951
  %v4953 = vpop.f32.mrf.mxu0
  %v4954 = vadd.f32 %v4793, %v4953
  %4955 = vmatprep.mubr.bf16.mxu0 0
  %4956 = vmatmul.mubr.bf16.gmra.mxu0 %v4487
  %v4957 = vpop.f32.mrf.mxu0
  %v4958 = vadd.f32 %v4797, %v4957
  %v4959 = vpop.f32.mrf.mxu0
  %v4960 = vadd.f32 %v4799, %v4959
  %v4961 = vpop.f32.mrf.mxu0
  %v4962 = vadd.f32 %v4801, %v4961
  %v4963 = vpop.f32.mrf.mxu0
  %v4964 = vadd.f32 %v4803, %v4963
  %4965 = vmatprep.mubr.bf16.mxu0 0
  %4966 = vmatmul.mubr.bf16.gmra.mxu0 %v4490
  %v4967 = vpop.f32.mrf.mxu0
  %v4968 = vadd.f32 %v4807, %v4967
  %v4969 = vpop.f32.mrf.mxu0
  %v4970 = vadd.f32 %v4809, %v4969
  %v4971 = vpop.f32.mrf.mxu0
  %v4972 = vadd.f32 %v4811, %v4971
  %v4973 = vpop.f32.mrf.mxu0
  %v4974 = vadd.f32 %v4813, %v4973
  %4975 = vmatprep.mubr.bf16.mxu0 0
  %4976 = vmatmul.mubr.bf16.gmra.mxu0 %v4493
  %v4977 = vpop.f32.mrf.mxu0
  %v4978 = vadd.f32 %v4817, %v4977
  %v4979 = vpop.f32.mrf.mxu0
  %v4980 = vadd.f32 %v4819, %v4979
  %v4981 = vpop.f32.mrf.mxu0
  %v4982 = vpop.f32.mrf.mxu0
  %4983 = vdwg.mxu0
  %v4984 = vmax.f32 %v4858, 0.0
  %v4985 = vmax.f32 %v4860, 0.0
  %v4986 = vmax.f32 %v4862, 0.0
  %v4987 = vmax.f32 %v4864, 0.0
  %v4988 = vmax.f32 %v4868, 0.0
  %v4989 = vmax.f32 %v4870, 0.0
  %v4990 = vmax.f32 %v4872, 0.0
  %v4991 = vmax.f32 %v4874, 0.0
  %v4992 = vmax.f32 %v4878, 0.0
  %v4993 = vmax.f32 %v4880, 0.0
  %v4994 = vmax.f32 %v4882, 0.0
  %v4995 = vmax.f32 %v4884, 0.0
  %v4996 = vmax.f32 %v4888, 0.0
  %v4997 = vmax.f32 %v4890, 0.0
  %v4998 = vmax.f32 %v4892, 0.0
  %v4999 = vmax.f32 %v4894, 0.0
  %v5000 = vmax.f32 %v4898, 0.0
  %v5001 = vmax.f32 %v4900, 0.0
  %v5002 = vmax.f32 %v4902, 0.0
  %v5003 = vmax.f32 %v4904, 0.0
  %v5004 = vmax.f32 %v4908, 0.0
  %v5005 = vmax.f32 %v4910, 0.0
  %v5006 = vmax.f32 %v4912, 0.0
  %v5007 = vmax.f32 %v4914, 0.0
  %v5008 = vmax.f32 %v4918, 0.0
  %v5009 = vmax.f32 %v4920, 0.0
  %v5010 = vmax.f32 %v4922, 0.0
  %v5011 = vmax.f32 %v4924, 0.0
  %v5012 = vmax.f32 %v4928, 0.0
  %v5013 = vmax.f32 %v4930, 0.0
  %v5014 = vmax.f32 %v4932, 0.0
  %v5015 = vmax.f32 %v4934, 0.0
  %v5016 = vmax.f32 %v4938, 0.0
  %v5017 = vmax.f32 %v4940, 0.0
  %v5018 = vmax.f32 %v4942, 0.0
  %v5019 = vmax.f32 %v4944, 0.0
  %v5020 = vmax.f32 %v4948, 0.0
  %v5021 = vmax.f32 %v4950, 0.0
  %v5022 = vmax.f32 %v4952, 0.0
  %v5023 = vmax.f32 %v4954, 0.0
  %v5024 = vmax.f32 %v4958, 0.0
  %v5025 = vmax.f32 %v4960, 0.0
  %v5026 = vmax.f32 %v4962, 0.0
  %v5027 = vmax.f32 %v4964, 0.0
  %v5028 = vmax.f32 %v4968, 0.0
  %v5029 = vmax.f32 %v4970, 0.0
  %v5030 = vmax.f32 %v4972, 0.0
  %v5031 = vmax.f32 %v4974, 0.0
  %v5032 = vmax.f32 %v4978, 0.0
  %v5033 = vmax.f32 %v4980, 0.0
  %5084 = vrot.lane.b32.xlu0 %v4984, 127
  %v5085 = vpop.permute.xlu0 %5084
  %5086 = vrot.lane.b32.xlu0 %v4985, 127
  %v5087 = vpop.permute.xlu0 %5086
  %5088 = vrot.lane.b32.xlu0 %v4986, 127
  %v5089 = vpop.permute.xlu0 %5088
  %5090 = vrot.lane.b32.xlu0 %v4987, 127
  %v5091 = vpop.permute.xlu0 %5090
  %5092 = vrot.lane.b32.xlu0 %v4988, 127
  %v5093 = vpop.permute.xlu0 %5092
  %5094 = vrot.lane.b32.xlu0 %v4989, 127
  %v5095 = vpop.permute.xlu0 %5094
  %5096 = vrot.lane.b32.xlu0 %v4990, 127
  %v5097 = vpop.permute.xlu0 %5096
  %5098 = vrot.lane.b32.xlu0 %v4991, 127
  %v5099 = vpop.permute.xlu0 %5098
  %5100 = vrot.lane.b32.xlu0 %v4992, 127
  %v5101 = vpop.permute.xlu0 %5100
  %5102 = vrot.lane.b32.xlu0 %v4993, 127
  %v5103 = vpop.permute.xlu0 %5102
  %5104 = vrot.lane.b32.xlu0 %v4994, 127
  %v5105 = vpop.permute.xlu0 %5104
  %5106 = vrot.lane.b32.xlu0 %v4995, 127
  %v5107 = vpop.permute.xlu0 %5106
  %5108 = vrot.lane.b32.xlu0 %v4996, 127
  %v5109 = vpop.permute.xlu0 %5108
  %5110 = vrot.lane.b32.xlu0 %v4997, 127
  %v5111 = vpop.permute.xlu0 %5110
  %5112 = vrot.lane.b32.xlu0 %v4998, 127
  %v5113 = vpop.permute.xlu0 %5112
  %5114 = vrot.lane.b32.xlu0 %v4999, 127
  %v5115 = vpop.permute.xlu0 %5114
  %5116 = vrot.lane.b32.xlu0 %v5000, 127
  %v5117 = vpop.permute.xlu0 %5116
  %5118 = vrot.lane.b32.xlu0 %v5001, 127
  %v5119 = vpop.permute.xlu0 %5118
  %5120 = vrot.lane.b32.xlu0 %v5002, 127
  %v5121 = vpop.permute.xlu0 %5120
  %5122 = vrot.lane.b32.xlu0 %v5003, 127
  %v5123 = vpop.permute.xlu0 %5122
  %5124 = vrot.lane.b32.xlu0 %v5004, 127
  %v5125 = vpop.permute.xlu0 %5124
  %5126 = vrot.lane.b32.xlu0 %v5005, 127
  %v5127 = vpop.permute.xlu0 %5126
  %5128 = vrot.lane.b32.xlu0 %v5006, 127
  %v5129 = vpop.permute.xlu0 %5128
  %5130 = vrot.lane.b32.xlu0 %v5007, 127
  %v5131 = vpop.permute.xlu0 %5130
  %5132 = vrot.lane.b32.xlu0 %v5008, 127
  %v5133 = vpop.permute.xlu0 %5132
  %5134 = vrot.lane.b32.xlu0 %v5009, 127
  %v5135 = vpop.permute.xlu0 %5134
  %5136 = vrot.lane.b32.xlu0 %v5010, 127
  %v5137 = vpop.permute.xlu0 %5136
  %5138 = vrot.lane.b32.xlu0 %v5011, 127
  %v5139 = vpop.permute.xlu0 %5138
  %5140 = vrot.lane.b32.xlu0 %v5012, 127
  %v5141 = vpop.permute.xlu0 %5140
  %5142 = vrot.lane.b32.xlu0 %v5013, 127
  %v5143 = vpop.permute.xlu0 %5142
  %5144 = vrot.lane.b32.xlu0 %v5014, 127
  %v5145 = vpop.permute.xlu0 %5144
  %5146 = vrot.lane.b32.xlu0 %v5015, 127
  %v5147 = vpop.permute.xlu0 %5146
  %5148 = vrot.lane.b32.xlu0 %v5016, 127
  %v5149 = vpop.permute.xlu0 %5148
  %5150 = vrot.lane.b32.xlu0 %v5017, 127
  %v5151 = vpop.permute.xlu0 %5150
  %5152 = vrot.lane.b32.xlu0 %v5018, 127
  %v5153 = vpop.permute.xlu0 %5152
  %5154 = vrot.lane.b32.xlu0 %v5019, 127
  %v5155 = vpop.permute.xlu0 %5154
  %5156 = vrot.lane.b32.xlu0 %v5020, 127
  %v5157 = vpop.permute.xlu0 %5156
  %5158 = vrot.lane.b32.xlu0 %v5021, 127
  %v5159 = vpop.permute.xlu0 %5158
  %5160 = vrot.lane.b32.xlu0 %v5022, 127
  %v5161 = vpop.permute.xlu0 %5160
  %5162 = vrot.lane.b32.xlu0 %v5023, 127
  %v5163 = vpop.permute.xlu0 %5162
  %5164 = vrot.lane.b32.xlu0 %v5024, 127
  %v5165 = vpop.permute.xlu0 %5164
  %5166 = vrot.lane.b32.xlu0 %v5025, 127
  %v5167 = vpop.permute.xlu0 %5166
  %5168 = vrot.lane.b32.xlu0 %v5026, 127
  %v5169 = vpop.permute.xlu0 %5168
  %5170 = vrot.lane.b32.xlu0 %v5027, 127
  %v5171 = vpop.permute.xlu0 %5170
  %5172 = vrot.lane.b32.xlu0 %v5028, 127
  %v5173 = vpop.permute.xlu0 %5172
  %5174 = vrot.lane.b32.xlu0 %v5029, 127
  %v5175 = vpop.permute.xlu0 %5174
  %5176 = vrot.lane.b32.xlu0 %v5030, 127
  %v5177 = vpop.permute.xlu0 %5176
  %5178 = vrot.lane.b32.xlu0 %v5031, 127
  %v5179 = vpop.permute.xlu0 %5178
  %5180 = vrot.lane.b32.xlu0 %v5032, 127
  %v5181 = vpop.permute.xlu0 %5180
  %5182 = vrot.lane.b32.xlu0 %v5033, 127
  %v5183 = vpop.permute.xlu0 %5182
  %v5184 = vsel %vm945, %v5085, %v5087
  %v5185 = vsel %vm945, %v5089, %v5091
  %v5186 = vsel %vm945, %v5093, %v5095
  %v5187 = vsel %vm945, %v5097, %v5099
  %v5188 = vsel %vm945, %v5101, %v5103
  %v5189 = vsel %vm945, %v5105, %v5107
  %v5190 = vsel %vm945, %v5109, %v5111
  %v5191 = vsel %vm945, %v5113, %v5115
  %v5192 = vsel %vm945, %v5117, %v5119
  %v5193 = vsel %vm945, %v5121, %v5123
  %v5194 = vsel %vm945, %v5125, %v5127
  %v5195 = vsel %vm945, %v5129, %v5131
  %v5196 = vsel %vm945, %v5133, %v5135
  %v5197 = vsel %vm945, %v5137, %v5139
  %v5198 = vsel %vm945, %v5141, %v5143
  %v5199 = vsel %vm945, %v5145, %v5147
  %v5200 = vsel %vm945, %v5149, %v5151
  %v5201 = vsel %vm945, %v5153, %v5155
  %v5202 = vsel %vm945, %v5157, %v5159
  %v5203 = vsel %vm945, %v5161, %v5163
  %v5204 = vsel %vm945, %v5165, %v5167
  %v5205 = vsel %vm945, %v5169, %v5171
  %v5206 = vsel %vm945, %v5173, %v5175
  %v5207 = vsel %vm945, %v5177, %v5179
  %v5208 = vsel %vm945, %v5181, %v5183
  %v5259 = vmax.f32 %v4984, %v5184
  %v5260 = vmax.f32 %v4985, %v5087
  %v5261 = vmax.f32 %v4986, %v5185
  %v5262 = vmax.f32 %v4987, %v5091
  %v5263 = vmax.f32 %v4988, %v5186
  %v5264 = vmax.f32 %v4989, %v5095
  %v5265 = vmax.f32 %v4990, %v5187
  %v5266 = vmax.f32 %v4991, %v5099
  %v5267 = vmax.f32 %v4992, %v5188
  %v5268 = vmax.f32 %v4993, %v5103
  %v5269 = vmax.f32 %v4994, %v5189
  %v5270 = vmax.f32 %v4995, %v5107
  %v5271 = vmax.f32 %v4996, %v5190
  %v5272 = vmax.f32 %v4997, %v5111
  %v5273 = vmax.f32 %v4998, %v5191
  %v5274 = vmax.f32 %v4999, %v5115
  %v5275 = vmax.f32 %v5000, %v5192
  %v5276 = vmax.f32 %v5001, %v5119
  %v5277 = vmax.f32 %v5002, %v5193
  %v5278 = vmax.f32 %v5003, %v5123
  %v5279 = vmax.f32 %v5004, %v5194
  %v5280 = vmax.f32 %v5005, %v5127
  %v5281 = vmax.f32 %v5006, %v5195
  %v5282 = vmax.f32 %v5007, %v5131
  %v5283 = vmax.f32 %v5008, %v5196
  %v5284 = vmax.f32 %v5009, %v5135
  %v5285 = vmax.f32 %v5010, %v5197
  %v5286 = vmax.f32 %v5011, %v5139
  %v5287 = vmax.f32 %v5012, %v5198
  %v5288 = vmax.f32 %v5013, %v5143
  %v5289 = vmax.f32 %v5014, %v5199
  %v5290 = vmax.f32 %v5015, %v5147
  %v5291 = vmax.f32 %v5016, %v5200
  %v5292 = vmax.f32 %v5017, %v5151
  %v5293 = vmax.f32 %v5018, %v5201
  %v5294 = vmax.f32 %v5019, %v5155
  %v5295 = vmax.f32 %v5020, %v5202
  %v5296 = vmax.f32 %v5021, %v5159
  %v5297 = vmax.f32 %v5022, %v5203
  %v5298 = vmax.f32 %v5023, %v5163
  %v5299 = vmax.f32 %v5024, %v5204
  %v5300 = vmax.f32 %v5025, %v5167
  %v5301 = vmax.f32 %v5026, %v5205
  %v5302 = vmax.f32 %v5027, %v5171
  %v5303 = vmax.f32 %v5028, %v5206
  %v5304 = vmax.f32 %v5029, %v5175
  %v5305 = vmax.f32 %v5030, %v5207
  %v5306 = vmax.f32 %v5031, %v5179
  %v5307 = vmax.f32 %v5032, %v5208
  %v5308 = vmax.f32 %v5033, %v5183
  %v5309 = vpack.c.bf16 %v5261, %v5259
  %v5310 = vpack.c.bf16 %v5262, %v5260
  %v5311 = vpack.c.bf16 %v5265, %v5263
  %v5312 = vpack.c.bf16 %v5266, %v5264
  %v5313 = vpack.c.bf16 %v5269, %v5267
  %v5314 = vpack.c.bf16 %v5270, %v5268
  %v5315 = vpack.c.bf16 %v5273, %v5271
  %v5316 = vpack.c.bf16 %v5274, %v5272
  %v5317 = vpack.c.bf16 %v5277, %v5275
  %v5318 = vpack.c.bf16 %v5278, %v5276
  %v5319 = vpack.c.bf16 %v5281, %v5279
  %v5320 = vpack.c.bf16 %v5282, %v5280
  %v5321 = vpack.c.bf16 %v5285, %v5283
  %v5322 = vpack.c.bf16 %v5286, %v5284
  %v5323 = vpack.c.bf16 %v5289, %v5287
  %v5324 = vpack.c.bf16 %v5290, %v5288
  %v5325 = vpack.c.bf16 %v5293, %v5291
  %v5326 = vpack.c.bf16 %v5294, %v5292
  %v5327 = vpack.c.bf16 %v5297, %v5295
  %v5328 = vpack.c.bf16 %v5298, %v5296
  %v5329 = vpack.c.bf16 %v5301, %v5299
  %v5330 = vpack.c.bf16 %v5302, %v5300
  %v5331 = vpack.c.bf16 %v5305, %v5303
  %v5332 = vpack.c.bf16 %v5306, %v5304
  %v5333 = vpack.c.bf16 %v5307, %v5307
  %v5334 = vpack.c.bf16 %v5308, %v5308
  %v5336 = vsel %vm1110, %v5310, 0
  %v5339 = vsel %vm1110, %v5312, 0
  %v5342 = vsel %vm1110, %v5314, 0
  %v5345 = vsel %vm1110, %v5316, 0
  %v5348 = vsel %vm1110, %v5318, 0
  %v5351 = vsel %vm1110, %v5320, 0
  %v5354 = vsel %vm1110, %v5322, 0
  %v5357 = vsel %vm1110, %v5324, 0
  %v5360 = vsel %vm1110, %v5326, 0
  %v5363 = vsel %vm1110, %v5328, 0
  %v5366 = vsel %vm1110, %v5330, 0
  %v5369 = vsel %vm1110, %v5332, 0
  %v5372 = vsel %vm1110, %v5334, 0
  %5374 = vmatprep.subr.bf16.mxu0 0
  %5375 = vmatpush1.bf16.msra.mxu0 %v1189
  %5376 = vmatprep.subr.bf16.mxu0 0
  %5377 = vmatpush1.bf16.msra.mxu0 %v1188
  %5378 = vmatprep.subr.bf16.mxu0 0
  %5379 = vmatpush1.bf16.msra.mxu0 %v1187
  %5380 = vmatprep.subr.bf16.mxu0 0
  %5381 = vmatpush1.bf16.msra.mxu0 %v1186
  %5382 = vmatprep.subr.bf16.mxu0 0
  %5383 = vmatpush1.bf16.msra.mxu0 %v1185
  %5384 = vmatprep.subr.bf16.mxu0 0
  %5385 = vmatpush1.bf16.msra.mxu0 %v1184
  %5386 = vmatprep.subr.bf16.mxu0 0
  %5387 = vmatpush1.bf16.msra.mxu0 %v1183
  %5388 = vmatprep.subr.bf16.mxu0 0
  %5389 = vmatpush1.bf16.msra.mxu0 %v1182
  %5390 = vmatprep.subr.bf16.mxu0 0
  %5391 = vmatpush2.bf16.msra.mxu0 %v1197
  %5392 = vmatprep.subr.bf16.mxu0 0
  %5393 = vmatpush2.bf16.msra.mxu0 %v1196
  %5394 = vmatprep.subr.bf16.mxu0 0
  %5395 = vmatpush2.bf16.msra.mxu0 %v1195
  %5396 = vmatprep.subr.bf16.mxu0 0
  %5397 = vmatpush2.bf16.msra.mxu0 %v1194
  %5398 = vmatprep.subr.bf16.mxu0 0
  %5399 = vmatpush2.bf16.msra.mxu0 %v1193
  %5400 = vmatprep.subr.bf16.mxu0 0
  %5401 = vmatpush2.bf16.msra.mxu0 %v1192
  %5402 = vmatprep.subr.bf16.mxu0 0
  %5403 = vmatpush2.bf16.msra.mxu0 %v1191
  %5404 = vmatprep.subr.bf16.mxu0 0
  %5405 = vmatpush2.bf16.msra.mxu0 %v1190
  %5406 = vmatprep.mubr.bf16.mxu0 %v5336
  %5407 = vmatmul.mubr.bf16.gmra.mxu0 %v5309
  %v5408 = vpop.f32.mrf.mxu0
  %v5409 = vadd.f32 0.0, %v5408
  %v5410 = vpop.f32.mrf.mxu0
  %v5411 = vpop.f32.mrf.mxu0
  %v5412 = vadd.f32 0.0, %v5411
  %v5413 = vpop.f32.mrf.mxu0
  %5414 = vmatprep.mubr.bf16.mxu0 %v5339
  %5415 = vmatmul.mubr.bf16.gmra.mxu0 %v5311
  %v5416 = vpop.f32.mrf.mxu0
  %v5417 = vadd.f32 0.0, %v5416
  %v5418 = vpop.f32.mrf.mxu0
  %v5419 = vpop.f32.mrf.mxu0
  %v5420 = vadd.f32 0.0, %v5419
  %v5421 = vpop.f32.mrf.mxu0
  %5422 = vmatprep.mubr.bf16.mxu0 %v5342
  %5423 = vmatmul.mubr.bf16.gmra.mxu0 %v5313
  %v5424 = vpop.f32.mrf.mxu0
  %v5425 = vadd.f32 0.0, %v5424
  %v5426 = vpop.f32.mrf.mxu0
  %v5427 = vpop.f32.mrf.mxu0
  %v5428 = vadd.f32 0.0, %v5427
  %v5429 = vpop.f32.mrf.mxu0
  %5430 = vmatprep.mubr.bf16.mxu0 %v5345
  %5431 = vmatmul.mubr.bf16.gmra.mxu0 %v5315
  %v5432 = vpop.f32.mrf.mxu0
  %v5433 = vadd.f32 0.0, %v5432
  %v5434 = vpop.f32.mrf.mxu0
  %v5435 = vpop.f32.mrf.mxu0
  %v5436 = vadd.f32 0.0, %v5435
  %v5437 = vpop.f32.mrf.mxu0
  %5438 = vmatprep.mubr.bf16.mxu0 %v5348
  %5439 = vmatmul.mubr.bf16.gmra.mxu0 %v5317
  %v5440 = vpop.f32.mrf.mxu0
  %v5441 = vadd.f32 0.0, %v5440
  %v5442 = vpop.f32.mrf.mxu0
  %v5443 = vpop.f32.mrf.mxu0
  %v5444 = vadd.f32 0.0, %v5443
  %v5445 = vpop.f32.mrf.mxu0
  %5446 = vmatprep.mubr.bf16.mxu0 %v5351
  %5447 = vmatmul.mubr.bf16.gmra.mxu0 %v5319
  %v5448 = vpop.f32.mrf.mxu0
  %v5449 = vadd.f32 0.0, %v5448
  %v5450 = vpop.f32.mrf.mxu0
  %v5451 = vpop.f32.mrf.mxu0
  %v5452 = vadd.f32 0.0, %v5451
  %v5453 = vpop.f32.mrf.mxu0
  %5454 = vmatprep.mubr.bf16.mxu0 %v5354
  %5455 = vmatmul.mubr.bf16.gmra.mxu0 %v5321
  %v5456 = vpop.f32.mrf.mxu0
  %v5457 = vadd.f32 0.0, %v5456
  %v5458 = vpop.f32.mrf.mxu0
  %v5459 = vpop.f32.mrf.mxu0
  %v5460 = vadd.f32 0.0, %v5459
  %v5461 = vpop.f32.mrf.mxu0
  %5462 = vmatprep.mubr.bf16.mxu0 %v5357
  %5463 = vmatmul.mubr.bf16.gmra.mxu0 %v5323
  %v5464 = vpop.f32.mrf.mxu0
  %v5465 = vadd.f32 0.0, %v5464
  %v5466 = vpop.f32.mrf.mxu0
  %v5467 = vpop.f32.mrf.mxu0
  %v5468 = vadd.f32 0.0, %v5467
  %v5469 = vpop.f32.mrf.mxu0
  %5470 = vmatprep.mubr.bf16.mxu0 %v5360
  %5471 = vmatmul.mubr.bf16.gmra.mxu0 %v5325
  %v5472 = vpop.f32.mrf.mxu0
  %v5473 = vadd.f32 0.0, %v5472
  %v5474 = vpop.f32.mrf.mxu0
  %v5475 = vpop.f32.mrf.mxu0
  %v5476 = vadd.f32 0.0, %v5475
  %v5477 = vpop.f32.mrf.mxu0
  %5478 = vmatprep.mubr.bf16.mxu0 %v5363
  %5479 = vmatmul.mubr.bf16.gmra.mxu0 %v5327
  %v5480 = vpop.f32.mrf.mxu0
  %v5481 = vadd.f32 0.0, %v5480
  %v5482 = vpop.f32.mrf.mxu0
  %v5483 = vpop.f32.mrf.mxu0
  %v5484 = vadd.f32 0.0, %v5483
  %v5485 = vpop.f32.mrf.mxu0
  %5486 = vmatprep.mubr.bf16.mxu0 %v5366
  %5487 = vmatmul.mubr.bf16.gmra.mxu0 %v5329
  %v5488 = vpop.f32.mrf.mxu0
  %v5489 = vadd.f32 0.0, %v5488
  %v5490 = vpop.f32.mrf.mxu0
  %v5491 = vpop.f32.mrf.mxu0
  %v5492 = vadd.f32 0.0, %v5491
  %v5493 = vpop.f32.mrf.mxu0
  %5494 = vmatprep.mubr.bf16.mxu0 %v5369
  %5495 = vmatmul.mubr.bf16.gmra.mxu0 %v5331
  %v5496 = vpop.f32.mrf.mxu0
  %v5497 = vadd.f32 0.0, %v5496
  %v5498 = vpop.f32.mrf.mxu0
  %v5499 = vpop.f32.mrf.mxu0
  %v5500 = vadd.f32 0.0, %v5499
  %v5501 = vpop.f32.mrf.mxu0
  %5502 = vmatprep.mubr.bf16.mxu0 %v5372
  %5503 = vmatmul.mubr.bf16.gmra.mxu0 %v5333
  %v5504 = vpop.f32.mrf.mxu0
  %v5505 = vadd.f32 0.0, %v5504
  %v5506 = vpop.f32.mrf.mxu0
  %v5507 = vpop.f32.mrf.mxu0
  %v5508 = vpop.f32.mrf.mxu0
  %5509 = vdwg.mxu0
  %v5510 = vld [vmem:[%s7] sm:$0xff]
  %v5511 = vld [vmem:[%s7 + $0x8] sm:$0xff]
  %v5512 = vld [vmem:[%s7 + $0x10] sm:$0xff]
  %v5513 = vld [vmem:[%s7 + $0x18] sm:$0xff]
  %v5514 = vld [vmem:[%s7 + $0x20] sm:$0xff]
  %v5515 = vld [vmem:[%s7 + $0x28] sm:$0xff]
  %v5516 = vld [vmem:[%s7 + $0x30] sm:$0xff]
  %v5517 = vld [vmem:[%s7 + $0x38] sm:$0xff]
  %v5518 = vld [vmem:[%s7 + $0x40] sm:$0xff]
  %v5519 = vld [vmem:[%s7 + $0x48] sm:$0xff]
  %v5520 = vld [vmem:[%s7 + $0x50] sm:$0xff]
  %v5521 = vld [vmem:[%s7 + $0x58] sm:$0xff]
  %v5522 = vld [vmem:[%s7 + $0x60] sm:$0xff]
  %v5523 = vld [vmem:[%s7 + $0x68] sm:$0xff]
  %v5524 = vld [vmem:[%s7 + $0x70] sm:$0xff]
  %v5525 = vld [vmem:[%s7 + $0x78] sm:$0xff]
  %v5526 = vld [vmem:[%s7 + $0x80] sm:$0xff]
  %v5527 = vld [vmem:[%s7 + $0x88] sm:$0xff]
  %v5528 = vld [vmem:[%s7 + $0x90] sm:$0xff]
  %v5529 = vld [vmem:[%s7 + $0x98] sm:$0xff]
  %v5530 = vld [vmem:[%s7 + $0xa0] sm:$0xff]
  %v5531 = vld [vmem:[%s7 + $0xa8] sm:$0xff]
  %v5532 = vld [vmem:[%s7 + $0xb0] sm:$0xff]
  %v5533 = vld [vmem:[%s7 + $0xb8] sm:$0xff]
  %v5534 = vld [vmem:[%s7 + $0xc0] sm:$0xff]
  %v5535 = vmul.f32 %v5409, %v5510
  %v5536 = vmul.f32 %v5412, %v5511
  %v5537 = vmul.f32 %v5417, %v5512
  %v5538 = vmul.f32 %v5420, %v5513
  %v5539 = vmul.f32 %v5425, %v5514
  %v5540 = vmul.f32 %v5428, %v5515
  %v5541 = vmul.f32 %v5433, %v5516
  %v5542 = vmul.f32 %v5436, %v5517
  %v5543 = vmul.f32 %v5441, %v5518
  %v5544 = vmul.f32 %v5444, %v5519
  %v5545 = vmul.f32 %v5449, %v5520
  %v5546 = vmul.f32 %v5452, %v5521
  %v5547 = vmul.f32 %v5457, %v5522
  %v5548 = vmul.f32 %v5460, %v5523
  %v5549 = vmul.f32 %v5465, %v5524
  %v5550 = vmul.f32 %v5468, %v5525
  %v5551 = vmul.f32 %v5473, %v5526
  %v5552 = vmul.f32 %v5476, %v5527
  %v5553 = vmul.f32 %v5481, %v5528
  %v5554 = vmul.f32 %v5484, %v5529
  %v5555 = vmul.f32 %v5489, %v5530
  %v5556 = vmul.f32 %v5492, %v5531
  %v5557 = vmul.f32 %v5497, %v5532
  %v5558 = vmul.f32 %v5500, %v5533
  %v5559 = vmul.f32 %v5505, %v5534
  %5560 = vadd.xlane.f32.xlu0 %v5535
  %v5561 = vpop.xlane.xlu0 %5560
  %5562 = vadd.xlane.f32.xlu0 %v5536
  %v5563 = vpop.xlane.xlu0 %5562
  %5564 = vadd.xlane.f32.xlu0 %v5537
  %v5565 = vpop.xlane.xlu0 %5564
  %5566 = vadd.xlane.f32.xlu0 %v5538
  %v5567 = vpop.xlane.xlu0 %5566
  %5568 = vadd.xlane.f32.xlu0 %v5539
  %v5569 = vpop.xlane.xlu0 %5568
  %5570 = vadd.xlane.f32.xlu0 %v5540
  %v5571 = vpop.xlane.xlu0 %5570
  %5572 = vadd.xlane.f32.xlu0 %v5541
  %v5573 = vpop.xlane.xlu0 %5572
  %5574 = vadd.xlane.f32.xlu0 %v5542
  %v5575 = vpop.xlane.xlu0 %5574
  %5576 = vadd.xlane.f32.xlu0 %v5543
  %v5577 = vpop.xlane.xlu0 %5576
  %5578 = vadd.xlane.f32.xlu0 %v5544
  %v5579 = vpop.xlane.xlu0 %5578
  %5580 = vadd.xlane.f32.xlu0 %v5545
  %v5581 = vpop.xlane.xlu0 %5580
  %5582 = vadd.xlane.f32.xlu0 %v5546
  %v5583 = vpop.xlane.xlu0 %5582
  %5584 = vadd.xlane.f32.xlu0 %v5547
  %v5585 = vpop.xlane.xlu0 %5584
  %5586 = vadd.xlane.f32.xlu0 %v5548
  %v5587 = vpop.xlane.xlu0 %5586
  %5588 = vadd.xlane.f32.xlu0 %v5549
  %v5589 = vpop.xlane.xlu0 %5588
  %5590 = vadd.xlane.f32.xlu0 %v5550
  %v5591 = vpop.xlane.xlu0 %5590
  %5592 = vadd.xlane.f32.xlu0 %v5551
  %v5593 = vpop.xlane.xlu0 %5592
  %5594 = vadd.xlane.f32.xlu0 %v5552
  %v5595 = vpop.xlane.xlu0 %5594
  %5596 = vadd.xlane.f32.xlu0 %v5553
  %v5597 = vpop.xlane.xlu0 %5596
  %5598 = vadd.xlane.f32.xlu0 %v5554
  %v5599 = vpop.xlane.xlu0 %5598
  %5600 = vadd.xlane.f32.xlu0 %v5555
  %v5601 = vpop.xlane.xlu0 %5600
  %5602 = vadd.xlane.f32.xlu0 %v5556
  %v5603 = vpop.xlane.xlu0 %5602
  %5604 = vadd.xlane.f32.xlu0 %v5557
  %v5605 = vpop.xlane.xlu0 %5604
  %5606 = vadd.xlane.f32.xlu0 %v5558
  %v5607 = vpop.xlane.xlu0 %5606
  %5608 = vadd.xlane.f32.xlu0 %v5559
  %v5609 = vpop.xlane.xlu0 %5608
  %v5610 = vadd.f32 %v5561, %v5563
  %v5611 = vadd.f32 %v5610, %v5565
  %v5612 = vadd.f32 %v5611, %v5567
  %v5613 = vadd.f32 %v5612, %v5569
  %v5614 = vadd.f32 %v5613, %v5571
  %v5615 = vadd.f32 %v5614, %v5573
  %v5616 = vadd.f32 %v5615, %v5575
  %v5617 = vadd.f32 %v5616, %v5577
  %v5618 = vadd.f32 %v5617, %v5579
  %v5619 = vadd.f32 %v5618, %v5581
  %v5620 = vadd.f32 %v5619, %v5583
  %v5621 = vadd.f32 %v5620, %v5585
  %v5622 = vadd.f32 %v5621, %v5587
  %v5623 = vadd.f32 %v5622, %v5589
  %v5624 = vadd.f32 %v5623, %v5591
  %v5625 = vadd.f32 %v5624, %v5593
  %v5626 = vadd.f32 %v5625, %v5595
  %v5627 = vadd.f32 %v5626, %v5597
  %v5628 = vadd.f32 %v5627, %v5599
  %v5629 = vadd.f32 %v5628, %v5601
  %v5630 = vadd.f32 %v5629, %v5603
  %v5631 = vadd.f32 %v5630, %v5605
  %v5632 = vadd.f32 %v5631, %v5607
  %v5633 = vadd.f32 %v5632, %v5609
  %v5634 = vrot.slane %v5633, 4
  %v5635 = vadd.f32 %v5633, %v5634
  %v5636 = vrot.slane %v5635, 2
  %v5637 = vadd.f32 %v5635, %v5636
  %v5638 = vrot.slane %v5637, 1
  %v5639 = vadd.f32 %v5637, %v5638
  %s5640 = scalar_lea.vmem %s7, 200
  %v5641 = vld [vmem:[%s5640] sm:$0xff]
  %v5642 = vld [vmem:[%s5640 + $0x8] sm:$0xff]
  %v5643 = vld [vmem:[%s5640 + $0x10] sm:$0xff]
  %v5644 = vld [vmem:[%s5640 + $0x18] sm:$0xff]
  %v5645 = vld [vmem:[%s5640 + $0x20] sm:$0xff]
  %v5646 = vld [vmem:[%s5640 + $0x28] sm:$0xff]
  %v5647 = vld [vmem:[%s5640 + $0x30] sm:$0xff]
  %v5648 = vld [vmem:[%s5640 + $0x38] sm:$0xff]
  %v5649 = vld [vmem:[%s5640 + $0x40] sm:$0xff]
  %v5650 = vld [vmem:[%s5640 + $0x48] sm:$0xff]
  %v5651 = vld [vmem:[%s5640 + $0x50] sm:$0xff]
  %v5652 = vld [vmem:[%s5640 + $0x58] sm:$0xff]
  %v5653 = vld [vmem:[%s5640 + $0x60] sm:$0xff]
  %v5654 = vld [vmem:[%s5640 + $0x68] sm:$0xff]
  %v5655 = vld [vmem:[%s5640 + $0x70] sm:$0xff]
  %v5656 = vld [vmem:[%s5640 + $0x78] sm:$0xff]
  %v5657 = vld [vmem:[%s5640 + $0x80] sm:$0xff]
  %v5658 = vld [vmem:[%s5640 + $0x88] sm:$0xff]
  %v5659 = vld [vmem:[%s5640 + $0x90] sm:$0xff]
  %v5660 = vld [vmem:[%s5640 + $0x98] sm:$0xff]
  %v5661 = vld [vmem:[%s5640 + $0xa0] sm:$0xff]
  %v5662 = vld [vmem:[%s5640 + $0xa8] sm:$0xff]
  %v5663 = vld [vmem:[%s5640 + $0xb0] sm:$0xff]
  %v5664 = vld [vmem:[%s5640 + $0xb8] sm:$0xff]
  %v5665 = vld [vmem:[%s5640 + $0xc0] sm:$0xff]
  %v5666 = vmul.f32 %v5409, %v5641
  %v5667 = vmul.f32 %v5412, %v5642
  %v5668 = vmul.f32 %v5417, %v5643
  %v5669 = vmul.f32 %v5420, %v5644
  %v5670 = vmul.f32 %v5425, %v5645
  %v5671 = vmul.f32 %v5428, %v5646
  %v5672 = vmul.f32 %v5433, %v5647
  %v5673 = vmul.f32 %v5436, %v5648
  %v5674 = vmul.f32 %v5441, %v5649
  %v5675 = vmul.f32 %v5444, %v5650
  %v5676 = vmul.f32 %v5449, %v5651
  %v5677 = vmul.f32 %v5452, %v5652
  %v5678 = vmul.f32 %v5457, %v5653
  %v5679 = vmul.f32 %v5460, %v5654
  %v5680 = vmul.f32 %v5465, %v5655
  %v5681 = vmul.f32 %v5468, %v5656
  %v5682 = vmul.f32 %v5473, %v5657
  %v5683 = vmul.f32 %v5476, %v5658
  %v5684 = vmul.f32 %v5481, %v5659
  %v5685 = vmul.f32 %v5484, %v5660
  %v5686 = vmul.f32 %v5489, %v5661
  %v5687 = vmul.f32 %v5492, %v5662
  %v5688 = vmul.f32 %v5497, %v5663
  %v5689 = vmul.f32 %v5500, %v5664
  %v5690 = vmul.f32 %v5505, %v5665
  %5691 = vadd.xlane.f32.xlu0 %v5666
  %v5692 = vpop.xlane.xlu0 %5691
  %5693 = vadd.xlane.f32.xlu0 %v5667
  %v5694 = vpop.xlane.xlu0 %5693
  %5695 = vadd.xlane.f32.xlu0 %v5668
  %v5696 = vpop.xlane.xlu0 %5695
  %5697 = vadd.xlane.f32.xlu0 %v5669
  %v5698 = vpop.xlane.xlu0 %5697
  %5699 = vadd.xlane.f32.xlu0 %v5670
  %v5700 = vpop.xlane.xlu0 %5699
  %5701 = vadd.xlane.f32.xlu0 %v5671
  %v5702 = vpop.xlane.xlu0 %5701
  %5703 = vadd.xlane.f32.xlu0 %v5672
  %v5704 = vpop.xlane.xlu0 %5703
  %5705 = vadd.xlane.f32.xlu0 %v5673
  %v5706 = vpop.xlane.xlu0 %5705
  %5707 = vadd.xlane.f32.xlu0 %v5674
  %v5708 = vpop.xlane.xlu0 %5707
  %5709 = vadd.xlane.f32.xlu0 %v5675
  %v5710 = vpop.xlane.xlu0 %5709
  %5711 = vadd.xlane.f32.xlu0 %v5676
  %v5712 = vpop.xlane.xlu0 %5711
  %5713 = vadd.xlane.f32.xlu0 %v5677
  %v5714 = vpop.xlane.xlu0 %5713
  %5715 = vadd.xlane.f32.xlu0 %v5678
  %v5716 = vpop.xlane.xlu0 %5715
  %5717 = vadd.xlane.f32.xlu0 %v5679
  %v5718 = vpop.xlane.xlu0 %5717
  %5719 = vadd.xlane.f32.xlu0 %v5680
  %v5720 = vpop.xlane.xlu0 %5719
  %5721 = vadd.xlane.f32.xlu0 %v5681
  %v5722 = vpop.xlane.xlu0 %5721
  %5723 = vadd.xlane.f32.xlu0 %v5682
  %v5724 = vpop.xlane.xlu0 %5723
  %5725 = vadd.xlane.f32.xlu0 %v5683
  %v5726 = vpop.xlane.xlu0 %5725
  %5727 = vadd.xlane.f32.xlu0 %v5684
  %v5728 = vpop.xlane.xlu0 %5727
  %5729 = vadd.xlane.f32.xlu0 %v5685
  %v5730 = vpop.xlane.xlu0 %5729
  %5731 = vadd.xlane.f32.xlu0 %v5686
  %v5732 = vpop.xlane.xlu0 %5731
  %5733 = vadd.xlane.f32.xlu0 %v5687
  %v5734 = vpop.xlane.xlu0 %5733
  %5735 = vadd.xlane.f32.xlu0 %v5688
  %v5736 = vpop.xlane.xlu0 %5735
  %5737 = vadd.xlane.f32.xlu0 %v5689
  %v5738 = vpop.xlane.xlu0 %5737
  %5739 = vadd.xlane.f32.xlu0 %v5690
  %v5740 = vpop.xlane.xlu0 %5739
  %v5741 = vadd.f32 %v5692, %v5694
  %v5742 = vadd.f32 %v5741, %v5696
  %v5743 = vadd.f32 %v5742, %v5698
  %v5744 = vadd.f32 %v5743, %v5700
  %v5745 = vadd.f32 %v5744, %v5702
  %v5746 = vadd.f32 %v5745, %v5704
  %v5747 = vadd.f32 %v5746, %v5706
  %v5748 = vadd.f32 %v5747, %v5708
  %v5749 = vadd.f32 %v5748, %v5710
  %v5750 = vadd.f32 %v5749, %v5712
  %v5751 = vadd.f32 %v5750, %v5714
  %v5752 = vadd.f32 %v5751, %v5716
  %v5753 = vadd.f32 %v5752, %v5718
  %v5754 = vadd.f32 %v5753, %v5720
  %v5755 = vadd.f32 %v5754, %v5722
  %v5756 = vadd.f32 %v5755, %v5724
  %v5757 = vadd.f32 %v5756, %v5726
  %v5758 = vadd.f32 %v5757, %v5728
  %v5759 = vadd.f32 %v5758, %v5730
  %v5760 = vadd.f32 %v5759, %v5732
  %v5761 = vadd.f32 %v5760, %v5734
  %v5762 = vadd.f32 %v5761, %v5736
  %v5763 = vadd.f32 %v5762, %v5738
  %v5764 = vadd.f32 %v5763, %v5740
  %v5765 = vrot.slane %v5764, 4
  %v5766 = vadd.f32 %v5764, %v5765
  %v5767 = vrot.slane %v5766, 2
  %v5768 = vadd.f32 %v5766, %v5767
  %v5769 = vrot.slane %v5768, 1
  %v5770 = vadd.f32 %v5768, %v5769
  %s5771 = scalar_lea.vmem %s7, 400
  %v5772 = vld [vmem:[%s5771] sm:$0xff]
  %v5773 = vld [vmem:[%s5771 + $0x8] sm:$0xff]
  %v5774 = vld [vmem:[%s5771 + $0x10] sm:$0xff]
  %v5775 = vld [vmem:[%s5771 + $0x18] sm:$0xff]
  %v5776 = vld [vmem:[%s5771 + $0x20] sm:$0xff]
  %v5777 = vld [vmem:[%s5771 + $0x28] sm:$0xff]
  %v5778 = vld [vmem:[%s5771 + $0x30] sm:$0xff]
  %v5779 = vld [vmem:[%s5771 + $0x38] sm:$0xff]
  %v5780 = vld [vmem:[%s5771 + $0x40] sm:$0xff]
  %v5781 = vld [vmem:[%s5771 + $0x48] sm:$0xff]
  %v5782 = vld [vmem:[%s5771 + $0x50] sm:$0xff]
  %v5783 = vld [vmem:[%s5771 + $0x58] sm:$0xff]
  %v5784 = vld [vmem:[%s5771 + $0x60] sm:$0xff]
  %v5785 = vld [vmem:[%s5771 + $0x68] sm:$0xff]
  %v5786 = vld [vmem:[%s5771 + $0x70] sm:$0xff]
  %v5787 = vld [vmem:[%s5771 + $0x78] sm:$0xff]
  %v5788 = vld [vmem:[%s5771 + $0x80] sm:$0xff]
  %v5789 = vld [vmem:[%s5771 + $0x88] sm:$0xff]
  %v5790 = vld [vmem:[%s5771 + $0x90] sm:$0xff]
  %v5791 = vld [vmem:[%s5771 + $0x98] sm:$0xff]
  %v5792 = vld [vmem:[%s5771 + $0xa0] sm:$0xff]
  %v5793 = vld [vmem:[%s5771 + $0xa8] sm:$0xff]
  %v5794 = vld [vmem:[%s5771 + $0xb0] sm:$0xff]
  %v5795 = vld [vmem:[%s5771 + $0xb8] sm:$0xff]
  %v5796 = vld [vmem:[%s5771 + $0xc0] sm:$0xff]
  %v5797 = vmul.f32 %v5409, %v5772
  %v5798 = vmul.f32 %v5412, %v5773
  %v5799 = vmul.f32 %v5417, %v5774
  %v5800 = vmul.f32 %v5420, %v5775
  %v5801 = vmul.f32 %v5425, %v5776
  %v5802 = vmul.f32 %v5428, %v5777
  %v5803 = vmul.f32 %v5433, %v5778
  %v5804 = vmul.f32 %v5436, %v5779
  %v5805 = vmul.f32 %v5441, %v5780
  %v5806 = vmul.f32 %v5444, %v5781
  %v5807 = vmul.f32 %v5449, %v5782
  %v5808 = vmul.f32 %v5452, %v5783
  %v5809 = vmul.f32 %v5457, %v5784
  %v5810 = vmul.f32 %v5460, %v5785
  %v5811 = vmul.f32 %v5465, %v5786
  %v5812 = vmul.f32 %v5468, %v5787
  %v5813 = vmul.f32 %v5473, %v5788
  %v5814 = vmul.f32 %v5476, %v5789
  %v5815 = vmul.f32 %v5481, %v5790
  %v5816 = vmul.f32 %v5484, %v5791
  %v5817 = vmul.f32 %v5489, %v5792
  %v5818 = vmul.f32 %v5492, %v5793
  %v5819 = vmul.f32 %v5497, %v5794
  %v5820 = vmul.f32 %v5500, %v5795
  %v5821 = vmul.f32 %v5505, %v5796
  %5822 = vadd.xlane.f32.xlu0 %v5797
  %v5823 = vpop.xlane.xlu0 %5822
  %5824 = vadd.xlane.f32.xlu0 %v5798
  %v5825 = vpop.xlane.xlu0 %5824
  %5826 = vadd.xlane.f32.xlu0 %v5799
  %v5827 = vpop.xlane.xlu0 %5826
  %5828 = vadd.xlane.f32.xlu0 %v5800
  %v5829 = vpop.xlane.xlu0 %5828
  %5830 = vadd.xlane.f32.xlu0 %v5801
  %v5831 = vpop.xlane.xlu0 %5830
  %5832 = vadd.xlane.f32.xlu0 %v5802
  %v5833 = vpop.xlane.xlu0 %5832
  %5834 = vadd.xlane.f32.xlu0 %v5803
  %v5835 = vpop.xlane.xlu0 %5834
  %5836 = vadd.xlane.f32.xlu0 %v5804
  %v5837 = vpop.xlane.xlu0 %5836
  %5838 = vadd.xlane.f32.xlu0 %v5805
  %v5839 = vpop.xlane.xlu0 %5838
  %5840 = vadd.xlane.f32.xlu0 %v5806
  %v5841 = vpop.xlane.xlu0 %5840
  %5842 = vadd.xlane.f32.xlu0 %v5807
  %v5843 = vpop.xlane.xlu0 %5842
  %5844 = vadd.xlane.f32.xlu0 %v5808
  %v5845 = vpop.xlane.xlu0 %5844
  %5846 = vadd.xlane.f32.xlu0 %v5809
  %v5847 = vpop.xlane.xlu0 %5846
  %5848 = vadd.xlane.f32.xlu0 %v5810
  %v5849 = vpop.xlane.xlu0 %5848
  %5850 = vadd.xlane.f32.xlu0 %v5811
  %v5851 = vpop.xlane.xlu0 %5850
  %5852 = vadd.xlane.f32.xlu0 %v5812
  %v5853 = vpop.xlane.xlu0 %5852
  %5854 = vadd.xlane.f32.xlu0 %v5813
  %v5855 = vpop.xlane.xlu0 %5854
  %5856 = vadd.xlane.f32.xlu0 %v5814
  %v5857 = vpop.xlane.xlu0 %5856
  %5858 = vadd.xlane.f32.xlu0 %v5815
  %v5859 = vpop.xlane.xlu0 %5858
  %5860 = vadd.xlane.f32.xlu0 %v5816
  %v5861 = vpop.xlane.xlu0 %5860
  %5862 = vadd.xlane.f32.xlu0 %v5817
  %v5863 = vpop.xlane.xlu0 %5862
  %5864 = vadd.xlane.f32.xlu0 %v5818
  %v5865 = vpop.xlane.xlu0 %5864
  %5866 = vadd.xlane.f32.xlu0 %v5819
  %v5867 = vpop.xlane.xlu0 %5866
  %5868 = vadd.xlane.f32.xlu0 %v5820
  %v5869 = vpop.xlane.xlu0 %5868
  %5870 = vadd.xlane.f32.xlu0 %v5821
  %v5871 = vpop.xlane.xlu0 %5870
  %v5872 = vadd.f32 %v5823, %v5825
  %v5873 = vadd.f32 %v5872, %v5827
  %v5874 = vadd.f32 %v5873, %v5829
  %v5875 = vadd.f32 %v5874, %v5831
  %v5876 = vadd.f32 %v5875, %v5833
  %v5877 = vadd.f32 %v5876, %v5835
  %v5878 = vadd.f32 %v5877, %v5837
  %v5879 = vadd.f32 %v5878, %v5839
  %v5880 = vadd.f32 %v5879, %v5841
  %v5881 = vadd.f32 %v5880, %v5843
  %v5882 = vadd.f32 %v5881, %v5845
  %v5883 = vadd.f32 %v5882, %v5847
  %v5884 = vadd.f32 %v5883, %v5849
  %v5885 = vadd.f32 %v5884, %v5851
  %v5886 = vadd.f32 %v5885, %v5853
  %v5887 = vadd.f32 %v5886, %v5855
  %v5888 = vadd.f32 %v5887, %v5857
  %v5889 = vadd.f32 %v5888, %v5859
  %v5890 = vadd.f32 %v5889, %v5861
  %v5891 = vadd.f32 %v5890, %v5863
  %v5892 = vadd.f32 %v5891, %v5865
  %v5893 = vadd.f32 %v5892, %v5867
  %v5894 = vadd.f32 %v5893, %v5869
  %v5895 = vadd.f32 %v5894, %v5871
  %v5896 = vrot.slane %v5895, 4
  %v5897 = vadd.f32 %v5895, %v5896
  %v5898 = vrot.slane %v5897, 2
  %v5899 = vadd.f32 %v5897, %v5898
  %v5900 = vrot.slane %v5899, 1
  %v5901 = vadd.f32 %v5899, %v5900
  %s5902 = scalar_lea.vmem %s7, 600
  %v5903 = vld [vmem:[%s5902] sm:$0xff]
  %v5904 = vld [vmem:[%s5902 + $0x8] sm:$0xff]
  %v5905 = vld [vmem:[%s5902 + $0x10] sm:$0xff]
  %v5906 = vld [vmem:[%s5902 + $0x18] sm:$0xff]
  %v5907 = vld [vmem:[%s5902 + $0x20] sm:$0xff]
  %v5908 = vld [vmem:[%s5902 + $0x28] sm:$0xff]
  %v5909 = vld [vmem:[%s5902 + $0x30] sm:$0xff]
  %v5910 = vld [vmem:[%s5902 + $0x38] sm:$0xff]
  %v5911 = vld [vmem:[%s5902 + $0x40] sm:$0xff]
  %v5912 = vld [vmem:[%s5902 + $0x48] sm:$0xff]
  %v5913 = vld [vmem:[%s5902 + $0x50] sm:$0xff]
  %v5914 = vld [vmem:[%s5902 + $0x58] sm:$0xff]
  %v5915 = vld [vmem:[%s5902 + $0x60] sm:$0xff]
  %v5916 = vld [vmem:[%s5902 + $0x68] sm:$0xff]
  %v5917 = vld [vmem:[%s5902 + $0x70] sm:$0xff]
  %v5918 = vld [vmem:[%s5902 + $0x78] sm:$0xff]
  %v5919 = vld [vmem:[%s5902 + $0x80] sm:$0xff]
  %v5920 = vld [vmem:[%s5902 + $0x88] sm:$0xff]
  %v5921 = vld [vmem:[%s5902 + $0x90] sm:$0xff]
  %v5922 = vld [vmem:[%s5902 + $0x98] sm:$0xff]
  %v5923 = vld [vmem:[%s5902 + $0xa0] sm:$0xff]
  %v5924 = vld [vmem:[%s5902 + $0xa8] sm:$0xff]
  %v5925 = vld [vmem:[%s5902 + $0xb0] sm:$0xff]
  %v5926 = vld [vmem:[%s5902 + $0xb8] sm:$0xff]
  %v5927 = vld [vmem:[%s5902 + $0xc0] sm:$0xff]
  %v5928 = vmul.f32 %v5409, %v5903
  %v5929 = vmul.f32 %v5412, %v5904
  %v5930 = vmul.f32 %v5417, %v5905
  %v5931 = vmul.f32 %v5420, %v5906
  %v5932 = vmul.f32 %v5425, %v5907
  %v5933 = vmul.f32 %v5428, %v5908
  %v5934 = vmul.f32 %v5433, %v5909
  %v5935 = vmul.f32 %v5436, %v5910
  %v5936 = vmul.f32 %v5441, %v5911
  %v5937 = vmul.f32 %v5444, %v5912
  %v5938 = vmul.f32 %v5449, %v5913
  %v5939 = vmul.f32 %v5452, %v5914
  %v5940 = vmul.f32 %v5457, %v5915
  %v5941 = vmul.f32 %v5460, %v5916
  %v5942 = vmul.f32 %v5465, %v5917
  %v5943 = vmul.f32 %v5468, %v5918
  %v5944 = vmul.f32 %v5473, %v5919
  %v5945 = vmul.f32 %v5476, %v5920
  %v5946 = vmul.f32 %v5481, %v5921
  %v5947 = vmul.f32 %v5484, %v5922
  %v5948 = vmul.f32 %v5489, %v5923
  %v5949 = vmul.f32 %v5492, %v5924
  %v5950 = vmul.f32 %v5497, %v5925
  %v5951 = vmul.f32 %v5500, %v5926
  %v5952 = vmul.f32 %v5505, %v5927
  %5953 = vadd.xlane.f32.xlu0 %v5928
  %v5954 = vpop.xlane.xlu0 %5953
  %5955 = vadd.xlane.f32.xlu0 %v5929
  %v5956 = vpop.xlane.xlu0 %5955
  %5957 = vadd.xlane.f32.xlu0 %v5930
  %v5958 = vpop.xlane.xlu0 %5957
  %5959 = vadd.xlane.f32.xlu0 %v5931
  %v5960 = vpop.xlane.xlu0 %5959
  %5961 = vadd.xlane.f32.xlu0 %v5932
  %v5962 = vpop.xlane.xlu0 %5961
  %5963 = vadd.xlane.f32.xlu0 %v5933
  %v5964 = vpop.xlane.xlu0 %5963
  %5965 = vadd.xlane.f32.xlu0 %v5934
  %v5966 = vpop.xlane.xlu0 %5965
  %5967 = vadd.xlane.f32.xlu0 %v5935
  %v5968 = vpop.xlane.xlu0 %5967
  %5969 = vadd.xlane.f32.xlu0 %v5936
  %v5970 = vpop.xlane.xlu0 %5969
  %5971 = vadd.xlane.f32.xlu0 %v5937
  %v5972 = vpop.xlane.xlu0 %5971
  %5973 = vadd.xlane.f32.xlu0 %v5938
  %v5974 = vpop.xlane.xlu0 %5973
  %5975 = vadd.xlane.f32.xlu0 %v5939
  %v5976 = vpop.xlane.xlu0 %5975
  %5977 = vadd.xlane.f32.xlu0 %v5940
  %v5978 = vpop.xlane.xlu0 %5977
  %5979 = vadd.xlane.f32.xlu0 %v5941
  %v5980 = vpop.xlane.xlu0 %5979
  %5981 = vadd.xlane.f32.xlu0 %v5942
  %v5982 = vpop.xlane.xlu0 %5981
  %5983 = vadd.xlane.f32.xlu0 %v5943
  %v5984 = vpop.xlane.xlu0 %5983
  %5985 = vadd.xlane.f32.xlu0 %v5944
  %v5986 = vpop.xlane.xlu0 %5985
  %5987 = vadd.xlane.f32.xlu0 %v5945
  %v5988 = vpop.xlane.xlu0 %5987
  %5989 = vadd.xlane.f32.xlu0 %v5946
  %v5990 = vpop.xlane.xlu0 %5989
  %5991 = vadd.xlane.f32.xlu0 %v5947
  %v5992 = vpop.xlane.xlu0 %5991
  %5993 = vadd.xlane.f32.xlu0 %v5948
  %v5994 = vpop.xlane.xlu0 %5993
  %5995 = vadd.xlane.f32.xlu0 %v5949
  %v5996 = vpop.xlane.xlu0 %5995
  %5997 = vadd.xlane.f32.xlu0 %v5950
  %v5998 = vpop.xlane.xlu0 %5997
  %5999 = vadd.xlane.f32.xlu0 %v5951
  %v6000 = vpop.xlane.xlu0 %5999
  %6001 = vadd.xlane.f32.xlu0 %v5952
  %v6002 = vpop.xlane.xlu0 %6001
  %v6003 = vadd.f32 %v5954, %v5956
  %v6004 = vadd.f32 %v6003, %v5958
  %v6005 = vadd.f32 %v6004, %v5960
  %v6006 = vadd.f32 %v6005, %v5962
  %v6007 = vadd.f32 %v6006, %v5964
  %v6008 = vadd.f32 %v6007, %v5966
  %v6009 = vadd.f32 %v6008, %v5968
  %v6010 = vadd.f32 %v6009, %v5970
  %v6011 = vadd.f32 %v6010, %v5972
  %v6012 = vadd.f32 %v6011, %v5974
  %v6013 = vadd.f32 %v6012, %v5976
  %v6014 = vadd.f32 %v6013, %v5978
  %v6015 = vadd.f32 %v6014, %v5980
  %v6016 = vadd.f32 %v6015, %v5982
  %v6017 = vadd.f32 %v6016, %v5984
  %v6018 = vadd.f32 %v6017, %v5986
  %v6019 = vadd.f32 %v6018, %v5988
  %v6020 = vadd.f32 %v6019, %v5990
  %v6021 = vadd.f32 %v6020, %v5992
  %v6022 = vadd.f32 %v6021, %v5994
  %v6023 = vadd.f32 %v6022, %v5996
  %v6024 = vadd.f32 %v6023, %v5998
  %v6025 = vadd.f32 %v6024, %v6000
  %v6026 = vadd.f32 %v6025, %v6002
  %v6027 = vrot.slane %v6026, 4
  %v6028 = vadd.f32 %v6026, %v6027
  %v6029 = vrot.slane %v6028, 2
  %v6030 = vadd.f32 %v6028, %v6029
  %v6031 = vrot.slane %v6030, 1
  %v6032 = vadd.f32 %v6030, %v6031
  %vm6033 = vcmask 7168
  %v6034 = vsel %vm6033, %v5639, %v5770
  %vm6035 = vcmask 15360
  %v6036 = vsel %vm6035, %v6034, %v5901
  %vm6037 = vcmask 23552
  %v6038 = vsel %vm6037, %v6036, %v6032
  %v6039 = vld [vmem:[%s8] sm:$0x1]
  %v6040 = vadd.f32 %v6038, %v6039
  %vm6041 = vcmask 24576
  %6042 = vst.msk [vmem:[%s9] sm:$0x1] %vm6041, %v6040
  // Predicated region
  $region38: #{deepconvnet_forward.1} parent=0 // pred_check
    _
  $region39: #{deepconvnet_forward.1} parent=0 // pred_check_branch
    %6044 = sbr.rel (0) target = $region41
  $region40: #{deepconvnet_forward.1} parent=0 // pred_region
    _
  $region41: #{deepconvnet_forward.1} parent=0 // pred_fallthru
    _
  // Predicated region
  $region42: #{deepconvnet_forward.1} parent=0 // pred_check
    _
  $region43: #{deepconvnet_forward.1} parent=0 // pred_check_branch
    %6046 = sbr.rel (0) target = $region45
  $region44: #{deepconvnet_forward.1} parent=0 // pred_region
    _
  $region45: #{deepconvnet_forward.1} parent=0 // pred_fallthru
    _

</llo_original>
